<compile_context>
chip_gen: v6e
topology: v6e:2x2x1
jax: 0.10.0
libtpu: 0.0.40
codegen_flags: <defaults>
</compile_context>

<pallas_src>
import functools

import jax
import jax.numpy as jnp
from jax import lax
from jax.experimental import pallas as pl
from jax.experimental.pallas import tpu as pltpu


def _round_up(x, m):
    return (x + m - 1) // m * m


# -----------------------------------------------------------------------------
# Fused kernel.
#   refs layout:
#     [0]                      x_ref      (S, Bt, D)       sequence-major input
#     [1 .. 3L]                per layer: w_ih_t (Din,4Hp), w_hh_t (Hp,4Hp), b (1,4Hp)
#     [3L+1]                   w_att      (1, Hp)
#     [3L+2]                   w_out_t    (Hp, Op)
#     [3L+3]                   b_out      (1, Op)
#     [3L+4]                   out_ref    (Bt, Op)
#     [3L+5]                   g_seq      (S*Bt, 4Hp)  VMEM scratch (gate pre-projection)
#     [3L+6]                   h_seq      (S*Bt, Hp)   VMEM scratch (inter-layer hidden seq)
# PyTorch gate order: i, f, g, o (each padded to Hp lanes).
# -----------------------------------------------------------------------------
def _fused_kernel(num_layers, *refs):
    x_ref = refs[0]
    layer_refs = refs[1:1 + 3 * num_layers]
    w_att_ref = refs[1 + 3 * num_layers]
    w_out_ref = refs[2 + 3 * num_layers]
    b_out_ref = refs[3 + 3 * num_layers]
    out_ref = refs[4 + 3 * num_layers]
    g_seq = refs[5 + 3 * num_layers]
    h_seq = refs[6 + 3 * num_layers]

    S, Bt, D = x_ref.shape
    Hp = h_seq.shape[1]
    unroll = min(S, 8)

    def cell(g_rows, h, c, w_hh):
        # g_rows already contains x_t @ W_ih + b (precomputed, bias folded in).
        gates = g_rows + jnp.dot(h, w_hh, preferred_element_type=jnp.float32)
        # Gate slices land exactly on 128-lane boundaries (Hp % 128 == 0).
        i_g = jax.nn.sigmoid(gates[:, 0 * Hp:1 * Hp])
        f_g = jax.nn.sigmoid(gates[:, 1 * Hp:2 * Hp])
        g_g = jnp.tanh(gates[:, 2 * Hp:3 * Hp])
        o_g = jax.nn.sigmoid(gates[:, 3 * Hp:4 * Hp])
        c_new = f_g * c + i_g * g_g
        h_new = o_g * jnp.tanh(c_new)
        return h_new, c_new

    for layer in range(num_layers):
        w_ih = layer_refs[3 * layer][...]
        w_hh = layer_refs[3 * layer + 1][...]
        b = layer_refs[3 * layer + 2][...]

        # Hoisted input projection: one big MXU matmul for all timesteps at
        # once; removes one matmul + the bias add from the serial time loop.
        if layer == 0:
            # Layout-trivial collapse: (S, Bt, D) -> (S*Bt, D); lane dim stays last,
            # Bt is a multiple of 8 so sublane packing is preserved.
            src = x_ref[...].reshape(S * Bt, D)
        else:
            src = h_seq[...]
        g_seq[...] = jnp.dot(src, w_ih, preferred_element_type=jnp.float32) + b

        h0 = jnp.zeros((Bt, Hp), jnp.float32)
        c0 = jnp.zeros((Bt, Hp), jnp.float32)

        if layer < num_layers - 1:
            # Intermediate layer: write hidden sequence to VMEM for next layer.
            def step(t, carry, w_hh=w_hh):
                h, c = carry
                r = pl.multiple_of(t * Bt, Bt)
                h_new, c_new = cell(g_seq[pl.ds(r, Bt), :], h, c, w_hh)
                h_seq[pl.ds(r, Bt), :] = h_new
                return (h_new, c_new)

            lax.fori_loop(0, S, step, (h0, c0), unroll=unroll)
        else:
            # Last layer: fuse attention via online softmax over the sequence;
            # no (S, B, H) tensor is ever materialized in HBM.
            # Broadcast of the attention row is hoisted OUT of the loop (JAX does
            # not CSE broadcast_in_dim inside loops).
            w_att_b = jnp.broadcast_to(w_att_ref[...], (Bt, Hp))

            def step_last(t, carry, w_hh=w_hh, w_att_b=w_att_b):
                h, c, m, l, ctx = carry
                r = pl.multiple_of(t * Bt, Bt)
                h_new, c_new = cell(g_seq[pl.ds(r, Bt), :], h, c, w_hh)
                # XLU cross-lane reduce: cheap, overlaps with VPU/MXU work.
                s = jnp.sum(h_new * w_att_b, axis=-1, keepdims=True)   # (Bt, 1)
                m_new = jnp.maximum(m, s)
                a = jnp.exp(m - m_new)
                p = jnp.exp(s - m_new)
                return (h_new, c_new, m_new, a * l + p, a * ctx + p * h_new)

            init = (h0, c0,
                    jnp.full((Bt, 1), -jnp.inf, jnp.float32),
                    jnp.zeros((Bt, 1), jnp.float32),
                    jnp.zeros((Bt, Hp), jnp.float32))
            _, _, _, l_fin, ctx_fin = lax.fori_loop(0, S, step_last, init,
                                                    unroll=unroll)
            context = ctx_fin / l_fin                               # exact softmax (once)
            out_ref[...] = (jnp.dot(context, w_out_ref[...],
                                    preferred_element_type=jnp.float32)
                            + b_out_ref[...])


# -----------------------------------------------------------------------------
# Wrapper: padding / transposes / BlockSpecs.
# -----------------------------------------------------------------------------
def _pad_gate_cols(w_t, H, Hp):
    """(K, 4H) -> (K, 4Hp), padding each gate block (i,f,g,o) independently."""
    K = w_t.shape[0]
    out = jnp.zeros((K, 4 * Hp), w_t.dtype)
    for k in range(4):
        out = out.at[:, k * Hp:k * Hp + H].set(w_t[:, k * H:(k + 1) * H])
    return out


def lstmx1_attention_forward(x_bsd, params, *, b_tile=None):
    """x_bsd: (B, S, input_size), batch_first like the PyTorch module."""
    B, S, D = x_bsd.shape
    lstm = params["lstm"]
    L = len(lstm)
    H = lstm[0]["w_hh"].shape[1]
    O = params["w_out"].shape[0]

    Hp = _round_up(H, 128)       # lane-align hidden size
    G = 4 * Hp
    Op = _round_up(O, 128)       # lane-dense output store
    if b_tile is None:
        # Bigger batch tile -> bigger MXU M in the recurrent matmul and fewer
        # grid steps; cap at 128 rows to keep the per-tile VMEM footprint small.
        b_tile = min(_round_up(B, 8), 128)
    Bp = _round_up(B, b_tile)    # sublane-align batch

    # ---- operands: sequence-major input + transposed / gate-padded weights.
    x = jnp.transpose(x_bsd, (1, 0, 2)).astype(jnp.float32)        # (S, B, D)
    x = jnp.pad(x, ((0, 0), (0, Bp - B), (0, 0)))                   # (S, Bp, D)

    flat_inputs = [x]
    for l, layer in enumerate(lstm):
        d_in = layer["w_ih"].shape[1]
        d_in_p = d_in if l == 0 else Hp
        w_ih_t = _pad_gate_cols(jnp.transpose(layer["w_ih"]).astype(jnp.float32), H, Hp)
        w_ih_t = jnp.pad(w_ih_t, ((0, d_in_p - d_in), (0, 0)))       # (Din, 4Hp)
        w_hh_t = _pad_gate_cols(jnp.transpose(layer["w_hh"]).astype(jnp.float32), H, Hp)
        w_hh_t = jnp.pad(w_hh_t, ((0, Hp - H), (0, 0)))              # (Hp, 4Hp)
        b = _pad_gate_cols((layer["b_ih"] + layer["b_hh"])
                           .astype(jnp.float32).reshape(1, 4 * H), H, Hp)  # (1, 4Hp)
        flat_inputs += [w_ih_t, w_hh_t, b]

    w_att = jnp.pad(params["w_att"].astype(jnp.float32), ((0, 0), (0, Hp - H)))     # (1, Hp)
    w_out_t = jnp.pad(jnp.transpose(params["w_out"]).astype(jnp.float32),
                      ((0, Hp - H), (0, Op - O)))                                   # (Hp, Op)
    b_out = jnp.pad(params["b_out"].astype(jnp.float32).reshape(1, O),
                    ((0, 0), (0, Op - O)))                                          # (1, Op)
    flat_inputs += [w_att, w_out_t, b_out]

    # ---- BlockSpecs: batch tiled over a "parallel" grid axis; weights use
    # constant index maps so they stay resident in VMEM across tiles.
    in_specs = [pl.BlockSpec((S, b_tile, D), lambda j: (0, j, 0))]
    for l in range(L):
        d_in_p = D if l == 0 else Hp
        in_specs += [
            pl.BlockSpec((d_in_p, G), lambda j: (0, 0)),
            pl.BlockSpec((Hp, G), lambda j: (0, 0)),
            pl.BlockSpec((1, G), lambda j: (0, 0)),
        ]
    in_specs += [
        pl.BlockSpec((1, Hp), lambda j: (0, 0)),
        pl.BlockSpec((Hp, Op), lambda j: (0, 0)),
        pl.BlockSpec((1, Op), lambda j: (0, 0)),
    ]

    out_padded = pl.pallas_call(
        functools.partial(_fused_kernel, L),
        out_shape=jax.ShapeDtypeStruct((Bp, Op), jnp.float32),
        grid=(Bp // b_tile,),
        in_specs=in_specs,
        out_specs=pl.BlockSpec((b_tile, Op), lambda j: (j, 0)),
        scratch_shapes=[
            pltpu.VMEM((S * b_tile, G), jnp.float32),   # gate pre-projection buffer
            pltpu.VMEM((S * b_tile, Hp), jnp.float32),  # inter-layer hidden sequence
        ],
        compiler_params=pltpu.CompilerParams(dimension_semantics=("parallel",)),
    )(*flat_inputs)

    return out_padded[:B, :O]


# -----------------------------------------------------------------------------
# Deterministic parameter init (PyTorch shapes; uniform(-1/sqrt(H), 1/sqrt(H))).
# -----------------------------------------------------------------------------
def init_params(key, input_size, hidden_size, num_layers, output_size):
    bound = 1.0 / jnp.sqrt(hidden_size)
    keys = jax.random.split(key, 4 * num_layers + 3)
    lstm_layers = []
    k_idx = 0
    for l in range(num_layers):
        d_in = input_size if l == 0 else hidden_size
        w_ih = jax.random.uniform(keys[k_idx], (4 * hidden_size, d_in),
                                  minval=-bound, maxval=bound); k_idx += 1
        w_hh = jax.random.uniform(keys[k_idx], (4 * hidden_size, hidden_size),
                                  minval=-bound, maxval=bound); k_idx += 1
        b_ih = jax.random.uniform(keys[k_idx], (4 * hidden_size,),
                                  minval=-bound, maxval=bound); k_idx += 1
        b_hh = jax.random.uniform(keys[k_idx], (4 * hidden_size,),
                                  minval=-bound, maxval=bound); k_idx += 1
        lstm_layers.append(dict(w_ih=w_ih, w_hh=w_hh, b_ih=b_ih, b_hh=b_hh))
    w_att = jax.random.uniform(keys[k_idx], (1, hidden_size),
                               minval=-bound, maxval=bound); k_idx += 1
    w_out = jax.random.uniform(keys[k_idx], (output_size, hidden_size),
                               minval=-bound, maxval=bound); k_idx += 1
    b_out = jax.random.uniform(keys[k_idx], (output_size,),
                               minval=-bound, maxval=bound)
    return dict(lstm=lstm_layers, w_att=w_att, w_out=w_out, b_out=b_out)


# -----------------------------------------------------------------------------
# Pure-JAX reference of the same forward (for correctness check).
# -----------------------------------------------------------------------------
def reference_forward(x_bsd, params):
    B, S, _ = x_bsd.shape
    H = params["lstm"][0]["w_hh"].shape[1]
    h_seq = x_bsd
    for layer in params["lstm"]:
        w_ih, w_hh = layer["w_ih"], layer["w_hh"]
        b = layer["b_ih"] + layer["b_hh"]
        h = jnp.zeros((B, H), jnp.float32)
        c = jnp.zeros((B, H), jnp.float32)
        outs = []
        for t in range(S):
            gates = h_seq[:, t, :] @ w_ih.T + h @ w_hh.T + b
            i_g = jax.nn.sigmoid(gates[:, 0 * H:1 * H])
            f_g = jax.nn.sigmoid(gates[:, 1 * H:2 * H])
            g_g = jnp.tanh(gates[:, 2 * H:3 * H])
            o_g = jax.nn.sigmoid(gates[:, 3 * H:4 * H])
            c = f_g * c + i_g * g_g
            h = o_g * jnp.tanh(c)
            outs.append(h)
        h_seq = jnp.stack(outs, axis=1)                      # (B, S, H)
    scores = jnp.einsum("bsh,h->bs", h_seq, params["w_att"][0])
    weights = jax.nn.softmax(scores, axis=1)
    context = jnp.sum(h_seq * weights[:, :, None], axis=1)   # (B, H)
    return context @ params["w_out"].T + params["b_out"]


if __name__ == "__main__":
    input_size, hidden_size, num_layers, output_size = 4, 32, 2, 3
    batch, seq = 2, 8

    key = jax.random.PRNGKey(0)
    k_x, k_p = jax.random.split(key)
    x = jax.random.normal(k_x, (batch, seq, input_size), dtype=jnp.float32)
    params = init_params(k_p, input_size, hidden_size, num_layers, output_size)

    fwd = jax.jit(lstmx1_attention_forward)
    out = jax.block_until_ready(fwd(x, params))

    ref = reference_forward(x, params)
    assert out.shape == (batch, output_size)
    assert jnp.allclose(out, ref, atol=2e-4, rtol=2e-4), (out, ref)

    print("KERNEL_OK")
</pallas_src>

<mosaic_0001>
module attributes {stable_mosaic.version = 11 : i64} {
  func.func @_fused_kernel(%arg0: i32, %arg1: memref<8x8x4xf32, #tpu.memory_space<vmem>>, %arg2: memref<4x512xf32, #tpu.memory_space<vmem>>, %arg3: memref<128x512xf32, #tpu.memory_space<vmem>>, %arg4: memref<1x512xf32, #tpu.memory_space<vmem>>, %arg5: memref<128x512xf32, #tpu.memory_space<vmem>>, %arg6: memref<128x512xf32, #tpu.memory_space<vmem>>, %arg7: memref<1x512xf32, #tpu.memory_space<vmem>>, %arg8: memref<1x128xf32, #tpu.memory_space<vmem>>, %arg9: memref<128x128xf32, #tpu.memory_space<vmem>>, %arg10: memref<1x128xf32, #tpu.memory_space<vmem>>, %arg11: memref<8x128xf32, #tpu.memory_space<vmem>>, %arg12: memref<64x512xf32, #tpu.memory_space<vmem>>, %arg13: memref<64x128xf32, #tpu.memory_space<vmem>>) attributes {dimension_semantics = [#tpu.dimension_semantics<parallel>], iteration_bounds = array<i64: 1>, scalar_prefetch = 0 : i64, scratch_operands = 2 : i64, tpu.core_type = #tpu.core_type<tc>, window_params = [{transform_indices = @transform_0, window_bounds = array<i64: 8, 8, 4>}, {pipeline_mode = #tpu.pipeline_mode<synchronous>, transform_indices = @transform_1, window_bounds = array<i64: 4, 512>}, {pipeline_mode = #tpu.pipeline_mode<synchronous>, transform_indices = @transform_2, window_bounds = array<i64: 128, 512>}, {pipeline_mode = #tpu.pipeline_mode<synchronous>, transform_indices = @transform_3, window_bounds = array<i64: 1, 512>}, {pipeline_mode = #tpu.pipeline_mode<synchronous>, transform_indices = @transform_4, window_bounds = array<i64: 128, 512>}, {pipeline_mode = #tpu.pipeline_mode<synchronous>, transform_indices = @transform_5, window_bounds = array<i64: 128, 512>}, {pipeline_mode = #tpu.pipeline_mode<synchronous>, transform_indices = @transform_6, window_bounds = array<i64: 1, 512>}, {pipeline_mode = #tpu.pipeline_mode<synchronous>, transform_indices = @transform_7, window_bounds = array<i64: 1, 128>}, {pipeline_mode = #tpu.pipeline_mode<synchronous>, transform_indices = @transform_8, window_bounds = array<i64: 128, 128>}, {pipeline_mode = #tpu.pipeline_mode<synchronous>, transform_indices = @transform_9, window_bounds = array<i64: 1, 128>}, {transform_indices = @transform_10, window_bounds = array<i64: 8, 128>}]} {
    %c0 = arith.constant 0 : index
    %c0_0 = arith.constant 0 : index
    %0 = vector.load %arg2[%c0, %c0_0] : memref<4x512xf32, #tpu.memory_space<vmem>>, vector<4x512xf32>
    %c0_1 = arith.constant 0 : index
    %c0_2 = arith.constant 0 : index
    %1 = vector.load %arg3[%c0_1, %c0_2] : memref<128x512xf32, #tpu.memory_space<vmem>>, vector<128x512xf32>
    %c0_3 = arith.constant 0 : index
    %c0_4 = arith.constant 0 : index
    %2 = vector.load %arg4[%c0_3, %c0_4] : memref<1x512xf32, #tpu.memory_space<vmem>>, vector<1x512xf32>
    %c0_5 = arith.constant 0 : index
    %c0_6 = arith.constant 0 : index
    %c0_7 = arith.constant 0 : index
    %3 = vector.load %arg1[%c0_5, %c0_6, %c0_7] : memref<8x8x4xf32, #tpu.memory_space<vmem>>, vector<8x8x4xf32>
    %4 = vector.shape_cast %3 : vector<8x8x4xf32> to vector<64x4xf32>
    %cst = arith.constant dense<0.000000e+00> : vector<64x512xf32>
    %5 = tpu.matmul %4, %0, %cst {dimension_numbers = #tpu.dot_dimension_numbers<[1], [0], [0], [1], [0, 0, 1, 1], [], []>} : vector<64x4xf32>, vector<4x512xf32>, vector<64x512xf32> -> vector<64x512xf32>
    %6 = vector.broadcast %2 : vector<1x512xf32> to vector<64x512xf32>
    %7 = arith.addf %5, %6 : vector<64x512xf32>
    %c0_8 = arith.constant 0 : index
    %c0_9 = arith.constant 0 : index
    %8 = vector.load %arg12[%c0_8, %c0_9] : memref<64x512xf32, #tpu.memory_space<vmem>>, vector<64x512xf32>
    tpu.vector_store %arg12[%c0_8, %c0_9], %7 {strides = array<i32>} : memref<64x512xf32, #tpu.memory_space<vmem>>, vector<64x512xf32>,
    %cst_10 = arith.constant 0.000000e+00 : f32
    %9 = vector.broadcast %cst_10 : f32 to vector<8x128xf32>
    %cst_11 = arith.constant 0.000000e+00 : f32
    %10 = vector.broadcast %cst_11 : f32 to vector<8x128xf32>
    %c0_i32 = arith.constant 0 : i32
    %c8_i32 = arith.constant 8 : i32
    %11 = arith.muli %c0_i32, %c8_i32 : i32
    %12 = tpu.assume_multiple %11, 8 : i32
    %13 = arith.index_cast %12 : i32 to index
    %c0_12 = arith.constant 0 : index
    %14 = vector.load %arg12[%13, %c0_12] : memref<64x512xf32, #tpu.memory_space<vmem>>, vector<8x512xf32>
    %cst_13 = arith.constant dense<0.000000e+00> : vector<8x512xf32>
    %15 = tpu.matmul %9, %1, %cst_13 {dimension_numbers = #tpu.dot_dimension_numbers<[1], [0], [0], [1], [0, 0, 1, 1], [], []>} : vector<8x128xf32>, vector<128x512xf32>, vector<8x512xf32> -> vector<8x512xf32>
    %16 = arith.addf %14, %15 : vector<8x512xf32>
    %17 = vector.extract_strided_slice %16 {offsets = [0, 0], sizes = [8, 128], strides = [1, 1]} : vector<8x512xf32> to vector<8x128xf32>
    %18 = arith.negf %17 : vector<8x128xf32>
    %19 = math.exp %18 : vector<8x128xf32>
    %cst_14 = arith.constant 1.000000e+00 : f32
    %20 = vector.broadcast %cst_14 : f32 to vector<8x128xf32>
    %21 = arith.addf %20, %19 : vector<8x128xf32>
    %22 = arith.divf %20, %21 : vector<8x128xf32>
    %23 = vector.extract_strided_slice %16 {offsets = [0, 128], sizes = [8, 128], strides = [1, 1]} : vector<8x512xf32> to vector<8x128xf32>
    %24 = arith.negf %23 : vector<8x128xf32>
    %25 = math.exp %24 : vector<8x128xf32>
    %cst_15 = arith.constant 1.000000e+00 : f32
    %26 = vector.broadcast %cst_15 : f32 to vector<8x128xf32>
    %27 = arith.addf %26, %25 : vector<8x128xf32>
    %28 = arith.divf %26, %27 : vector<8x128xf32>
    %29 = vector.extract_strided_slice %16 {offsets = [0, 256], sizes = [8, 128], strides = [1, 1]} : vector<8x512xf32> to vector<8x128xf32>
    %30 = math.tanh %29 : vector<8x128xf32>
    %31 = vector.extract_strided_slice %16 {offsets = [0, 384], sizes = [8, 128], strides = [1, 1]} : vector<8x512xf32> to vector<8x128xf32>
    %32 = arith.negf %31 : vector<8x128xf32>
    %33 = math.exp %32 : vector<8x128xf32>
    %cst_16 = arith.constant 1.000000e+00 : f32
    %34 = vector.broadcast %cst_16 : f32 to vector<8x128xf32>
    %35 = arith.addf %34, %33 : vector<8x128xf32>
    %36 = arith.divf %34, %35 : vector<8x128xf32>
    %37 = arith.mulf %28, %10 : vector<8x128xf32>
    %38 = arith.mulf %22, %30 : vector<8x128xf32>
    %39 = arith.addf %37, %38 : vector<8x128xf32>
    %40 = math.tanh %39 : vector<8x128xf32>
    %41 = arith.mulf %36, %40 : vector<8x128xf32>
    %42 = arith.index_cast %12 : i32 to index
    %c0_17 = arith.constant 0 : index
    %43 = vector.load %arg13[%42, %c0_17] : memref<64x128xf32, #tpu.memory_space<vmem>>, vector<8x128xf32>
    tpu.vector_store %arg13[%42, %c0_17], %41 {strides = array<i32>} : memref<64x128xf32, #tpu.memory_space<vmem>>, vector<8x128xf32>,
    %c1_i32 = arith.constant 1 : i32
    %c8_i32_18 = arith.constant 8 : i32
    %44 = arith.muli %c1_i32, %c8_i32_18 : i32
    %45 = tpu.assume_multiple %44, 8 : i32
    %46 = arith.index_cast %45 : i32 to index
    %c0_19 = arith.constant 0 : index
    %47 = vector.load %arg12[%46, %c0_19] : memref<64x512xf32, #tpu.memory_space<vmem>>, vector<8x512xf32>
    %cst_20 = arith.constant dense<0.000000e+00> : vector<8x512xf32>
    %48 = tpu.matmul %41, %1, %cst_20 {dimension_numbers = #tpu.dot_dimension_numbers<[1], [0], [0], [1], [0, 0, 1, 1], [], []>} : vector<8x128xf32>, vector<128x512xf32>, vector<8x512xf32> -> vector<8x512xf32>
    %49 = arith.addf %47, %48 : vector<8x512xf32>
    %50 = vector.extract_strided_slice %49 {offsets = [0, 0], sizes = [8, 128], strides = [1, 1]} : vector<8x512xf32> to vector<8x128xf32>
    %51 = arith.negf %50 : vector<8x128xf32>
    %52 = math.exp %51 : vector<8x128xf32>
    %cst_21 = arith.constant 1.000000e+00 : f32
    %53 = vector.broadcast %cst_21 : f32 to vector<8x128xf32>
    %54 = arith.addf %53, %52 : vector<8x128xf32>
    %55 = arith.divf %53, %54 : vector<8x128xf32>
    %56 = vector.extract_strided_slice %49 {offsets = [0, 128], sizes = [8, 128], strides = [1, 1]} : vector<8x512xf32> to vector<8x128xf32>
    %57 = arith.negf %56 : vector<8x128xf32>
    %58 = math.exp %57 : vector<8x128xf32>
    %cst_22 = arith.constant 1.000000e+00 : f32
    %59 = vector.broadcast %cst_22 : f32 to vector<8x128xf32>
    %60 = arith.addf %59, %58 : vector<8x128xf32>
    %61 = arith.divf %59, %60 : vector<8x128xf32>
    %62 = vector.extract_strided_slice %49 {offsets = [0, 256], sizes = [8, 128], strides = [1, 1]} : vector<8x512xf32> to vector<8x128xf32>
    %63 = math.tanh %62 : vector<8x128xf32>
    %64 = vector.extract_strided_slice %49 {offsets = [0, 384], sizes = [8, 128], strides = [1, 1]} : vector<8x512xf32> to vector<8x128xf32>
    %65 = arith.negf %64 : vector<8x128xf32>
    %66 = math.exp %65 : vector<8x128xf32>
    %cst_23 = arith.constant 1.000000e+00 : f32
    %67 = vector.broadcast %cst_23 : f32 to vector<8x128xf32>
    %68 = arith.addf %67, %66 : vector<8x128xf32>
    %69 = arith.divf %67, %68 : vector<8x128xf32>
    %70 = arith.mulf %61, %39 : vector<8x128xf32>
    %71 = arith.mulf %55, %63 : vector<8x128xf32>
    %72 = arith.addf %70, %71 : vector<8x128xf32>
    %73 = math.tanh %72 : vector<8x128xf32>
    %74 = arith.mulf %69, %73 : vector<8x128xf32>
    %75 = arith.index_cast %45 : i32 to index
    %c0_24 = arith.constant 0 : index
    %76 = vector.load %arg13[%75, %c0_24] : memref<64x128xf32, #tpu.memory_space<vmem>>, vector<8x128xf32>
    tpu.vector_store %arg13[%75, %c0_24], %74 {strides = array<i32>} : memref<64x128xf32, #tpu.memory_space<vmem>>, vector<8x128xf32>,
    %c2_i32 = arith.constant 2 : i32
    %c8_i32_25 = arith.constant 8 : i32
    %77 = arith.muli %c2_i32, %c8_i32_25 : i32
    %78 = tpu.assume_multiple %77, 8 : i32
    %79 = arith.index_cast %78 : i32 to index
    %c0_26 = arith.constant 0 : index
    %80 = vector.load %arg12[%79, %c0_26] : memref<64x512xf32, #tpu.memory_space<vmem>>, vector<8x512xf32>
    %cst_27 = arith.constant dense<0.000000e+00> : vector<8x512xf32>
    %81 = tpu.matmul %74, %1, %cst_27 {dimension_numbers = #tpu.dot_dimension_numbers<[1], [0], [0], [1], [0, 0, 1, 1], [], []>} : vector<8x128xf32>, vector<128x512xf32>, vector<8x512xf32> -> vector<8x512xf32>
    %82 = arith.addf %80, %81 : vector<8x512xf32>
    %83 = vector.extract_strided_slice %82 {offsets = [0, 0], sizes = [8, 128], strides = [1, 1]} : vector<8x512xf32> to vector<8x128xf32>
    %84 = arith.negf %83 : vector<8x128xf32>
    %85 = math.exp %84 : vector<8x128xf32>
    %cst_28 = arith.constant 1.000000e+00 : f32
    %86 = vector.broadcast %cst_28 : f32 to vector<8x128xf32>
    %87 = arith.addf %86, %85 : vector<8x128xf32>
    %88 = arith.divf %86, %87 : vector<8x128xf32>
    %89 = vector.extract_strided_slice %82 {offsets = [0, 128], sizes = [8, 128], strides = [1, 1]} : vector<8x512xf32> to vector<8x128xf32>
    %90 = arith.negf %89 : vector<8x128xf32>
    %91 = math.exp %90 : vector<8x128xf32>
    %cst_29 = arith.constant 1.000000e+00 : f32
    %92 = vector.broadcast %cst_29 : f32 to vector<8x128xf32>
    %93 = arith.addf %92, %91 : vector<8x128xf32>
    %94 = arith.divf %92, %93 : vector<8x128xf32>
    %95 = vector.extract_strided_slice %82 {offsets = [0, 256], sizes = [8, 128], strides = [1, 1]} : vector<8x512xf32> to vector<8x128xf32>
    %96 = math.tanh %95 : vector<8x128xf32>
    %97 = vector.extract_strided_slice %82 {offsets = [0, 384], sizes = [8, 128], strides = [1, 1]} : vector<8x512xf32> to vector<8x128xf32>
    %98 = arith.negf %97 : vector<8x128xf32>
    %99 = math.exp %98 : vector<8x128xf32>
    %cst_30 = arith.constant 1.000000e+00 : f32
    %100 = vector.broadcast %cst_30 : f32 to vector<8x128xf32>
    %101 = arith.addf %100, %99 : vector<8x128xf32>
    %102 = arith.divf %100, %101 : vector<8x128xf32>
    %103 = arith.mulf %94, %72 : vector<8x128xf32>
    %104 = arith.mulf %88, %96 : vector<8x128xf32>
    %105 = arith.addf %103, %104 : vector<8x128xf32>
    %106 = math.tanh %105 : vector<8x128xf32>
    %107 = arith.mulf %102, %106 : vector<8x128xf32>
    %108 = arith.index_cast %78 : i32 to index
    %c0_31 = arith.constant 0 : index
    %109 = vector.load %arg13[%108, %c0_31] : memref<64x128xf32, #tpu.memory_space<vmem>>, vector<8x128xf32>
    tpu.vector_store %arg13[%108, %c0_31], %107 {strides = array<i32>} : memref<64x128xf32, #tpu.memory_space<vmem>>, vector<8x128xf32>,
    %c3_i32 = arith.constant 3 : i32
    %c8_i32_32 = arith.constant 8 : i32
    %110 = arith.muli %c3_i32, %c8_i32_32 : i32
    %111 = tpu.assume_multiple %110, 8 : i32
    %112 = arith.index_cast %111 : i32 to index
    %c0_33 = arith.constant 0 : index
    %113 = vector.load %arg12[%112, %c0_33] : memref<64x512xf32, #tpu.memory_space<vmem>>, vector<8x512xf32>
    %cst_34 = arith.constant dense<0.000000e+00> : vector<8x512xf32>
    %114 = tpu.matmul %107, %1, %cst_34 {dimension_numbers = #tpu.dot_dimension_numbers<[1], [0], [0], [1], [0, 0, 1, 1], [], []>} : vector<8x128xf32>, vector<128x512xf32>, vector<8x512xf32> -> vector<8x512xf32>
    %115 = arith.addf %113, %114 : vector<8x512xf32>
    %116 = vector.extract_strided_slice %115 {offsets = [0, 0], sizes = [8, 128], strides = [1, 1]} : vector<8x512xf32> to vector<8x128xf32>
    %117 = arith.negf %116 : vector<8x128xf32>
    %118 = math.exp %117 : vector<8x128xf32>
    %cst_35 = arith.constant 1.000000e+00 : f32
    %119 = vector.broadcast %cst_35 : f32 to vector<8x128xf32>
    %120 = arith.addf %119, %118 : vector<8x128xf32>
    %121 = arith.divf %119, %120 : vector<8x128xf32>
    %122 = vector.extract_strided_slice %115 {offsets = [0, 128], sizes = [8, 128], strides = [1, 1]} : vector<8x512xf32> to vector<8x128xf32>
    %123 = arith.negf %122 : vector<8x128xf32>
    %124 = math.exp %123 : vector<8x128xf32>
    %cst_36 = arith.constant 1.000000e+00 : f32
    %125 = vector.broadcast %cst_36 : f32 to vector<8x128xf32>
    %126 = arith.addf %125, %124 : vector<8x128xf32>
    %127 = arith.divf %125, %126 : vector<8x128xf32>
    %128 = vector.extract_strided_slice %115 {offsets = [0, 256], sizes = [8, 128], strides = [1, 1]} : vector<8x512xf32> to vector<8x128xf32>
    %129 = math.tanh %128 : vector<8x128xf32>
    %130 = vector.extract_strided_slice %115 {offsets = [0, 384], sizes = [8, 128], strides = [1, 1]} : vector<8x512xf32> to vector<8x128xf32>
    %131 = arith.negf %130 : vector<8x128xf32>
    %132 = math.exp %131 : vector<8x128xf32>
    %cst_37 = arith.constant 1.000000e+00 : f32
    %133 = vector.broadcast %cst_37 : f32 to vector<8x128xf32>
    %134 = arith.addf %133, %132 : vector<8x128xf32>
    %135 = arith.divf %133, %134 : vector<8x128xf32>
    %136 = arith.mulf %127, %105 : vector<8x128xf32>
    %137 = arith.mulf %121, %129 : vector<8x128xf32>
    %138 = arith.addf %136, %137 : vector<8x128xf32>
    %139 = math.tanh %138 : vector<8x128xf32>
    %140 = arith.mulf %135, %139 : vector<8x128xf32>
    %141 = arith.index_cast %111 : i32 to index
    %c0_38 = arith.constant 0 : index
    %142 = vector.load %arg13[%141, %c0_38] : memref<64x128xf32, #tpu.memory_space<vmem>>, vector<8x128xf32>
    tpu.vector_store %arg13[%141, %c0_38], %140 {strides = array<i32>} : memref<64x128xf32, #tpu.memory_space<vmem>>, vector<8x128xf32>,
    %c4_i32 = arith.constant 4 : i32
    %c8_i32_39 = arith.constant 8 : i32
    %143 = arith.muli %c4_i32, %c8_i32_39 : i32
    %144 = tpu.assume_multiple %143, 8 : i32
    %145 = arith.index_cast %144 : i32 to index
    %c0_40 = arith.constant 0 : index
    %146 = vector.load %arg12[%145, %c0_40] : memref<64x512xf32, #tpu.memory_space<vmem>>, vector<8x512xf32>
    %cst_41 = arith.constant dense<0.000000e+00> : vector<8x512xf32>
    %147 = tpu.matmul %140, %1, %cst_41 {dimension_numbers = #tpu.dot_dimension_numbers<[1], [0], [0], [1], [0, 0, 1, 1], [], []>} : vector<8x128xf32>, vector<128x512xf32>, vector<8x512xf32> -> vector<8x512xf32>
    %148 = arith.addf %146, %147 : vector<8x512xf32>
    %149 = vector.extract_strided_slice %148 {offsets = [0, 0], sizes = [8, 128], strides = [1, 1]} : vector<8x512xf32> to vector<8x128xf32>
    %150 = arith.negf %149 : vector<8x128xf32>
    %151 = math.exp %150 : vector<8x128xf32>
    %cst_42 = arith.constant 1.000000e+00 : f32
    %152 = vector.broadcast %cst_42 : f32 to vector<8x128xf32>
    %153 = arith.addf %152, %151 : vector<8x128xf32>
    %154 = arith.divf %152, %153 : vector<8x128xf32>
    %155 = vector.extract_strided_slice %148 {offsets = [0, 128], sizes = [8, 128], strides = [1, 1]} : vector<8x512xf32> to vector<8x128xf32>
    %156 = arith.negf %155 : vector<8x128xf32>
    %157 = math.exp %156 : vector<8x128xf32>
    %cst_43 = arith.constant 1.000000e+00 : f32
    %158 = vector.broadcast %cst_43 : f32 to vector<8x128xf32>
    %159 = arith.addf %158, %157 : vector<8x128xf32>
    %160 = arith.divf %158, %159 : vector<8x128xf32>
    %161 = vector.extract_strided_slice %148 {offsets = [0, 256], sizes = [8, 128], strides = [1, 1]} : vector<8x512xf32> to vector<8x128xf32>
    %162 = math.tanh %161 : vector<8x128xf32>
    %163 = vector.extract_strided_slice %148 {offsets = [0, 384], sizes = [8, 128], strides = [1, 1]} : vector<8x512xf32> to vector<8x128xf32>
    %164 = arith.negf %163 : vector<8x128xf32>
    %165 = math.exp %164 : vector<8x128xf32>
    %cst_44 = arith.constant 1.000000e+00 : f32
    %166 = vector.broadcast %cst_44 : f32 to vector<8x128xf32>
    %167 = arith.addf %166, %165 : vector<8x128xf32>
    %168 = arith.divf %166, %167 : vector<8x128xf32>
    %169 = arith.mulf %160, %138 : vector<8x128xf32>
    %170 = arith.mulf %154, %162 : vector<8x128xf32>
    %171 = arith.addf %169, %170 : vector<8x128xf32>
    %172 = math.tanh %171 : vector<8x128xf32>
    %173 = arith.mulf %168, %172 : vector<8x128xf32>
    %174 = arith.index_cast %144 : i32 to index
    %c0_45 = arith.constant 0 : index
    %175 = vector.load %arg13[%174, %c0_45] : memref<64x128xf32, #tpu.memory_space<vmem>>, vector<8x128xf32>
    tpu.vector_store %arg13[%174, %c0_45], %173 {strides = array<i32>} : memref<64x128xf32, #tpu.memory_space<vmem>>, vector<8x128xf32>,
    %c5_i32 = arith.constant 5 : i32
    %c8_i32_46 = arith.constant 8 : i32
    %176 = arith.muli %c5_i32, %c8_i32_46 : i32
    %177 = tpu.assume_multiple %176, 8 : i32
    %178 = arith.index_cast %177 : i32 to index
    %c0_47 = arith.constant 0 : index
    %179 = vector.load %arg12[%178, %c0_47] : memref<64x512xf32, #tpu.memory_space<vmem>>, vector<8x512xf32>
    %cst_48 = arith.constant dense<0.000000e+00> : vector<8x512xf32>
    %180 = tpu.matmul %173, %1, %cst_48 {dimension_numbers = #tpu.dot_dimension_numbers<[1], [0], [0], [1], [0, 0, 1, 1], [], []>} : vector<8x128xf32>, vector<128x512xf32>, vector<8x512xf32> -> vector<8x512xf32>
    %181 = arith.addf %179, %180 : vector<8x512xf32>
    %182 = vector.extract_strided_slice %181 {offsets = [0, 0], sizes = [8, 128], strides = [1, 1]} : vector<8x512xf32> to vector<8x128xf32>
    %183 = arith.negf %182 : vector<8x128xf32>
    %184 = math.exp %183 : vector<8x128xf32>
    %cst_49 = arith.constant 1.000000e+00 : f32
    %185 = vector.broadcast %cst_49 : f32 to vector<8x128xf32>
    %186 = arith.addf %185, %184 : vector<8x128xf32>
    %187 = arith.divf %185, %186 : vector<8x128xf32>
    %188 = vector.extract_strided_slice %181 {offsets = [0, 128], sizes = [8, 128], strides = [1, 1]} : vector<8x512xf32> to vector<8x128xf32>
    %189 = arith.negf %188 : vector<8x128xf32>
    %190 = math.exp %189 : vector<8x128xf32>
    %cst_50 = arith.constant 1.000000e+00 : f32
    %191 = vector.broadcast %cst_50 : f32 to vector<8x128xf32>
    %192 = arith.addf %191, %190 : vector<8x128xf32>
    %193 = arith.divf %191, %192 : vector<8x128xf32>
    %194 = vector.extract_strided_slice %181 {offsets = [0, 256], sizes = [8, 128], strides = [1, 1]} : vector<8x512xf32> to vector<8x128xf32>
    %195 = math.tanh %194 : vector<8x128xf32>
    %196 = vector.extract_strided_slice %181 {offsets = [0, 384], sizes = [8, 128], strides = [1, 1]} : vector<8x512xf32> to vector<8x128xf32>
    %197 = arith.negf %196 : vector<8x128xf32>
    %198 = math.exp %197 : vector<8x128xf32>
    %cst_51 = arith.constant 1.000000e+00 : f32
    %199 = vector.broadcast %cst_51 : f32 to vector<8x128xf32>
    %200 = arith.addf %199, %198 : vector<8x128xf32>
    %201 = arith.divf %199, %200 : vector<8x128xf32>
    %202 = arith.mulf %193, %171 : vector<8x128xf32>
    %203 = arith.mulf %187, %195 : vector<8x128xf32>
    %204 = arith.addf %202, %203 : vector<8x128xf32>
    %205 = math.tanh %204 : vector<8x128xf32>
    %206 = arith.mulf %201, %205 : vector<8x128xf32>
    %207 = arith.index_cast %177 : i32 to index
    %c0_52 = arith.constant 0 : index
    %208 = vector.load %arg13[%207, %c0_52] : memref<64x128xf32, #tpu.memory_space<vmem>>, vector<8x128xf32>
    tpu.vector_store %arg13[%207, %c0_52], %206 {strides = array<i32>} : memref<64x128xf32, #tpu.memory_space<vmem>>, vector<8x128xf32>,
    %c6_i32 = arith.constant 6 : i32
    %c8_i32_53 = arith.constant 8 : i32
    %209 = arith.muli %c6_i32, %c8_i32_53 : i32
    %210 = tpu.assume_multiple %209, 8 : i32
    %211 = arith.index_cast %210 : i32 to index
    %c0_54 = arith.constant 0 : index
    %212 = vector.load %arg12[%211, %c0_54] : memref<64x512xf32, #tpu.memory_space<vmem>>, vector<8x512xf32>
    %cst_55 = arith.constant dense<0.000000e+00> : vector<8x512xf32>
    %213 = tpu.matmul %206, %1, %cst_55 {dimension_numbers = #tpu.dot_dimension_numbers<[1], [0], [0], [1], [0, 0, 1, 1], [], []>} : vector<8x128xf32>, vector<128x512xf32>, vector<8x512xf32> -> vector<8x512xf32>
    %214 = arith.addf %212, %213 : vector<8x512xf32>
    %215 = vector.extract_strided_slice %214 {offsets = [0, 0], sizes = [8, 128], strides = [1, 1]} : vector<8x512xf32> to vector<8x128xf32>
    %216 = arith.negf %215 : vector<8x128xf32>
    %217 = math.exp %216 : vector<8x128xf32>
    %cst_56 = arith.constant 1.000000e+00 : f32
    %218 = vector.broadcast %cst_56 : f32 to vector<8x128xf32>
    %219 = arith.addf %218, %217 : vector<8x128xf32>
    %220 = arith.divf %218, %219 : vector<8x128xf32>
    %221 = vector.extract_strided_slice %214 {offsets = [0, 128], sizes = [8, 128], strides = [1, 1]} : vector<8x512xf32> to vector<8x128xf32>
    %222 = arith.negf %221 : vector<8x128xf32>
    %223 = math.exp %222 : vector<8x128xf32>
    %cst_57 = arith.constant 1.000000e+00 : f32
    %224 = vector.broadcast %cst_57 : f32 to vector<8x128xf32>
    %225 = arith.addf %224, %223 : vector<8x128xf32>
    %226 = arith.divf %224, %225 : vector<8x128xf32>
    %227 = vector.extract_strided_slice %214 {offsets = [0, 256], sizes = [8, 128], strides = [1, 1]} : vector<8x512xf32> to vector<8x128xf32>
    %228 = math.tanh %227 : vector<8x128xf32>
    %229 = vector.extract_strided_slice %214 {offsets = [0, 384], sizes = [8, 128], strides = [1, 1]} : vector<8x512xf32> to vector<8x128xf32>
    %230 = arith.negf %229 : vector<8x128xf32>
    %231 = math.exp %230 : vector<8x128xf32>
    %cst_58 = arith.constant 1.000000e+00 : f32
    %232 = vector.broadcast %cst_58 : f32 to vector<8x128xf32>
    %233 = arith.addf %232, %231 : vector<8x128xf32>
    %234 = arith.divf %232, %233 : vector<8x128xf32>
    %235 = arith.mulf %226, %204 : vector<8x128xf32>
    %236 = arith.mulf %220, %228 : vector<8x128xf32>
    %237 = arith.addf %235, %236 : vector<8x128xf32>
    %238 = math.tanh %237 : vector<8x128xf32>
    %239 = arith.mulf %234, %238 : vector<8x128xf32>
    %240 = arith.index_cast %210 : i32 to index
    %c0_59 = arith.constant 0 : index
    %241 = vector.load %arg13[%240, %c0_59] : memref<64x128xf32, #tpu.memory_space<vmem>>, vector<8x128xf32>
    tpu.vector_store %arg13[%240, %c0_59], %239 {strides = array<i32>} : memref<64x128xf32, #tpu.memory_space<vmem>>, vector<8x128xf32>,
    %c7_i32 = arith.constant 7 : i32
    %c8_i32_60 = arith.constant 8 : i32
    %242 = arith.muli %c7_i32, %c8_i32_60 : i32
    %243 = tpu.assume_multiple %242, 8 : i32
    %244 = arith.index_cast %243 : i32 to index
    %c0_61 = arith.constant 0 : index
    %245 = vector.load %arg12[%244, %c0_61] : memref<64x512xf32, #tpu.memory_space<vmem>>, vector<8x512xf32>
    %cst_62 = arith.constant dense<0.000000e+00> : vector<8x512xf32>
    %246 = tpu.matmul %239, %1, %cst_62 {dimension_numbers = #tpu.dot_dimension_numbers<[1], [0], [0], [1], [0, 0, 1, 1], [], []>} : vector<8x128xf32>, vector<128x512xf32>, vector<8x512xf32> -> vector<8x512xf32>
    %247 = arith.addf %245, %246 : vector<8x512xf32>
    %248 = vector.extract_strided_slice %247 {offsets = [0, 0], sizes = [8, 128], strides = [1, 1]} : vector<8x512xf32> to vector<8x128xf32>
    %249 = arith.negf %248 : vector<8x128xf32>
    %250 = math.exp %249 : vector<8x128xf32>
    %cst_63 = arith.constant 1.000000e+00 : f32
    %251 = vector.broadcast %cst_63 : f32 to vector<8x128xf32>
    %252 = arith.addf %251, %250 : vector<8x128xf32>
    %253 = arith.divf %251, %252 : vector<8x128xf32>
    %254 = vector.extract_strided_slice %247 {offsets = [0, 128], sizes = [8, 128], strides = [1, 1]} : vector<8x512xf32> to vector<8x128xf32>
    %255 = arith.negf %254 : vector<8x128xf32>
    %256 = math.exp %255 : vector<8x128xf32>
    %cst_64 = arith.constant 1.000000e+00 : f32
    %257 = vector.broadcast %cst_64 : f32 to vector<8x128xf32>
    %258 = arith.addf %257, %256 : vector<8x128xf32>
    %259 = arith.divf %257, %258 : vector<8x128xf32>
    %260 = vector.extract_strided_slice %247 {offsets = [0, 256], sizes = [8, 128], strides = [1, 1]} : vector<8x512xf32> to vector<8x128xf32>
    %261 = math.tanh %260 : vector<8x128xf32>
    %262 = vector.extract_strided_slice %247 {offsets = [0, 384], sizes = [8, 128], strides = [1, 1]} : vector<8x512xf32> to vector<8x128xf32>
    %263 = arith.negf %262 : vector<8x128xf32>
    %264 = math.exp %263 : vector<8x128xf32>
    %cst_65 = arith.constant 1.000000e+00 : f32
    %265 = vector.broadcast %cst_65 : f32 to vector<8x128xf32>
    %266 = arith.addf %265, %264 : vector<8x128xf32>
    %267 = arith.divf %265, %266 : vector<8x128xf32>
    %268 = arith.mulf %259, %237 : vector<8x128xf32>
    %269 = arith.mulf %253, %261 : vector<8x128xf32>
    %270 = arith.addf %268, %269 : vector<8x128xf32>
    %271 = math.tanh %270 : vector<8x128xf32>
    %272 = arith.mulf %267, %271 : vector<8x128xf32>
    %273 = arith.index_cast %243 : i32 to index
    %c0_66 = arith.constant 0 : index
    %274 = vector.load %arg13[%273, %c0_66] : memref<64x128xf32, #tpu.memory_space<vmem>>, vector<8x128xf32>
    tpu.vector_store %arg13[%273, %c0_66], %272 {strides = array<i32>} : memref<64x128xf32, #tpu.memory_space<vmem>>, vector<8x128xf32>,
    %c8_i32_67 = arith.constant 8 : i32
    %c0_68 = arith.constant 0 : index
    %c0_69 = arith.constant 0 : index
    %275 = vector.load %arg5[%c0_68, %c0_69] : memref<128x512xf32, #tpu.memory_space<vmem>>, vector<128x512xf32>
    %c0_70 = arith.constant 0 : index
    %c0_71 = arith.constant 0 : index
    %276 = vector.load %arg6[%c0_70, %c0_71] : memref<128x512xf32, #tpu.memory_space<vmem>>, vector<128x512xf32>
    %c0_72 = arith.constant 0 : index
    %c0_73 = arith.constant 0 : index
    %277 = vector.load %arg7[%c0_72, %c0_73] : memref<1x512xf32, #tpu.memory_space<vmem>>, vector<1x512xf32>
    %c0_74 = arith.constant 0 : index
    %c0_75 = arith.constant 0 : index
    %278 = vector.load %arg13[%c0_74, %c0_75] : memref<64x128xf32, #tpu.memory_space<vmem>>, vector<64x128xf32>
    %cst_76 = arith.constant dense<0.000000e+00> : vector<64x512xf32>
    %279 = tpu.matmul %278, %275, %cst_76 {dimension_numbers = #tpu.dot_dimension_numbers<[1], [0], [0], [1], [0, 0, 1, 1], [], []>} : vector<64x128xf32>, vector<128x512xf32>, vector<64x512xf32> -> vector<64x512xf32>
    %280 = vector.broadcast %277 : vector<1x512xf32> to vector<64x512xf32>
    %281 = arith.addf %279, %280 : vector<64x512xf32>
    %c0_77 = arith.constant 0 : index
    %c0_78 = arith.constant 0 : index
    %282 = vector.load %arg12[%c0_77, %c0_78] : memref<64x512xf32, #tpu.memory_space<vmem>>, vector<64x512xf32>
    tpu.vector_store %arg12[%c0_77, %c0_78], %281 {strides = array<i32>} : memref<64x512xf32, #tpu.memory_space<vmem>>, vector<64x512xf32>,
    %cst_79 = arith.constant 0.000000e+00 : f32
    %283 = vector.broadcast %cst_79 : f32 to vector<8x128xf32>
    %cst_80 = arith.constant 0.000000e+00 : f32
    %284 = vector.broadcast %cst_80 : f32 to vector<8x128xf32>
    %c0_81 = arith.constant 0 : index
    %c0_82 = arith.constant 0 : index
    %285 = vector.load %arg8[%c0_81, %c0_82] : memref<1x128xf32, #tpu.memory_space<vmem>>, vector<1x128xf32>
    %286 = vector.shape_cast %285 : vector<1x128xf32> to vector<1x128xf32>
    %287 = vector.broadcast %286 : vector<1x128xf32> to vector<8x128xf32>
    %cst_83 = arith.constant 0xFF800000 : f32
    %288 = vector.broadcast %cst_83 : f32 to vector<8x1xf32>
    %cst_84 = arith.constant 0.000000e+00 : f32
    %289 = vector.broadcast %cst_84 : f32 to vector<8x1xf32>
    %cst_85 = arith.constant 0.000000e+00 : f32
    %290 = vector.broadcast %cst_85 : f32 to vector<8x128xf32>
    %c0_i32_86 = arith.constant 0 : i32
    %c8_i32_87 = arith.constant 8 : i32
    %291 = arith.muli %c0_i32_86, %c8_i32_87 : i32
    %292 = tpu.assume_multiple %291, 8 : i32
    %293 = arith.index_cast %292 : i32 to index
    %c0_88 = arith.constant 0 : index
    %294 = vector.load %arg12[%293, %c0_88] : memref<64x512xf32, #tpu.memory_space<vmem>>, vector<8x512xf32>
    %cst_89 = arith.constant dense<0.000000e+00> : vector<8x512xf32>
    %295 = tpu.matmul %283, %276, %cst_89 {dimension_numbers = #tpu.dot_dimension_numbers<[1], [0], [0], [1], [0, 0, 1, 1], [], []>} : vector<8x128xf32>, vector<128x512xf32>, vector<8x512xf32> -> vector<8x512xf32>
    %296 = arith.addf %294, %295 : vector<8x512xf32>
    %297 = vector.extract_strided_slice %296 {offsets = [0, 0], sizes = [8, 128], strides = [1, 1]} : vector<8x512xf32> to vector<8x128xf32>
    %298 = arith.negf %297 : vector<8x128xf32>
    %299 = math.exp %298 : vector<8x128xf32>
    %cst_90 = arith.constant 1.000000e+00 : f32
    %300 = vector.broadcast %cst_90 : f32 to vector<8x128xf32>
    %301 = arith.addf %300, %299 : vector<8x128xf32>
    %302 = arith.divf %300, %301 : vector<8x128xf32>
    %303 = vector.extract_strided_slice %296 {offsets = [0, 128], sizes = [8, 128], strides = [1, 1]} : vector<8x512xf32> to vector<8x128xf32>
    %304 = arith.negf %303 : vector<8x128xf32>
    %305 = math.exp %304 : vector<8x128xf32>
    %cst_91 = arith.constant 1.000000e+00 : f32
    %306 = vector.broadcast %cst_91 : f32 to vector<8x128xf32>
    %307 = arith.addf %306, %305 : vector<8x128xf32>
    %308 = arith.divf %306, %307 : vector<8x128xf32>
    %309 = vector.extract_strided_slice %296 {offsets = [0, 256], sizes = [8, 128], strides = [1, 1]} : vector<8x512xf32> to vector<8x128xf32>
    %310 = math.tanh %309 : vector<8x128xf32>
    %311 = vector.extract_strided_slice %296 {offsets = [0, 384], sizes = [8, 128], strides = [1, 1]} : vector<8x512xf32> to vector<8x128xf32>
    %312 = arith.negf %311 : vector<8x128xf32>
    %313 = math.exp %312 : vector<8x128xf32>
    %cst_92 = arith.constant 1.000000e+00 : f32
    %314 = vector.broadcast %cst_92 : f32 to vector<8x128xf32>
    %315 = arith.addf %314, %313 : vector<8x128xf32>
    %316 = arith.divf %314, %315 : vector<8x128xf32>
    %317 = arith.mulf %308, %284 : vector<8x128xf32>
    %318 = arith.mulf %302, %310 : vector<8x128xf32>
    %319 = arith.addf %317, %318 : vector<8x128xf32>
    %320 = math.tanh %319 : vector<8x128xf32>
    %321 = arith.mulf %316, %320 : vector<8x128xf32>
    %322 = arith.mulf %321, %287 : vector<8x128xf32>
    %cst_93 = arith.constant dense<0.000000e+00> : vector<8xf32>
    %323 = vector.multi_reduction <add>, %322, %cst_93 [1] : vector<8x128xf32> to vector<8xf32>
    %324 = vector.shape_cast %323 : vector<8xf32> to vector<8x1xf32>
    %325 = arith.maximumf %288, %324 : vector<8x1xf32>
    %326 = arith.subf %288, %325 : vector<8x1xf32>
    %327 = math.exp %326 : vector<8x1xf32>
    %328 = arith.subf %324, %325 : vector<8x1xf32>
    %329 = math.exp %328 : vector<8x1xf32>
    %330 = arith.mulf %327, %289 : vector<8x1xf32>
    %331 = arith.addf %330, %329 : vector<8x1xf32>
    %332 = vector.broadcast %327 : vector<8x1xf32> to vector<8x128xf32>
    %333 = arith.mulf %332, %290 : vector<8x128xf32>
    %334 = vector.broadcast %329 : vector<8x1xf32> to vector<8x128xf32>
    %335 = arith.mulf %334, %321 : vector<8x128xf32>
    %336 = arith.addf %333, %335 : vector<8x128xf32>
    %c1_i32_94 = arith.constant 1 : i32
    %c8_i32_95 = arith.constant 8 : i32
    %337 = arith.muli %c1_i32_94, %c8_i32_95 : i32
    %338 = tpu.assume_multiple %337, 8 : i32
    %339 = arith.index_cast %338 : i32 to index
    %c0_96 = arith.constant 0 : index
    %340 = vector.load %arg12[%339, %c0_96] : memref<64x512xf32, #tpu.memory_space<vmem>>, vector<8x512xf32>
    %cst_97 = arith.constant dense<0.000000e+00> : vector<8x512xf32>
    %341 = tpu.matmul %321, %276, %cst_97 {dimension_numbers = #tpu.dot_dimension_numbers<[1], [0], [0], [1], [0, 0, 1, 1], [], []>} : vector<8x128xf32>, vector<128x512xf32>, vector<8x512xf32> -> vector<8x512xf32>
    %342 = arith.addf %340, %341 : vector<8x512xf32>
    %343 = vector.extract_strided_slice %342 {offsets = [0, 0], sizes = [8, 128], strides = [1, 1]} : vector<8x512xf32> to vector<8x128xf32>
    %344 = arith.negf %343 : vector<8x128xf32>
    %345 = math.exp %344 : vector<8x128xf32>
    %cst_98 = arith.constant 1.000000e+00 : f32
    %346 = vector.broadcast %cst_98 : f32 to vector<8x128xf32>
    %347 = arith.addf %346, %345 : vector<8x128xf32>
    %348 = arith.divf %346, %347 : vector<8x128xf32>
    %349 = vector.extract_strided_slice %342 {offsets = [0, 128], sizes = [8, 128], strides = [1, 1]} : vector<8x512xf32> to vector<8x128xf32>
    %350 = arith.negf %349 : vector<8x128xf32>
    %351 = math.exp %350 : vector<8x128xf32>
    %cst_99 = arith.constant 1.000000e+00 : f32
    %352 = vector.broadcast %cst_99 : f32 to vector<8x128xf32>
    %353 = arith.addf %352, %351 : vector<8x128xf32>
    %354 = arith.divf %352, %353 : vector<8x128xf32>
    %355 = vector.extract_strided_slice %342 {offsets = [0, 256], sizes = [8, 128], strides = [1, 1]} : vector<8x512xf32> to vector<8x128xf32>
    %356 = math.tanh %355 : vector<8x128xf32>
    %357 = vector.extract_strided_slice %342 {offsets = [0, 384], sizes = [8, 128], strides = [1, 1]} : vector<8x512xf32> to vector<8x128xf32>
    %358 = arith.negf %357 : vector<8x128xf32>
    %359 = math.exp %358 : vector<8x128xf32>
    %cst_100 = arith.constant 1.000000e+00 : f32
    %360 = vector.broadcast %cst_100 : f32 to vector<8x128xf32>
    %361 = arith.addf %360, %359 : vector<8x128xf32>
    %362 = arith.divf %360, %361 : vector<8x128xf32>
    %363 = arith.mulf %354, %319 : vector<8x128xf32>
    %364 = arith.mulf %348, %356 : vector<8x128xf32>
    %365 = arith.addf %363, %364 : vector<8x128xf32>
    %366 = math.tanh %365 : vector<8x128xf32>
    %367 = arith.mulf %362, %366 : vector<8x128xf32>
    %368 = arith.mulf %367, %287 : vector<8x128xf32>
    %cst_101 = arith.constant dense<0.000000e+00> : vector<8xf32>
    %369 = vector.multi_reduction <add>, %368, %cst_101 [1] : vector<8x128xf32> to vector<8xf32>
    %370 = vector.shape_cast %369 : vector<8xf32> to vector<8x1xf32>
    %371 = arith.maximumf %325, %370 : vector<8x1xf32>
    %372 = arith.subf %325, %371 : vector<8x1xf32>
    %373 = math.exp %372 : vector<8x1xf32>
    %374 = arith.subf %370, %371 : vector<8x1xf32>
    %375 = math.exp %374 : vector<8x1xf32>
    %376 = arith.mulf %373, %331 : vector<8x1xf32>
    %377 = arith.addf %376, %375 : vector<8x1xf32>
    %378 = vector.broadcast %373 : vector<8x1xf32> to vector<8x128xf32>
    %379 = arith.mulf %378, %336 : vector<8x128xf32>
    %380 = vector.broadcast %375 : vector<8x1xf32> to vector<8x128xf32>
    %381 = arith.mulf %380, %367 : vector<8x128xf32>
    %382 = arith.addf %379, %381 : vector<8x128xf32>
    %c2_i32_102 = arith.constant 2 : i32
    %c8_i32_103 = arith.constant 8 : i32
    %383 = arith.muli %c2_i32_102, %c8_i32_103 : i32
    %384 = tpu.assume_multiple %383, 8 : i32
    %385 = arith.index_cast %384 : i32 to index
    %c0_104 = arith.constant 0 : index
    %386 = vector.load %arg12[%385, %c0_104] : memref<64x512xf32, #tpu.memory_space<vmem>>, vector<8x512xf32>
    %cst_105 = arith.constant dense<0.000000e+00> : vector<8x512xf32>
    %387 = tpu.matmul %367, %276, %cst_105 {dimension_numbers = #tpu.dot_dimension_numbers<[1], [0], [0], [1], [0, 0, 1, 1], [], []>} : vector<8x128xf32>, vector<128x512xf32>, vector<8x512xf32> -> vector<8x512xf32>
    %388 = arith.addf %386, %387 : vector<8x512xf32>
    %389 = vector.extract_strided_slice %388 {offsets = [0, 0], sizes = [8, 128], strides = [1, 1]} : vector<8x512xf32> to vector<8x128xf32>
    %390 = arith.negf %389 : vector<8x128xf32>
    %391 = math.exp %390 : vector<8x128xf32>
    %cst_106 = arith.constant 1.000000e+00 : f32
    %392 = vector.broadcast %cst_106 : f32 to vector<8x128xf32>
    %393 = arith.addf %392, %391 : vector<8x128xf32>
    %394 = arith.divf %392, %393 : vector<8x128xf32>
    %395 = vector.extract_strided_slice %388 {offsets = [0, 128], sizes = [8, 128], strides = [1, 1]} : vector<8x512xf32> to vector<8x128xf32>
    %396 = arith.negf %395 : vector<8x128xf32>
    %397 = math.exp %396 : vector<8x128xf32>
    %cst_107 = arith.constant 1.000000e+00 : f32
    %398 = vector.broadcast %cst_107 : f32 to vector<8x128xf32>
    %399 = arith.addf %398, %397 : vector<8x128xf32>
    %400 = arith.divf %398, %399 : vector<8x128xf32>
    %401 = vector.extract_strided_slice %388 {offsets = [0, 256], sizes = [8, 128], strides = [1, 1]} : vector<8x512xf32> to vector<8x128xf32>
    %402 = math.tanh %401 : vector<8x128xf32>
    %403 = vector.extract_strided_slice %388 {offsets = [0, 384], sizes = [8, 128], strides = [1, 1]} : vector<8x512xf32> to vector<8x128xf32>
    %404 = arith.negf %403 : vector<8x128xf32>
    %405 = math.exp %404 : vector<8x128xf32>
    %cst_108 = arith.constant 1.000000e+00 : f32
    %406 = vector.broadcast %cst_108 : f32 to vector<8x128xf32>
    %407 = arith.addf %406, %405 : vector<8x128xf32>
    %408 = arith.divf %406, %407 : vector<8x128xf32>
    %409 = arith.mulf %400, %365 : vector<8x128xf32>
    %410 = arith.mulf %394, %402 : vector<8x128xf32>
    %411 = arith.addf %409, %410 : vector<8x128xf32>
    %412 = math.tanh %411 : vector<8x128xf32>
    %413 = arith.mulf %408, %412 : vector<8x128xf32>
    %414 = arith.mulf %413, %287 : vector<8x128xf32>
    %cst_109 = arith.constant dense<0.000000e+00> : vector<8xf32>
    %415 = vector.multi_reduction <add>, %414, %cst_109 [1] : vector<8x128xf32> to vector<8xf32>
    %416 = vector.shape_cast %415 : vector<8xf32> to vector<8x1xf32>
    %417 = arith.maximumf %371, %416 : vector<8x1xf32>
    %418 = arith.subf %371, %417 : vector<8x1xf32>
    %419 = math.exp %418 : vector<8x1xf32>
    %420 = arith.subf %416, %417 : vector<8x1xf32>
    %421 = math.exp %420 : vector<8x1xf32>
    %422 = arith.mulf %419, %377 : vector<8x1xf32>
    %423 = arith.addf %422, %421 : vector<8x1xf32>
    %424 = vector.broadcast %419 : vector<8x1xf32> to vector<8x128xf32>
    %425 = arith.mulf %424, %382 : vector<8x128xf32>
    %426 = vector.broadcast %421 : vector<8x1xf32> to vector<8x128xf32>
    %427 = arith.mulf %426, %413 : vector<8x128xf32>
    %428 = arith.addf %425, %427 : vector<8x128xf32>
    %c3_i32_110 = arith.constant 3 : i32
    %c8_i32_111 = arith.constant 8 : i32
    %429 = arith.muli %c3_i32_110, %c8_i32_111 : i32
    %430 = tpu.assume_multiple %429, 8 : i32
    %431 = arith.index_cast %430 : i32 to index
    %c0_112 = arith.constant 0 : index
    %432 = vector.load %arg12[%431, %c0_112] : memref<64x512xf32, #tpu.memory_space<vmem>>, vector<8x512xf32>
    %cst_113 = arith.constant dense<0.000000e+00> : vector<8x512xf32>
    %433 = tpu.matmul %413, %276, %cst_113 {dimension_numbers = #tpu.dot_dimension_numbers<[1], [0], [0], [1], [0, 0, 1, 1], [], []>} : vector<8x128xf32>, vector<128x512xf32>, vector<8x512xf32> -> vector<8x512xf32>
    %434 = arith.addf %432, %433 : vector<8x512xf32>
    %435 = vector.extract_strided_slice %434 {offsets = [0, 0], sizes = [8, 128], strides = [1, 1]} : vector<8x512xf32> to vector<8x128xf32>
    %436 = arith.negf %435 : vector<8x128xf32>
    %437 = math.exp %436 : vector<8x128xf32>
    %cst_114 = arith.constant 1.000000e+00 : f32
    %438 = vector.broadcast %cst_114 : f32 to vector<8x128xf32>
    %439 = arith.addf %438, %437 : vector<8x128xf32>
    %440 = arith.divf %438, %439 : vector<8x128xf32>
    %441 = vector.extract_strided_slice %434 {offsets = [0, 128], sizes = [8, 128], strides = [1, 1]} : vector<8x512xf32> to vector<8x128xf32>
    %442 = arith.negf %441 : vector<8x128xf32>
    %443 = math.exp %442 : vector<8x128xf32>
    %cst_115 = arith.constant 1.000000e+00 : f32
    %444 = vector.broadcast %cst_115 : f32 to vector<8x128xf32>
    %445 = arith.addf %444, %443 : vector<8x128xf32>
    %446 = arith.divf %444, %445 : vector<8x128xf32>
    %447 = vector.extract_strided_slice %434 {offsets = [0, 256], sizes = [8, 128], strides = [1, 1]} : vector<8x512xf32> to vector<8x128xf32>
    %448 = math.tanh %447 : vector<8x128xf32>
    %449 = vector.extract_strided_slice %434 {offsets = [0, 384], sizes = [8, 128], strides = [1, 1]} : vector<8x512xf32> to vector<8x128xf32>
    %450 = arith.negf %449 : vector<8x128xf32>
    %451 = math.exp %450 : vector<8x128xf32>
    %cst_116 = arith.constant 1.000000e+00 : f32
    %452 = vector.broadcast %cst_116 : f32 to vector<8x128xf32>
    %453 = arith.addf %452, %451 : vector<8x128xf32>
    %454 = arith.divf %452, %453 : vector<8x128xf32>
    %455 = arith.mulf %446, %411 : vector<8x128xf32>
    %456 = arith.mulf %440, %448 : vector<8x128xf32>
    %457 = arith.addf %455, %456 : vector<8x128xf32>
    %458 = math.tanh %457 : vector<8x128xf32>
    %459 = arith.mulf %454, %458 : vector<8x128xf32>
    %460 = arith.mulf %459, %287 : vector<8x128xf32>
    %cst_117 = arith.constant dense<0.000000e+00> : vector<8xf32>
    %461 = vector.multi_reduction <add>, %460, %cst_117 [1] : vector<8x128xf32> to vector<8xf32>
    %462 = vector.shape_cast %461 : vector<8xf32> to vector<8x1xf32>
    %463 = arith.maximumf %417, %462 : vector<8x1xf32>
    %464 = arith.subf %417, %463 : vector<8x1xf32>
    %465 = math.exp %464 : vector<8x1xf32>
    %466 = arith.subf %462, %463 : vector<8x1xf32>
    %467 = math.exp %466 : vector<8x1xf32>
    %468 = arith.mulf %465, %423 : vector<8x1xf32>
    %469 = arith.addf %468, %467 : vector<8x1xf32>
    %470 = vector.broadcast %465 : vector<8x1xf32> to vector<8x128xf32>
    %471 = arith.mulf %470, %428 : vector<8x128xf32>
    %472 = vector.broadcast %467 : vector<8x1xf32> to vector<8x128xf32>
    %473 = arith.mulf %472, %459 : vector<8x128xf32>
    %474 = arith.addf %471, %473 : vector<8x128xf32>
    %c4_i32_118 = arith.constant 4 : i32
    %c8_i32_119 = arith.constant 8 : i32
    %475 = arith.muli %c4_i32_118, %c8_i32_119 : i32
    %476 = tpu.assume_multiple %475, 8 : i32
    %477 = arith.index_cast %476 : i32 to index
    %c0_120 = arith.constant 0 : index
    %478 = vector.load %arg12[%477, %c0_120] : memref<64x512xf32, #tpu.memory_space<vmem>>, vector<8x512xf32>
    %cst_121 = arith.constant dense<0.000000e+00> : vector<8x512xf32>
    %479 = tpu.matmul %459, %276, %cst_121 {dimension_numbers = #tpu.dot_dimension_numbers<[1], [0], [0], [1], [0, 0, 1, 1], [], []>} : vector<8x128xf32>, vector<128x512xf32>, vector<8x512xf32> -> vector<8x512xf32>
    %480 = arith.addf %478, %479 : vector<8x512xf32>
    %481 = vector.extract_strided_slice %480 {offsets = [0, 0], sizes = [8, 128], strides = [1, 1]} : vector<8x512xf32> to vector<8x128xf32>
    %482 = arith.negf %481 : vector<8x128xf32>
    %483 = math.exp %482 : vector<8x128xf32>
    %cst_122 = arith.constant 1.000000e+00 : f32
    %484 = vector.broadcast %cst_122 : f32 to vector<8x128xf32>
    %485 = arith.addf %484, %483 : vector<8x128xf32>
    %486 = arith.divf %484, %485 : vector<8x128xf32>
    %487 = vector.extract_strided_slice %480 {offsets = [0, 128], sizes = [8, 128], strides = [1, 1]} : vector<8x512xf32> to vector<8x128xf32>
    %488 = arith.negf %487 : vector<8x128xf32>
    %489 = math.exp %488 : vector<8x128xf32>
    %cst_123 = arith.constant 1.000000e+00 : f32
    %490 = vector.broadcast %cst_123 : f32 to vector<8x128xf32>
    %491 = arith.addf %490, %489 : vector<8x128xf32>
    %492 = arith.divf %490, %491 : vector<8x128xf32>
    %493 = vector.extract_strided_slice %480 {offsets = [0, 256], sizes = [8, 128], strides = [1, 1]} : vector<8x512xf32> to vector<8x128xf32>
    %494 = math.tanh %493 : vector<8x128xf32>
    %495 = vector.extract_strided_slice %480 {offsets = [0, 384], sizes = [8, 128], strides = [1, 1]} : vector<8x512xf32> to vector<8x128xf32>
    %496 = arith.negf %495 : vector<8x128xf32>
    %497 = math.exp %496 : vector<8x128xf32>
    %cst_124 = arith.constant 1.000000e+00 : f32
    %498 = vector.broadcast %cst_124 : f32 to vector<8x128xf32>
    %499 = arith.addf %498, %497 : vector<8x128xf32>
    %500 = arith.divf %498, %499 : vector<8x128xf32>
    %501 = arith.mulf %492, %457 : vector<8x128xf32>
    %502 = arith.mulf %486, %494 : vector<8x128xf32>
    %503 = arith.addf %501, %502 : vector<8x128xf32>
    %504 = math.tanh %503 : vector<8x128xf32>
    %505 = arith.mulf %500, %504 : vector<8x128xf32>
    %506 = arith.mulf %505, %287 : vector<8x128xf32>
    %cst_125 = arith.constant dense<0.000000e+00> : vector<8xf32>
    %507 = vector.multi_reduction <add>, %506, %cst_125 [1] : vector<8x128xf32> to vector<8xf32>
    %508 = vector.shape_cast %507 : vector<8xf32> to vector<8x1xf32>
    %509 = arith.maximumf %463, %508 : vector<8x1xf32>
    %510 = arith.subf %463, %509 : vector<8x1xf32>
    %511 = math.exp %510 : vector<8x1xf32>
    %512 = arith.subf %508, %509 : vector<8x1xf32>
    %513 = math.exp %512 : vector<8x1xf32>
    %514 = arith.mulf %511, %469 : vector<8x1xf32>
    %515 = arith.addf %514, %513 : vector<8x1xf32>
    %516 = vector.broadcast %511 : vector<8x1xf32> to vector<8x128xf32>
    %517 = arith.mulf %516, %474 : vector<8x128xf32>
    %518 = vector.broadcast %513 : vector<8x1xf32> to vector<8x128xf32>
    %519 = arith.mulf %518, %505 : vector<8x128xf32>
    %520 = arith.addf %517, %519 : vector<8x128xf32>
    %c5_i32_126 = arith.constant 5 : i32
    %c8_i32_127 = arith.constant 8 : i32
    %521 = arith.muli %c5_i32_126, %c8_i32_127 : i32
    %522 = tpu.assume_multiple %521, 8 : i32
    %523 = arith.index_cast %522 : i32 to index
    %c0_128 = arith.constant 0 : index
    %524 = vector.load %arg12[%523, %c0_128] : memref<64x512xf32, #tpu.memory_space<vmem>>, vector<8x512xf32>
    %cst_129 = arith.constant dense<0.000000e+00> : vector<8x512xf32>
    %525 = tpu.matmul %505, %276, %cst_129 {dimension_numbers = #tpu.dot_dimension_numbers<[1], [0], [0], [1], [0, 0, 1, 1], [], []>} : vector<8x128xf32>, vector<128x512xf32>, vector<8x512xf32> -> vector<8x512xf32>
    %526 = arith.addf %524, %525 : vector<8x512xf32>
    %527 = vector.extract_strided_slice %526 {offsets = [0, 0], sizes = [8, 128], strides = [1, 1]} : vector<8x512xf32> to vector<8x128xf32>
    %528 = arith.negf %527 : vector<8x128xf32>
    %529 = math.exp %528 : vector<8x128xf32>
    %cst_130 = arith.constant 1.000000e+00 : f32
    %530 = vector.broadcast %cst_130 : f32 to vector<8x128xf32>
    %531 = arith.addf %530, %529 : vector<8x128xf32>
    %532 = arith.divf %530, %531 : vector<8x128xf32>
    %533 = vector.extract_strided_slice %526 {offsets = [0, 128], sizes = [8, 128], strides = [1, 1]} : vector<8x512xf32> to vector<8x128xf32>
    %534 = arith.negf %533 : vector<8x128xf32>
    %535 = math.exp %534 : vector<8x128xf32>
    %cst_131 = arith.constant 1.000000e+00 : f32
    %536 = vector.broadcast %cst_131 : f32 to vector<8x128xf32>
    %537 = arith.addf %536, %535 : vector<8x128xf32>
    %538 = arith.divf %536, %537 : vector<8x128xf32>
    %539 = vector.extract_strided_slice %526 {offsets = [0, 256], sizes = [8, 128], strides = [1, 1]} : vector<8x512xf32> to vector<8x128xf32>
    %540 = math.tanh %539 : vector<8x128xf32>
    %541 = vector.extract_strided_slice %526 {offsets = [0, 384], sizes = [8, 128], strides = [1, 1]} : vector<8x512xf32> to vector<8x128xf32>
    %542 = arith.negf %541 : vector<8x128xf32>
    %543 = math.exp %542 : vector<8x128xf32>
    %cst_132 = arith.constant 1.000000e+00 : f32
    %544 = vector.broadcast %cst_132 : f32 to vector<8x128xf32>
    %545 = arith.addf %544, %543 : vector<8x128xf32>
    %546 = arith.divf %544, %545 : vector<8x128xf32>
    %547 = arith.mulf %538, %503 : vector<8x128xf32>
    %548 = arith.mulf %532, %540 : vector<8x128xf32>
    %549 = arith.addf %547, %548 : vector<8x128xf32>
    %550 = math.tanh %549 : vector<8x128xf32>
    %551 = arith.mulf %546, %550 : vector<8x128xf32>
    %552 = arith.mulf %551, %287 : vector<8x128xf32>
    %cst_133 = arith.constant dense<0.000000e+00> : vector<8xf32>
    %553 = vector.multi_reduction <add>, %552, %cst_133 [1] : vector<8x128xf32> to vector<8xf32>
    %554 = vector.shape_cast %553 : vector<8xf32> to vector<8x1xf32>
    %555 = arith.maximumf %509, %554 : vector<8x1xf32>
    %556 = arith.subf %509, %555 : vector<8x1xf32>
    %557 = math.exp %556 : vector<8x1xf32>
    %558 = arith.subf %554, %555 : vector<8x1xf32>
    %559 = math.exp %558 : vector<8x1xf32>
    %560 = arith.mulf %557, %515 : vector<8x1xf32>
    %561 = arith.addf %560, %559 : vector<8x1xf32>
    %562 = vector.broadcast %557 : vector<8x1xf32> to vector<8x128xf32>
    %563 = arith.mulf %562, %520 : vector<8x128xf32>
    %564 = vector.broadcast %559 : vector<8x1xf32> to vector<8x128xf32>
    %565 = arith.mulf %564, %551 : vector<8x128xf32>
    %566 = arith.addf %563, %565 : vector<8x128xf32>
    %c6_i32_134 = arith.constant 6 : i32
    %c8_i32_135 = arith.constant 8 : i32
    %567 = arith.muli %c6_i32_134, %c8_i32_135 : i32
    %568 = tpu.assume_multiple %567, 8 : i32
    %569 = arith.index_cast %568 : i32 to index
    %c0_136 = arith.constant 0 : index
    %570 = vector.load %arg12[%569, %c0_136] : memref<64x512xf32, #tpu.memory_space<vmem>>, vector<8x512xf32>
    %cst_137 = arith.constant dense<0.000000e+00> : vector<8x512xf32>
    %571 = tpu.matmul %551, %276, %cst_137 {dimension_numbers = #tpu.dot_dimension_numbers<[1], [0], [0], [1], [0, 0, 1, 1], [], []>} : vector<8x128xf32>, vector<128x512xf32>, vector<8x512xf32> -> vector<8x512xf32>
    %572 = arith.addf %570, %571 : vector<8x512xf32>
    %573 = vector.extract_strided_slice %572 {offsets = [0, 0], sizes = [8, 128], strides = [1, 1]} : vector<8x512xf32> to vector<8x128xf32>
    %574 = arith.negf %573 : vector<8x128xf32>
    %575 = math.exp %574 : vector<8x128xf32>
    %cst_138 = arith.constant 1.000000e+00 : f32
    %576 = vector.broadcast %cst_138 : f32 to vector<8x128xf32>
    %577 = arith.addf %576, %575 : vector<8x128xf32>
    %578 = arith.divf %576, %577 : vector<8x128xf32>
    %579 = vector.extract_strided_slice %572 {offsets = [0, 128], sizes = [8, 128], strides = [1, 1]} : vector<8x512xf32> to vector<8x128xf32>
    %580 = arith.negf %579 : vector<8x128xf32>
    %581 = math.exp %580 : vector<8x128xf32>
    %cst_139 = arith.constant 1.000000e+00 : f32
    %582 = vector.broadcast %cst_139 : f32 to vector<8x128xf32>
    %583 = arith.addf %582, %581 : vector<8x128xf32>
    %584 = arith.divf %582, %583 : vector<8x128xf32>
    %585 = vector.extract_strided_slice %572 {offsets = [0, 256], sizes = [8, 128], strides = [1, 1]} : vector<8x512xf32> to vector<8x128xf32>
    %586 = math.tanh %585 : vector<8x128xf32>
    %587 = vector.extract_strided_slice %572 {offsets = [0, 384], sizes = [8, 128], strides = [1, 1]} : vector<8x512xf32> to vector<8x128xf32>
    %588 = arith.negf %587 : vector<8x128xf32>
    %589 = math.exp %588 : vector<8x128xf32>
    %cst_140 = arith.constant 1.000000e+00 : f32
    %590 = vector.broadcast %cst_140 : f32 to vector<8x128xf32>
    %591 = arith.addf %590, %589 : vector<8x128xf32>
    %592 = arith.divf %590, %591 : vector<8x128xf32>
    %593 = arith.mulf %584, %549 : vector<8x128xf32>
    %594 = arith.mulf %578, %586 : vector<8x128xf32>
    %595 = arith.addf %593, %594 : vector<8x128xf32>
    %596 = math.tanh %595 : vector<8x128xf32>
    %597 = arith.mulf %592, %596 : vector<8x128xf32>
    %598 = arith.mulf %597, %287 : vector<8x128xf32>
    %cst_141 = arith.constant dense<0.000000e+00> : vector<8xf32>
    %599 = vector.multi_reduction <add>, %598, %cst_141 [1] : vector<8x128xf32> to vector<8xf32>
    %600 = vector.shape_cast %599 : vector<8xf32> to vector<8x1xf32>
    %601 = arith.maximumf %555, %600 : vector<8x1xf32>
    %602 = arith.subf %555, %601 : vector<8x1xf32>
    %603 = math.exp %602 : vector<8x1xf32>
    %604 = arith.subf %600, %601 : vector<8x1xf32>
    %605 = math.exp %604 : vector<8x1xf32>
    %606 = arith.mulf %603, %561 : vector<8x1xf32>
    %607 = arith.addf %606, %605 : vector<8x1xf32>
    %608 = vector.broadcast %603 : vector<8x1xf32> to vector<8x128xf32>
    %609 = arith.mulf %608, %566 : vector<8x128xf32>
    %610 = vector.broadcast %605 : vector<8x1xf32> to vector<8x128xf32>
    %611 = arith.mulf %610, %597 : vector<8x128xf32>
    %612 = arith.addf %609, %611 : vector<8x128xf32>
    %c7_i32_142 = arith.constant 7 : i32
    %c8_i32_143 = arith.constant 8 : i32
    %613 = arith.muli %c7_i32_142, %c8_i32_143 : i32
    %614 = tpu.assume_multiple %613, 8 : i32
    %615 = arith.index_cast %614 : i32 to index
    %c0_144 = arith.constant 0 : index
    %616 = vector.load %arg12[%615, %c0_144] : memref<64x512xf32, #tpu.memory_space<vmem>>, vector<8x512xf32>
    %cst_145 = arith.constant dense<0.000000e+00> : vector<8x512xf32>
    %617 = tpu.matmul %597, %276, %cst_145 {dimension_numbers = #tpu.dot_dimension_numbers<[1], [0], [0], [1], [0, 0, 1, 1], [], []>} : vector<8x128xf32>, vector<128x512xf32>, vector<8x512xf32> -> vector<8x512xf32>
    %618 = arith.addf %616, %617 : vector<8x512xf32>
    %619 = vector.extract_strided_slice %618 {offsets = [0, 0], sizes = [8, 128], strides = [1, 1]} : vector<8x512xf32> to vector<8x128xf32>
    %620 = arith.negf %619 : vector<8x128xf32>
    %621 = math.exp %620 : vector<8x128xf32>
    %cst_146 = arith.constant 1.000000e+00 : f32
    %622 = vector.broadcast %cst_146 : f32 to vector<8x128xf32>
    %623 = arith.addf %622, %621 : vector<8x128xf32>
    %624 = arith.divf %622, %623 : vector<8x128xf32>
    %625 = vector.extract_strided_slice %618 {offsets = [0, 128], sizes = [8, 128], strides = [1, 1]} : vector<8x512xf32> to vector<8x128xf32>
    %626 = arith.negf %625 : vector<8x128xf32>
    %627 = math.exp %626 : vector<8x128xf32>
    %cst_147 = arith.constant 1.000000e+00 : f32
    %628 = vector.broadcast %cst_147 : f32 to vector<8x128xf32>
    %629 = arith.addf %628, %627 : vector<8x128xf32>
    %630 = arith.divf %628, %629 : vector<8x128xf32>
    %631 = vector.extract_strided_slice %618 {offsets = [0, 256], sizes = [8, 128], strides = [1, 1]} : vector<8x512xf32> to vector<8x128xf32>
    %632 = math.tanh %631 : vector<8x128xf32>
    %633 = vector.extract_strided_slice %618 {offsets = [0, 384], sizes = [8, 128], strides = [1, 1]} : vector<8x512xf32> to vector<8x128xf32>
    %634 = arith.negf %633 : vector<8x128xf32>
    %635 = math.exp %634 : vector<8x128xf32>
    %cst_148 = arith.constant 1.000000e+00 : f32
    %636 = vector.broadcast %cst_148 : f32 to vector<8x128xf32>
    %637 = arith.addf %636, %635 : vector<8x128xf32>
    %638 = arith.divf %636, %637 : vector<8x128xf32>
    %639 = arith.mulf %630, %595 : vector<8x128xf32>
    %640 = arith.mulf %624, %632 : vector<8x128xf32>
    %641 = arith.addf %639, %640 : vector<8x128xf32>
    %642 = math.tanh %641 : vector<8x128xf32>
    %643 = arith.mulf %638, %642 : vector<8x128xf32>
    %644 = arith.mulf %643, %287 : vector<8x128xf32>
    %cst_149 = arith.constant dense<0.000000e+00> : vector<8xf32>
    %645 = vector.multi_reduction <add>, %644, %cst_149 [1] : vector<8x128xf32> to vector<8xf32>
    %646 = vector.shape_cast %645 : vector<8xf32> to vector<8x1xf32>
    %647 = arith.maximumf %601, %646 : vector<8x1xf32>
    %648 = arith.subf %601, %647 : vector<8x1xf32>
    %649 = math.exp %648 : vector<8x1xf32>
    %650 = arith.subf %646, %647 : vector<8x1xf32>
    %651 = math.exp %650 : vector<8x1xf32>
    %652 = arith.mulf %649, %607 : vector<8x1xf32>
    %653 = arith.addf %652, %651 : vector<8x1xf32>
    %654 = vector.broadcast %649 : vector<8x1xf32> to vector<8x128xf32>
    %655 = arith.mulf %654, %612 : vector<8x128xf32>
    %656 = vector.broadcast %651 : vector<8x1xf32> to vector<8x128xf32>
    %657 = arith.mulf %656, %643 : vector<8x128xf32>
    %658 = arith.addf %655, %657 : vector<8x128xf32>
    %c8_i32_150 = arith.constant 8 : i32
    %659 = vector.broadcast %653 : vector<8x1xf32> to vector<8x128xf32>
    %660 = arith.divf %658, %659 : vector<8x128xf32>
    %c0_151 = arith.constant 0 : index
    %c0_152 = arith.constant 0 : index
    %661 = vector.load %arg9[%c0_151, %c0_152] : memref<128x128xf32, #tpu.memory_space<vmem>>, vector<128x128xf32>
    %cst_153 = arith.constant dense<0.000000e+00> : vector<8x128xf32>
    %662 = tpu.matmul %660, %661, %cst_153 {dimension_numbers = #tpu.dot_dimension_numbers<[1], [0], [0], [1], [0, 0, 1, 1], [], []>} : vector<8x128xf32>, vector<128x128xf32>, vector<8x128xf32> -> vector<8x128xf32>
    %c0_154 = arith.constant 0 : index
    %c0_155 = arith.constant 0 : index
    %663 = vector.load %arg10[%c0_154, %c0_155] : memref<1x128xf32, #tpu.memory_space<vmem>>, vector<1x128xf32>
    %664 = vector.broadcast %663 : vector<1x128xf32> to vector<8x128xf32>
    %665 = arith.addf %662, %664 : vector<8x128xf32>
    %c0_156 = arith.constant 0 : index
    %c0_157 = arith.constant 0 : index
    %666 = vector.load %arg11[%c0_156, %c0_157] : memref<8x128xf32, #tpu.memory_space<vmem>>, vector<8x128xf32>
    tpu.vector_store %arg11[%c0_156, %c0_157], %665 {strides = array<i32>} : memref<8x128xf32, #tpu.memory_space<vmem>>, vector<8x128xf32>,
    return
  }
  func.func @transform_0(%arg0: i32) -> (i32, i32, i32) {
    %c0_i32 = arith.constant 0 : i32
    %c0_i32_0 = arith.constant 0 : i32
    %c0_i32_1 = arith.constant 0 : i32
    return %c0_i32, %arg0, %c0_i32_0 : i32, i32, i32
  }
  func.func @transform_1(%arg0: i32) -> (i32, i32) {
    %c0_i32 = arith.constant 0 : i32
    %c0_i32_0 = arith.constant 0 : i32
    %c0_i32_1 = arith.constant 0 : i32
    return %c0_i32, %c0_i32_0 : i32, i32
  }
  func.func @transform_2(%arg0: i32) -> (i32, i32) {
    %c0_i32 = arith.constant 0 : i32
    %c0_i32_0 = arith.constant 0 : i32
    %c0_i32_1 = arith.constant 0 : i32
    return %c0_i32, %c0_i32_0 : i32, i32
  }
  func.func @transform_3(%arg0: i32) -> (i32, i32) {
    %c0_i32 = arith.constant 0 : i32
    %c0_i32_0 = arith.constant 0 : i32
    %c0_i32_1 = arith.constant 0 : i32
    return %c0_i32, %c0_i32_0 : i32, i32
  }
  func.func @transform_4(%arg0: i32) -> (i32, i32) {
    %c0_i32 = arith.constant 0 : i32
    %c0_i32_0 = arith.constant 0 : i32
    %c0_i32_1 = arith.constant 0 : i32
    return %c0_i32, %c0_i32_0 : i32, i32
  }
  func.func @transform_5(%arg0: i32) -> (i32, i32) {
    %c0_i32 = arith.constant 0 : i32
    %c0_i32_0 = arith.constant 0 : i32
    %c0_i32_1 = arith.constant 0 : i32
    return %c0_i32, %c0_i32_0 : i32, i32
  }
  func.func @transform_6(%arg0: i32) -> (i32, i32) {
    %c0_i32 = arith.constant 0 : i32
    %c0_i32_0 = arith.constant 0 : i32
    %c0_i32_1 = arith.constant 0 : i32
    return %c0_i32, %c0_i32_0 : i32, i32
  }
  func.func @transform_7(%arg0: i32) -> (i32, i32) {
    %c0_i32 = arith.constant 0 : i32
    %c0_i32_0 = arith.constant 0 : i32
    %c0_i32_1 = arith.constant 0 : i32
    return %c0_i32, %c0_i32_0 : i32, i32
  }
  func.func @transform_8(%arg0: i32) -> (i32, i32) {
    %c0_i32 = arith.constant 0 : i32
    %c0_i32_0 = arith.constant 0 : i32
    %c0_i32_1 = arith.constant 0 : i32
    return %c0_i32, %c0_i32_0 : i32, i32
  }
  func.func @transform_9(%arg0: i32) -> (i32, i32) {
    %c0_i32 = arith.constant 0 : i32
    %c0_i32_0 = arith.constant 0 : i32
    %c0_i32_1 = arith.constant 0 : i32
    return %c0_i32, %c0_i32_0 : i32, i32
  }
  func.func @transform_10(%arg0: i32) -> (i32, i32) {
    %c0_i32 = arith.constant 0 : i32
    %c0_i32_0 = arith.constant 0 : i32
    return %arg0, %c0_i32 : i32, i32
  }
}

</mosaic_0001>

<llo_original>
// kernel: lstmx1_attention_forward.1
$region0: #{lstmx1_attention_forward.1}
  #allocation0 [shape = 'u32[]', space=smem, size = 0x4, offset = 0x4, fixed_abs, tag = 'smem constant byte address 0x4 - core index']
  #allocation1 [shape = 'u32[144,128]{1,0:T(1,128)}', space=vmem, size = 0x12000, scoped, tag = 'internal scratch']
  #allocation2 [shape = 'f32[64,512]{1,0:T(8,128)}', space=vmem, size = 0x20000, scoped, tag = 'scratch operand']
  #allocation3 [shape = 'f32[64,128]{1,0:T(8,128)}', space=vmem, size = 0x8000, scoped, tag = 'scratch operand']
  %s0 = inlined_call_operand.vmem [shape: f32[8,8,4], index: 0, kind: input, shape index: {}]
  %s1 = inlined_call_operand.vmem [shape: f32[4,512], index: 1, kind: input, shape index: {}]
  %s2 = inlined_call_operand.vmem [shape: f32[128,512], index: 2, kind: input, shape index: {}]
  %s3 = inlined_call_operand.vmem [shape: f32[1,512], index: 3, kind: input, shape index: {}]
  %s4 = inlined_call_operand.vmem [shape: f32[128,512], index: 4, kind: input, shape index: {}]
  %s5 = inlined_call_operand.vmem [shape: f32[128,512], index: 5, kind: input, shape index: {}]
  %s6 = inlined_call_operand.vmem [shape: f32[1,512], index: 6, kind: input, shape index: {}]
  %s7 = inlined_call_operand.vmem [shape: f32[1,128], index: 7, kind: input, shape index: {}]
  %s8 = inlined_call_operand.vmem [shape: f32[128,128], index: 8, kind: input, shape index: {}]
  %s9 = inlined_call_operand.vmem [shape: f32[1,128], index: 9, kind: input, shape index: {}]
  %s10 = inlined_call_operand.vmem [shape: f32[8,128], index: 10, kind: output, shape index: {}]
  %s11 = sld [smem:[#allocation0]]
  $region50: #{lstmx1_attention_forward.1} parent=0
    _
  %s13 = ssub.s32 1, %s11
  %s14 = scalar_select 0, %s13, %s11
  // Predicated region
  $region2: #{lstmx1_attention_forward.1} parent=0 // pred_check
    _
  $region3: #{lstmx1_attention_forward.1} parent=0 // pred_check_branch
    %16 = sbr.rel (0) target = $region5
  $region4: #{lstmx1_attention_forward.1} parent=0 // pred_region
    _
  $region5: #{lstmx1_attention_forward.1} parent=0 // pred_fallthru
    _
  // Predicated region
  $region6: #{lstmx1_attention_forward.1} parent=0 // pred_check
    _
  $region7: #{lstmx1_attention_forward.1} parent=0 // pred_check_branch
    %18 = sbr.rel (0) target = $region9
  $region8: #{lstmx1_attention_forward.1} parent=0 // pred_region
    _
  $region9: #{lstmx1_attention_forward.1} parent=0 // pred_fallthru
    _
  // Predicated region
  $region10: #{lstmx1_attention_forward.1} parent=0 // pred_check
    _
  $region11: #{lstmx1_attention_forward.1} parent=0 // pred_check_branch
    %20 = sbr.rel (0) target = $region13
  $region12: #{lstmx1_attention_forward.1} parent=0 // pred_region
    _
  $region13: #{lstmx1_attention_forward.1} parent=0 // pred_fallthru
    _
  // Predicated region
  $region14: #{lstmx1_attention_forward.1} parent=0 // pred_check
    _
  $region15: #{lstmx1_attention_forward.1} parent=0 // pred_check_branch
    %22 = sbr.rel (0) target = $region17
  $region16: #{lstmx1_attention_forward.1} parent=0 // pred_region
    _
  $region17: #{lstmx1_attention_forward.1} parent=0 // pred_fallthru
    _
  // Predicated region
  $region18: #{lstmx1_attention_forward.1} parent=0 // pred_check
    _
  $region19: #{lstmx1_attention_forward.1} parent=0 // pred_check_branch
    %24 = sbr.rel (0) target = $region21
  $region20: #{lstmx1_attention_forward.1} parent=0 // pred_region
    _
  $region21: #{lstmx1_attention_forward.1} parent=0 // pred_fallthru
    _
  // Predicated region
  $region22: #{lstmx1_attention_forward.1} parent=0 // pred_check
    _
  $region23: #{lstmx1_attention_forward.1} parent=0 // pred_check_branch
    %26 = sbr.rel (0) target = $region25
  $region24: #{lstmx1_attention_forward.1} parent=0 // pred_region
    _
  $region25: #{lstmx1_attention_forward.1} parent=0 // pred_fallthru
    _
  // Predicated region
  $region26: #{lstmx1_attention_forward.1} parent=0 // pred_check
    _
  $region27: #{lstmx1_attention_forward.1} parent=0 // pred_check_branch
    %28 = sbr.rel (0) target = $region29
  $region28: #{lstmx1_attention_forward.1} parent=0 // pred_region
    _
  $region29: #{lstmx1_attention_forward.1} parent=0 // pred_fallthru
    _
  // Predicated region
  $region30: #{lstmx1_attention_forward.1} parent=0 // pred_check
    _
  $region31: #{lstmx1_attention_forward.1} parent=0 // pred_check_branch
    %30 = sbr.rel (0) target = $region33
  $region32: #{lstmx1_attention_forward.1} parent=0 // pred_region
    _
  $region33: #{lstmx1_attention_forward.1} parent=0 // pred_fallthru
    _
  // Predicated region
  $region34: #{lstmx1_attention_forward.1} parent=0 // pred_check
    _
  $region35: #{lstmx1_attention_forward.1} parent=0 // pred_check_branch
    %32 = sbr.rel (0) target = $region37
  $region36: #{lstmx1_attention_forward.1} parent=0 // pred_region
    _
  $region37: #{lstmx1_attention_forward.1} parent=0 // pred_fallthru
    _
  // Predicated region
  $region38: #{lstmx1_attention_forward.1} parent=0 // pred_check
    _
  $region39: #{lstmx1_attention_forward.1} parent=0 // pred_check_branch
    %34 = sbr.rel (0) target = $region41
  $region40: #{lstmx1_attention_forward.1} parent=0 // pred_region
    _
  $region41: #{lstmx1_attention_forward.1} parent=0 // pred_fallthru
    _
  %v35 = vld [vmem:[%s1] sm:$0xff]
  %v36 = vld [vmem:[%s1 + $0x8] sm:$0xff]
  %v37 = vld [vmem:[%s2] sm:$0xff]
  %v38 = vld [vmem:[%s2 + $0x8] sm:$0xff]
  %v39 = vld [vmem:[%s2 + $0x10] sm:$0xff]
  %v40 = vld [vmem:[%s2 + $0x18] sm:$0xff]
  %v41 = vld [vmem:[%s2 + $0x20] sm:$0xff]
  %v42 = vld [vmem:[%s2 + $0x28] sm:$0xff]
  %v43 = vld [vmem:[%s2 + $0x30] sm:$0xff]
  %v44 = vld [vmem:[%s2 + $0x38] sm:$0xff]
  %v45 = vld [vmem:[%s2 + $0x40] sm:$0xff]
  %v46 = vld [vmem:[%s2 + $0x48] sm:$0xff]
  %v47 = vld [vmem:[%s2 + $0x50] sm:$0xff]
  %v48 = vld [vmem:[%s2 + $0x58] sm:$0xff]
  %v49 = vld [vmem:[%s2 + $0x60] sm:$0xff]
  %v50 = vld [vmem:[%s2 + $0x68] sm:$0xff]
  %v51 = vld [vmem:[%s2 + $0x70] sm:$0xff]
  %v52 = vld [vmem:[%s2 + $0x78] sm:$0xff]
  %v53 = vld [vmem:[%s2 + $0x80] sm:$0xff]
  %v54 = vld [vmem:[%s2 + $0x88] sm:$0xff]
  %v55 = vld [vmem:[%s2 + $0x90] sm:$0xff]
  %v56 = vld [vmem:[%s2 + $0x98] sm:$0xff]
  %v57 = vld [vmem:[%s2 + $0xa0] sm:$0xff]
  %v58 = vld [vmem:[%s2 + $0xa8] sm:$0xff]
  %v59 = vld [vmem:[%s2 + $0xb0] sm:$0xff]
  %v60 = vld [vmem:[%s2 + $0xb8] sm:$0xff]
  %v61 = vld [vmem:[%s2 + $0xc0] sm:$0xff]
  %v62 = vld [vmem:[%s2 + $0xc8] sm:$0xff]
  %v63 = vld [vmem:[%s2 + $0xd0] sm:$0xff]
  %v64 = vld [vmem:[%s2 + $0xd8] sm:$0xff]
  %v65 = vld [vmem:[%s2 + $0xe0] sm:$0xff]
  %v66 = vld [vmem:[%s2 + $0xe8] sm:$0xff]
  %v67 = vld [vmem:[%s2 + $0xf0] sm:$0xff]
  %v68 = vld [vmem:[%s2 + $0xf8] sm:$0xff]
  %v69 = vld [vmem:[%s2 + $0x100] sm:$0xff]
  %v70 = vld [vmem:[%s2 + $0x108] sm:$0xff]
  %v71 = vld [vmem:[%s2 + $0x110] sm:$0xff]
  %v72 = vld [vmem:[%s2 + $0x118] sm:$0xff]
  %v73 = vld [vmem:[%s2 + $0x120] sm:$0xff]
  %v74 = vld [vmem:[%s2 + $0x128] sm:$0xff]
  %v75 = vld [vmem:[%s2 + $0x130] sm:$0xff]
  %v76 = vld [vmem:[%s2 + $0x138] sm:$0xff]
  %v77 = vld [vmem:[%s2 + $0x140] sm:$0xff]
  %v78 = vld [vmem:[%s2 + $0x148] sm:$0xff]
  %v79 = vld [vmem:[%s2 + $0x150] sm:$0xff]
  %v80 = vld [vmem:[%s2 + $0x158] sm:$0xff]
  %v81 = vld [vmem:[%s2 + $0x160] sm:$0xff]
  %v82 = vld [vmem:[%s2 + $0x168] sm:$0xff]
  %v83 = vld [vmem:[%s2 + $0x170] sm:$0xff]
  %v84 = vld [vmem:[%s2 + $0x178] sm:$0xff]
  %v85 = vld [vmem:[%s2 + $0x180] sm:$0xff]
  %v86 = vld [vmem:[%s2 + $0x188] sm:$0xff]
  %v87 = vld [vmem:[%s2 + $0x190] sm:$0xff]
  %v88 = vld [vmem:[%s2 + $0x198] sm:$0xff]
  %v89 = vld [vmem:[%s2 + $0x1a0] sm:$0xff]
  %v90 = vld [vmem:[%s2 + $0x1a8] sm:$0xff]
  %v91 = vld [vmem:[%s2 + $0x1b0] sm:$0xff]
  %v92 = vld [vmem:[%s2 + $0x1b8] sm:$0xff]
  %v93 = vld [vmem:[%s2 + $0x1c0] sm:$0xff]
  %v94 = vld [vmem:[%s2 + $0x1c8] sm:$0xff]
  %v95 = vld [vmem:[%s2 + $0x1d0] sm:$0xff]
  %v96 = vld [vmem:[%s2 + $0x1d8] sm:$0xff]
  %v97 = vld [vmem:[%s2 + $0x1e0] sm:$0xff]
  %v98 = vld [vmem:[%s2 + $0x1e8] sm:$0xff]
  %v99 = vld [vmem:[%s2 + $0x1f0] sm:$0xff]
  %v100 = vld [vmem:[%s2 + $0x1f8] sm:$0xff]
  %v101 = vld [vmem:[%s3] sm:$0xf]
  %v102 = vld [vmem:[%s0] sm:$0xff]
  %v103 = vld [vmem:[%s0 + $0x8] sm:$0xff]
  %v104 = vld [vmem:[%s0 + $0x10] sm:$0xff]
  %v105 = vld [vmem:[%s0 + $0x18] sm:$0xff]
  %v106 = vld [vmem:[%s0 + $0x20] sm:$0xff]
  %v107 = vld [vmem:[%s0 + $0x28] sm:$0xff]
  %v108 = vld [vmem:[%s0 + $0x30] sm:$0xff]
  %v109 = vld [vmem:[%s0 + $0x38] sm:$0xff]
  %v111 = vlaneseq
  %v112 = vshrl.u32 %v111, 7
  %v113 = vsub.s32 0, %v112
  %v114 = vrot.slane %v101, %v113
  %v115 = vlaneseq
  %v116 = vshrl.u32 %v115, 7
  %v117 = vsub.s32 1, %v116
  %v118 = vrot.slane %v101, %v117
  %v119 = vlaneseq
  %v120 = vshrl.u32 %v119, 7
  %v121 = vsub.s32 2, %v120
  %v122 = vrot.slane %v101, %v121
  %v123 = vlaneseq
  %v124 = vshrl.u32 %v123, 7
  %v125 = vsub.s32 3, %v124
  %v126 = vrot.slane %v101, %v125
  %v133 = vcombine.high %v35, %v35
  %v134 = vcombine.high %v36, %v36
  %vm135 = vcmask 31744
  %v137 = vsel %vm135, %v102, 0
  %v140 = vsel %vm135, %v103, 0
  %v143 = vsel %vm135, %v104, 0
  %v146 = vsel %vm135, %v105, 0
  %v149 = vsel %vm135, %v106, 0
  %v152 = vsel %vm135, %v107, 0
  %v155 = vsel %vm135, %v108, 0
  %v158 = vsel %vm135, %v109, 0
  %vm160 = vcmask 1043456
  %v161 = vsel %vm160, %v35, 0
  %v163 = vsel %vm160, %v133, 0
  %v165 = vsel %vm160, %v36, 0
  %v167 = vsel %vm160, %v134, 0
  %169 = vmatprep.subr.mxu0 0.0
  %170 = vmatpush1.msra.mxu0 0.0
  %171 = vmatprep.subr.mxu0 0.0
  %172 = vmatpush1.msra.mxu0 0.0
  %173 = vmatprep.subr.mxu0 0.0
  %174 = vmatpush1.msra.mxu0 0.0
  %175 = vmatprep.subr.mxu0 0.0
  %176 = vmatpush1.msra.mxu0 0.0
  %177 = vmatprep.subr.mxu0 0.0
  %178 = vmatpush1.msra.mxu0 0.0
  %179 = vmatprep.subr.mxu0 0.0
  %180 = vmatpush1.msra.mxu0 0.0
  %181 = vmatprep.subr.mxu0 0.0
  %182 = vmatpush1.msra.mxu0 0.0
  %183 = vmatprep.subr.mxu0 0.0
  %184 = vmatpush1.msra.mxu0 0.0
  %185 = vmatprep.subr.mxu0 0.0
  %186 = vmatpush1.msra.mxu0 0.0
  %187 = vmatprep.subr.mxu0 0.0
  %188 = vmatpush1.msra.mxu0 0.0
  %189 = vmatprep.subr.mxu0 0.0
  %190 = vmatpush1.msra.mxu0 0.0
  %191 = vmatprep.subr.mxu0 0.0
  %192 = vmatpush1.msra.mxu0 0.0
  %193 = vmatprep.subr.mxu0 0.0
  %194 = vmatpush1.msra.mxu0 0.0
  %195 = vmatprep.subr.mxu0 0.0
  %196 = vmatpush1.msra.mxu0 0.0
  %197 = vmatprep.subr.mxu0 0.0
  %198 = vmatpush1.msra.mxu0 0.0
  %199 = vmatprep.subr.mxu0 %v163
  %200 = vmatpush1.msra.mxu0 %v161
  %201 = vmatprep.subr.mxu0 0.0
  %202 = vmatpush2.msra.mxu0 0.0
  %203 = vmatprep.subr.mxu0 0.0
  %204 = vmatpush2.msra.mxu0 0.0
  %205 = vmatprep.subr.mxu0 0.0
  %206 = vmatpush2.msra.mxu0 0.0
  %207 = vmatprep.subr.mxu0 0.0
  %208 = vmatpush2.msra.mxu0 0.0
  %209 = vmatprep.subr.mxu0 0.0
  %210 = vmatpush2.msra.mxu0 0.0
  %211 = vmatprep.subr.mxu0 0.0
  %212 = vmatpush2.msra.mxu0 0.0
  %213 = vmatprep.subr.mxu0 0.0
  %214 = vmatpush2.msra.mxu0 0.0
  %215 = vmatprep.subr.mxu0 0.0
  %216 = vmatpush2.msra.mxu0 0.0
  %217 = vmatprep.subr.mxu0 0.0
  %218 = vmatpush2.msra.mxu0 0.0
  %219 = vmatprep.subr.mxu0 0.0
  %220 = vmatpush2.msra.mxu0 0.0
  %221 = vmatprep.subr.mxu0 0.0
  %222 = vmatpush2.msra.mxu0 0.0
  %223 = vmatprep.subr.mxu0 0.0
  %224 = vmatpush2.msra.mxu0 0.0
  %225 = vmatprep.subr.mxu0 0.0
  %226 = vmatpush2.msra.mxu0 0.0
  %227 = vmatprep.subr.mxu0 0.0
  %228 = vmatpush2.msra.mxu0 0.0
  %229 = vmatprep.subr.mxu0 0.0
  %230 = vmatpush2.msra.mxu0 0.0
  %231 = vmatprep.subr.mxu0 0.0
  %232 = vmatpush2.msra.mxu0 0.0
  %233 = vmatprep.mubr.f32.mxu0 0.0
  %234 = vmatmul.mubr.f32.gmra.mxu0 %v137
  %v235 = vpop.f32.mrf.mxu0
  %v236 = vadd.f32 %v114, %v235
  %v237 = vpop.f32.mrf.mxu0
  %v238 = vadd.f32 %v118, %v237
  %239 = vmatprep.mubr.f32.mxu0 0.0
  %240 = vmatmul.mubr.f32.gmra.mxu0 %v140
  %v241 = vpop.f32.mrf.mxu0
  %v242 = vadd.f32 %v114, %v241
  %v243 = vpop.f32.mrf.mxu0
  %v244 = vadd.f32 %v118, %v243
  %245 = vmatprep.mubr.f32.mxu0 0.0
  %246 = vmatmul.mubr.f32.gmra.mxu0 %v143
  %v247 = vpop.f32.mrf.mxu0
  %v248 = vadd.f32 %v114, %v247
  %v249 = vpop.f32.mrf.mxu0
  %v250 = vadd.f32 %v118, %v249
  %251 = vmatprep.mubr.f32.mxu0 0.0
  %252 = vmatmul.mubr.f32.gmra.mxu0 %v146
  %v253 = vpop.f32.mrf.mxu0
  %v254 = vadd.f32 %v114, %v253
  %v255 = vpop.f32.mrf.mxu0
  %v256 = vadd.f32 %v118, %v255
  %257 = vmatprep.mubr.f32.mxu0 0.0
  %258 = vmatmul.mubr.f32.gmra.mxu0 %v149
  %v259 = vpop.f32.mrf.mxu0
  %v260 = vadd.f32 %v114, %v259
  %v261 = vpop.f32.mrf.mxu0
  %v262 = vadd.f32 %v118, %v261
  %263 = vmatprep.mubr.f32.mxu0 0.0
  %264 = vmatmul.mubr.f32.gmra.mxu0 %v152
  %v265 = vpop.f32.mrf.mxu0
  %v266 = vadd.f32 %v114, %v265
  %v267 = vpop.f32.mrf.mxu0
  %v268 = vadd.f32 %v118, %v267
  %269 = vmatprep.mubr.f32.mxu0 0.0
  %270 = vmatmul.mubr.f32.gmra.mxu0 %v155
  %v271 = vpop.f32.mrf.mxu0
  %v272 = vadd.f32 %v114, %v271
  %v273 = vpop.f32.mrf.mxu0
  %v274 = vadd.f32 %v118, %v273
  %275 = vmatprep.mubr.f32.mxu0 0.0
  %276 = vmatmul.mubr.f32.gmra.mxu0 %v158
  %v277 = vpop.f32.mrf.mxu0
  %v278 = vadd.f32 %v114, %v277
  %v279 = vpop.f32.mrf.mxu0
  %v280 = vadd.f32 %v118, %v279
  %281 = vdwg.mxu0
  %282 = vmatprep.subr.mxu0 0.0
  %283 = vmatpush1.msra.mxu0 0.0
  %284 = vmatprep.subr.mxu0 0.0
  %285 = vmatpush1.msra.mxu0 0.0
  %286 = vmatprep.subr.mxu0 0.0
  %287 = vmatpush1.msra.mxu0 0.0
  %288 = vmatprep.subr.mxu0 0.0
  %289 = vmatpush1.msra.mxu0 0.0
  %290 = vmatprep.subr.mxu0 0.0
  %291 = vmatpush1.msra.mxu0 0.0
  %292 = vmatprep.subr.mxu0 0.0
  %293 = vmatpush1.msra.mxu0 0.0
  %294 = vmatprep.subr.mxu0 0.0
  %295 = vmatpush1.msra.mxu0 0.0
  %296 = vmatprep.subr.mxu0 0.0
  %297 = vmatpush1.msra.mxu0 0.0
  %298 = vmatprep.subr.mxu0 0.0
  %299 = vmatpush1.msra.mxu0 0.0
  %300 = vmatprep.subr.mxu0 0.0
  %301 = vmatpush1.msra.mxu0 0.0
  %302 = vmatprep.subr.mxu0 0.0
  %303 = vmatpush1.msra.mxu0 0.0
  %304 = vmatprep.subr.mxu0 0.0
  %305 = vmatpush1.msra.mxu0 0.0
  %306 = vmatprep.subr.mxu0 0.0
  %307 = vmatpush1.msra.mxu0 0.0
  %308 = vmatprep.subr.mxu0 0.0
  %309 = vmatpush1.msra.mxu0 0.0
  %310 = vmatprep.subr.mxu0 0.0
  %311 = vmatpush1.msra.mxu0 0.0
  %312 = vmatprep.subr.mxu0 %v167
  %313 = vmatpush1.msra.mxu0 %v165
  %314 = vmatprep.subr.mxu0 0.0
  %315 = vmatpush2.msra.mxu0 0.0
  %316 = vmatprep.subr.mxu0 0.0
  %317 = vmatpush2.msra.mxu0 0.0
  %318 = vmatprep.subr.mxu0 0.0
  %319 = vmatpush2.msra.mxu0 0.0
  %320 = vmatprep.subr.mxu0 0.0
  %321 = vmatpush2.msra.mxu0 0.0
  %322 = vmatprep.subr.mxu0 0.0
  %323 = vmatpush2.msra.mxu0 0.0
  %324 = vmatprep.subr.mxu0 0.0
  %325 = vmatpush2.msra.mxu0 0.0
  %326 = vmatprep.subr.mxu0 0.0
  %327 = vmatpush2.msra.mxu0 0.0
  %328 = vmatprep.subr.mxu0 0.0
  %329 = vmatpush2.msra.mxu0 0.0
  %330 = vmatprep.subr.mxu0 0.0
  %331 = vmatpush2.msra.mxu0 0.0
  %332 = vmatprep.subr.mxu0 0.0
  %333 = vmatpush2.msra.mxu0 0.0
  %334 = vmatprep.subr.mxu0 0.0
  %335 = vmatpush2.msra.mxu0 0.0
  %336 = vmatprep.subr.mxu0 0.0
  %337 = vmatpush2.msra.mxu0 0.0
  %338 = vmatprep.subr.mxu0 0.0
  %339 = vmatpush2.msra.mxu0 0.0
  %340 = vmatprep.subr.mxu0 0.0
  %341 = vmatpush2.msra.mxu0 0.0
  %342 = vmatprep.subr.mxu0 0.0
  %343 = vmatpush2.msra.mxu0 0.0
  %344 = vmatprep.subr.mxu0 0.0
  %345 = vmatpush2.msra.mxu0 0.0
  %346 = vmatprep.mubr.f32.mxu0 0.0
  %347 = vmatmul.mubr.f32.gmra.mxu0 %v137
  %v348 = vpop.f32.mrf.mxu0
  %v349 = vadd.f32 %v122, %v348
  %v350 = vpop.f32.mrf.mxu0
  %v351 = vadd.f32 %v126, %v350
  %352 = vmatprep.mubr.f32.mxu0 0.0
  %353 = vmatmul.mubr.f32.gmra.mxu0 %v140
  %v354 = vpop.f32.mrf.mxu0
  %v355 = vadd.f32 %v122, %v354
  %v356 = vpop.f32.mrf.mxu0
  %v357 = vadd.f32 %v126, %v356
  %358 = vmatprep.mubr.f32.mxu0 0.0
  %359 = vmatmul.mubr.f32.gmra.mxu0 %v143
  %v360 = vpop.f32.mrf.mxu0
  %v361 = vadd.f32 %v122, %v360
  %v362 = vpop.f32.mrf.mxu0
  %v363 = vadd.f32 %v126, %v362
  %364 = vmatprep.mubr.f32.mxu0 0.0
  %365 = vmatmul.mubr.f32.gmra.mxu0 %v146
  %v366 = vpop.f32.mrf.mxu0
  %v367 = vadd.f32 %v122, %v366
  %v368 = vpop.f32.mrf.mxu0
  %v369 = vadd.f32 %v126, %v368
  %370 = vmatprep.mubr.f32.mxu0 0.0
  %371 = vmatmul.mubr.f32.gmra.mxu0 %v149
  %v372 = vpop.f32.mrf.mxu0
  %v373 = vadd.f32 %v122, %v372
  %v374 = vpop.f32.mrf.mxu0
  %v375 = vadd.f32 %v126, %v374
  %376 = vmatprep.mubr.f32.mxu0 0.0
  %377 = vmatmul.mubr.f32.gmra.mxu0 %v152
  %v378 = vpop.f32.mrf.mxu0
  %v379 = vadd.f32 %v122, %v378
  %v380 = vpop.f32.mrf.mxu0
  %v381 = vadd.f32 %v126, %v380
  %382 = vmatprep.mubr.f32.mxu0 0.0
  %383 = vmatmul.mubr.f32.gmra.mxu0 %v155
  %v384 = vpop.f32.mrf.mxu0
  %v385 = vadd.f32 %v122, %v384
  %v386 = vpop.f32.mrf.mxu0
  %v387 = vadd.f32 %v126, %v386
  %388 = vmatprep.mubr.f32.mxu0 0.0
  %389 = vmatmul.mubr.f32.gmra.mxu0 %v158
  %v390 = vpop.f32.mrf.mxu0
  %v391 = vadd.f32 %v122, %v390
  %v392 = vpop.f32.mrf.mxu0
  %v393 = vadd.f32 %v126, %v392
  %394 = vdwg.mxu0
  %395 = vst [vmem:[#allocation2] sm:$0xff] %v236
  %396 = vst [vmem:[#allocation2 + $0x8] sm:$0xff] %v238
  %397 = vst [vmem:[#allocation2 + $0x10] sm:$0xff] %v349
  %398 = vst [vmem:[#allocation2 + $0x18] sm:$0xff] %v351
  %399 = vst [vmem:[#allocation2 + $0x20] sm:$0xff] %v242
  %400 = vst [vmem:[#allocation2 + $0x28] sm:$0xff] %v244
  %401 = vst [vmem:[#allocation2 + $0x30] sm:$0xff] %v355
  %402 = vst [vmem:[#allocation2 + $0x38] sm:$0xff] %v357
  %403 = vst [vmem:[#allocation2 + $0x40] sm:$0xff] %v248
  %404 = vst [vmem:[#allocation2 + $0x48] sm:$0xff] %v250
  %405 = vst [vmem:[#allocation2 + $0x50] sm:$0xff] %v361
  %406 = vst [vmem:[#allocation2 + $0x58] sm:$0xff] %v363
  %407 = vst [vmem:[#allocation2 + $0x60] sm:$0xff] %v254
  %408 = vst [vmem:[#allocation2 + $0x68] sm:$0xff] %v256
  %409 = vst [vmem:[#allocation2 + $0x70] sm:$0xff] %v367
  %410 = vst [vmem:[#allocation2 + $0x78] sm:$0xff] %v369
  %411 = vst [vmem:[#allocation2 + $0x80] sm:$0xff] %v260
  %412 = vst [vmem:[#allocation2 + $0x88] sm:$0xff] %v262
  %413 = vst [vmem:[#allocation2 + $0x90] sm:$0xff] %v373
  %414 = vst [vmem:[#allocation2 + $0x98] sm:$0xff] %v375
  %415 = vst [vmem:[#allocation2 + $0xa0] sm:$0xff] %v266
  %416 = vst [vmem:[#allocation2 + $0xa8] sm:$0xff] %v268
  %417 = vst [vmem:[#allocation2 + $0xb0] sm:$0xff] %v379
  %418 = vst [vmem:[#allocation2 + $0xb8] sm:$0xff] %v381
  %419 = vst [vmem:[#allocation2 + $0xc0] sm:$0xff] %v272
  %420 = vst [vmem:[#allocation2 + $0xc8] sm:$0xff] %v274
  %421 = vst [vmem:[#allocation2 + $0xd0] sm:$0xff] %v385
  %422 = vst [vmem:[#allocation2 + $0xd8] sm:$0xff] %v387
  %423 = vst [vmem:[#allocation2 + $0xe0] sm:$0xff] %v278
  %424 = vst [vmem:[#allocation2 + $0xe8] sm:$0xff] %v280
  %425 = vst [vmem:[#allocation2 + $0xf0] sm:$0xff] %v391
  %426 = vst [vmem:[#allocation2 + $0xf8] sm:$0xff] %v393
  %s427 = smul.u32 0, 4
  %s428 = smul.addr %s427, 8
  %s429 = scalar_lea.vmem [#allocation2], %s428
  %v430 = vld [vmem:[%s429] sm:$0xff]
  %v431 = vld [vmem:[%s429 + $0x8] sm:$0xff]
  %v432 = vld [vmem:[%s429 + $0x10] sm:$0xff]
  %v433 = vld [vmem:[%s429 + $0x18] sm:$0xff]
  %434 = vmatprep.subr.mxu0 %v98
  %435 = vmatpush1.msra.mxu0 %v97
  %436 = vmatprep.subr.mxu0 %v94
  %437 = vmatpush1.msra.mxu0 %v93
  %438 = vmatprep.subr.mxu0 %v90
  %439 = vmatpush1.msra.mxu0 %v89
  %440 = vmatprep.subr.mxu0 %v86
  %441 = vmatpush1.msra.mxu0 %v85
  %442 = vmatprep.subr.mxu0 %v82
  %443 = vmatpush1.msra.mxu0 %v81
  %444 = vmatprep.subr.mxu0 %v78
  %445 = vmatpush1.msra.mxu0 %v77
  %446 = vmatprep.subr.mxu0 %v74
  %447 = vmatpush1.msra.mxu0 %v73
  %448 = vmatprep.subr.mxu0 %v70
  %449 = vmatpush1.msra.mxu0 %v69
  %450 = vmatprep.subr.mxu0 %v66
  %451 = vmatpush1.msra.mxu0 %v65
  %452 = vmatprep.subr.mxu0 %v62
  %453 = vmatpush1.msra.mxu0 %v61
  %454 = vmatprep.subr.mxu0 %v58
  %455 = vmatpush1.msra.mxu0 %v57
  %456 = vmatprep.subr.mxu0 %v54
  %457 = vmatpush1.msra.mxu0 %v53
  %458 = vmatprep.subr.mxu0 %v50
  %459 = vmatpush1.msra.mxu0 %v49
  %460 = vmatprep.subr.mxu0 %v46
  %461 = vmatpush1.msra.mxu0 %v45
  %462 = vmatprep.subr.mxu0 %v42
  %463 = vmatpush1.msra.mxu0 %v41
  %464 = vmatprep.subr.mxu0 %v38
  %465 = vmatpush1.msra.mxu0 %v37
  %466 = vmatprep.subr.mxu0 0.0
  %467 = vmatpush2.msra.mxu0 0.0
  %468 = vmatprep.subr.mxu0 0.0
  %469 = vmatpush2.msra.mxu0 0.0
  %470 = vmatprep.subr.mxu0 0.0
  %471 = vmatpush2.msra.mxu0 0.0
  %472 = vmatprep.subr.mxu0 0.0
  %473 = vmatpush2.msra.mxu0 0.0
  %474 = vmatprep.subr.mxu0 0.0
  %475 = vmatpush2.msra.mxu0 0.0
  %476 = vmatprep.subr.mxu0 0.0
  %477 = vmatpush2.msra.mxu0 0.0
  %478 = vmatprep.subr.mxu0 0.0
  %479 = vmatpush2.msra.mxu0 0.0
  %480 = vmatprep.subr.mxu0 0.0
  %481 = vmatpush2.msra.mxu0 0.0
  %482 = vmatprep.subr.mxu0 0.0
  %483 = vmatpush2.msra.mxu0 0.0
  %484 = vmatprep.subr.mxu0 0.0
  %485 = vmatpush2.msra.mxu0 0.0
  %486 = vmatprep.subr.mxu0 0.0
  %487 = vmatpush2.msra.mxu0 0.0
  %488 = vmatprep.subr.mxu0 0.0
  %489 = vmatpush2.msra.mxu0 0.0
  %490 = vmatprep.subr.mxu0 0.0
  %491 = vmatpush2.msra.mxu0 0.0
  %492 = vmatprep.subr.mxu0 0.0
  %493 = vmatpush2.msra.mxu0 0.0
  %494 = vmatprep.subr.mxu0 0.0
  %495 = vmatpush2.msra.mxu0 0.0
  %496 = vmatprep.subr.mxu0 0.0
  %497 = vmatpush2.msra.mxu0 0.0
  %498 = vmatprep.mubr.f32.mxu0 0.0
  %499 = vmatmul.mubr.f32.gmra.mxu0 0.0
  %v500 = vpop.f32.mrf.mxu0
  %v501 = vadd.f32 0.0, %v500
  %v502 = vpop.f32.mrf.mxu0
  %v503 = vadd.f32 0.0, %v502
  %504 = vdwg.mxu0
  %505 = vmatprep.subr.mxu0 %v100
  %506 = vmatpush1.msra.mxu0 %v99
  %507 = vmatprep.subr.mxu0 %v96
  %508 = vmatpush1.msra.mxu0 %v95
  %509 = vmatprep.subr.mxu0 %v92
  %510 = vmatpush1.msra.mxu0 %v91
  %511 = vmatprep.subr.mxu0 %v88
  %512 = vmatpush1.msra.mxu0 %v87
  %513 = vmatprep.subr.mxu0 %v84
  %514 = vmatpush1.msra.mxu0 %v83
  %515 = vmatprep.subr.mxu0 %v80
  %516 = vmatpush1.msra.mxu0 %v79
  %517 = vmatprep.subr.mxu0 %v76
  %518 = vmatpush1.msra.mxu0 %v75
  %519 = vmatprep.subr.mxu0 %v72
  %520 = vmatpush1.msra.mxu0 %v71
  %521 = vmatprep.subr.mxu0 %v68
  %522 = vmatpush1.msra.mxu0 %v67
  %523 = vmatprep.subr.mxu0 %v64
  %524 = vmatpush1.msra.mxu0 %v63
  %525 = vmatprep.subr.mxu0 %v60
  %526 = vmatpush1.msra.mxu0 %v59
  %527 = vmatprep.subr.mxu0 %v56
  %528 = vmatpush1.msra.mxu0 %v55
  %529 = vmatprep.subr.mxu0 %v52
  %530 = vmatpush1.msra.mxu0 %v51
  %531 = vmatprep.subr.mxu0 %v48
  %532 = vmatpush1.msra.mxu0 %v47
  %533 = vmatprep.subr.mxu0 %v44
  %534 = vmatpush1.msra.mxu0 %v43
  %535 = vmatprep.subr.mxu0 %v40
  %536 = vmatpush1.msra.mxu0 %v39
  %537 = vmatprep.subr.mxu0 0.0
  %538 = vmatpush2.msra.mxu0 0.0
  %539 = vmatprep.subr.mxu0 0.0
  %540 = vmatpush2.msra.mxu0 0.0
  %541 = vmatprep.subr.mxu0 0.0
  %542 = vmatpush2.msra.mxu0 0.0
  %543 = vmatprep.subr.mxu0 0.0
  %544 = vmatpush2.msra.mxu0 0.0
  %545 = vmatprep.subr.mxu0 0.0
  %546 = vmatpush2.msra.mxu0 0.0
  %547 = vmatprep.subr.mxu0 0.0
  %548 = vmatpush2.msra.mxu0 0.0
  %549 = vmatprep.subr.mxu0 0.0
  %550 = vmatpush2.msra.mxu0 0.0
  %551 = vmatprep.subr.mxu0 0.0
  %552 = vmatpush2.msra.mxu0 0.0
  %553 = vmatprep.subr.mxu0 0.0
  %554 = vmatpush2.msra.mxu0 0.0
  %555 = vmatprep.subr.mxu0 0.0
  %556 = vmatpush2.msra.mxu0 0.0
  %557 = vmatprep.subr.mxu0 0.0
  %558 = vmatpush2.msra.mxu0 0.0
  %559 = vmatprep.subr.mxu0 0.0
  %560 = vmatpush2.msra.mxu0 0.0
  %561 = vmatprep.subr.mxu0 0.0
  %562 = vmatpush2.msra.mxu0 0.0
  %563 = vmatprep.subr.mxu0 0.0
  %564 = vmatpush2.msra.mxu0 0.0
  %565 = vmatprep.subr.mxu0 0.0
  %566 = vmatpush2.msra.mxu0 0.0
  %567 = vmatprep.subr.mxu0 0.0
  %568 = vmatpush2.msra.mxu0 0.0
  %569 = vmatprep.mubr.f32.mxu0 0.0
  %570 = vmatmul.mubr.f32.gmra.mxu0 0.0
  %v571 = vpop.f32.mrf.mxu0
  %v572 = vadd.f32 0.0, %v571
  %v573 = vpop.f32.mrf.mxu0
  %v574 = vadd.f32 0.0, %v573
  %575 = vdwg.mxu0
  %v576 = vadd.f32 %v430, %v501
  %v577 = vadd.f32 %v431, %v503
  %v578 = vadd.f32 %v432, %v572
  %v579 = vadd.f32 %v433, %v574
  %v580 = vxor.u32 %v576, 2147483648
  %v581 = vmul.f32 %v580, 1.442695
  %v582 = vpow.pop %v581
  %v583 = vadd.f32 %v582, 1.0
  %v584 = vrcp.pop %v583
  %v585 = vmul.f32 1.0, %v584
  %v586 = vxor.u32 %v577, 2147483648
  %v587 = vmul.f32 %v586, 1.442695
  %v588 = vpow.pop %v587
  %v589 = vadd.f32 %v588, 1.0
  %v590 = vrcp.pop %v589
  %v591 = vmul.f32 1.0, %v590
  %v592 = vtanh.pop %v578
  %v593 = vxor.u32 %v579, 2147483648
  %v594 = vmul.f32 %v593, 1.442695
  %v595 = vpow.pop %v594
  %v596 = vadd.f32 %v595, 1.0
  %v597 = vrcp.pop %v596
  %v598 = vmul.f32 1.0, %v597
  %v599 = vmul.f32 %v591, 0.0
  %v600 = vmul.f32 %v585, %v592
  %v601 = vadd.f32 %v599, %v600
  %v602 = vtanh.pop %v601
  %v603 = vmul.f32 %v598, %v602
  %604 = vst [vmem:[#allocation3] sm:$0xff] %v603
  %s605 = smul.u32 1, 4
  %s606 = smul.addr %s605, 8
  %s607 = scalar_lea.vmem [#allocation2], %s606
  %v608 = vld [vmem:[%s607] sm:$0xff]
  %v609 = vld [vmem:[%s607 + $0x8] sm:$0xff]
  %v610 = vld [vmem:[%s607 + $0x10] sm:$0xff]
  %v611 = vld [vmem:[%s607 + $0x18] sm:$0xff]
  %612 = vmatprep.subr.mxu0 %v98
  %613 = vmatpush1.msra.mxu0 %v97
  %614 = vmatprep.subr.mxu0 %v94
  %615 = vmatpush1.msra.mxu0 %v93
  %616 = vmatprep.subr.mxu0 %v90
  %617 = vmatpush1.msra.mxu0 %v89
  %618 = vmatprep.subr.mxu0 %v86
  %619 = vmatpush1.msra.mxu0 %v85
  %620 = vmatprep.subr.mxu0 %v82
  %621 = vmatpush1.msra.mxu0 %v81
  %622 = vmatprep.subr.mxu0 %v78
  %623 = vmatpush1.msra.mxu0 %v77
  %624 = vmatprep.subr.mxu0 %v74
  %625 = vmatpush1.msra.mxu0 %v73
  %626 = vmatprep.subr.mxu0 %v70
  %627 = vmatpush1.msra.mxu0 %v69
  %628 = vmatprep.subr.mxu0 %v66
  %629 = vmatpush1.msra.mxu0 %v65
  %630 = vmatprep.subr.mxu0 %v62
  %631 = vmatpush1.msra.mxu0 %v61
  %632 = vmatprep.subr.mxu0 %v58
  %633 = vmatpush1.msra.mxu0 %v57
  %634 = vmatprep.subr.mxu0 %v54
  %635 = vmatpush1.msra.mxu0 %v53
  %636 = vmatprep.subr.mxu0 %v50
  %637 = vmatpush1.msra.mxu0 %v49
  %638 = vmatprep.subr.mxu0 %v46
  %639 = vmatpush1.msra.mxu0 %v45
  %640 = vmatprep.subr.mxu0 %v42
  %641 = vmatpush1.msra.mxu0 %v41
  %642 = vmatprep.subr.mxu0 %v38
  %643 = vmatpush1.msra.mxu0 %v37
  %644 = vmatprep.subr.mxu0 0.0
  %645 = vmatpush2.msra.mxu0 0.0
  %646 = vmatprep.subr.mxu0 0.0
  %647 = vmatpush2.msra.mxu0 0.0
  %648 = vmatprep.subr.mxu0 0.0
  %649 = vmatpush2.msra.mxu0 0.0
  %650 = vmatprep.subr.mxu0 0.0
  %651 = vmatpush2.msra.mxu0 0.0
  %652 = vmatprep.subr.mxu0 0.0
  %653 = vmatpush2.msra.mxu0 0.0
  %654 = vmatprep.subr.mxu0 0.0
  %655 = vmatpush2.msra.mxu0 0.0
  %656 = vmatprep.subr.mxu0 0.0
  %657 = vmatpush2.msra.mxu0 0.0
  %658 = vmatprep.subr.mxu0 0.0
  %659 = vmatpush2.msra.mxu0 0.0
  %660 = vmatprep.subr.mxu0 0.0
  %661 = vmatpush2.msra.mxu0 0.0
  %662 = vmatprep.subr.mxu0 0.0
  %663 = vmatpush2.msra.mxu0 0.0
  %664 = vmatprep.subr.mxu0 0.0
  %665 = vmatpush2.msra.mxu0 0.0
  %666 = vmatprep.subr.mxu0 0.0
  %667 = vmatpush2.msra.mxu0 0.0
  %668 = vmatprep.subr.mxu0 0.0
  %669 = vmatpush2.msra.mxu0 0.0
  %670 = vmatprep.subr.mxu0 0.0
  %671 = vmatpush2.msra.mxu0 0.0
  %672 = vmatprep.subr.mxu0 0.0
  %673 = vmatpush2.msra.mxu0 0.0
  %674 = vmatprep.subr.mxu0 0.0
  %675 = vmatpush2.msra.mxu0 0.0
  %676 = vmatprep.mubr.f32.mxu0 0.0
  %677 = vmatmul.mubr.f32.gmra.mxu0 %v603
  %v678 = vpop.f32.mrf.mxu0
  %v679 = vadd.f32 0.0, %v678
  %v680 = vpop.f32.mrf.mxu0
  %v681 = vadd.f32 0.0, %v680
  %682 = vdwg.mxu0
  %683 = vmatprep.subr.mxu0 %v100
  %684 = vmatpush1.msra.mxu0 %v99
  %685 = vmatprep.subr.mxu0 %v96
  %686 = vmatpush1.msra.mxu0 %v95
  %687 = vmatprep.subr.mxu0 %v92
  %688 = vmatpush1.msra.mxu0 %v91
  %689 = vmatprep.subr.mxu0 %v88
  %690 = vmatpush1.msra.mxu0 %v87
  %691 = vmatprep.subr.mxu0 %v84
  %692 = vmatpush1.msra.mxu0 %v83
  %693 = vmatprep.subr.mxu0 %v80
  %694 = vmatpush1.msra.mxu0 %v79
  %695 = vmatprep.subr.mxu0 %v76
  %696 = vmatpush1.msra.mxu0 %v75
  %697 = vmatprep.subr.mxu0 %v72
  %698 = vmatpush1.msra.mxu0 %v71
  %699 = vmatprep.subr.mxu0 %v68
  %700 = vmatpush1.msra.mxu0 %v67
  %701 = vmatprep.subr.mxu0 %v64
  %702 = vmatpush1.msra.mxu0 %v63
  %703 = vmatprep.subr.mxu0 %v60
  %704 = vmatpush1.msra.mxu0 %v59
  %705 = vmatprep.subr.mxu0 %v56
  %706 = vmatpush1.msra.mxu0 %v55
  %707 = vmatprep.subr.mxu0 %v52
  %708 = vmatpush1.msra.mxu0 %v51
  %709 = vmatprep.subr.mxu0 %v48
  %710 = vmatpush1.msra.mxu0 %v47
  %711 = vmatprep.subr.mxu0 %v44
  %712 = vmatpush1.msra.mxu0 %v43
  %713 = vmatprep.subr.mxu0 %v40
  %714 = vmatpush1.msra.mxu0 %v39
  %715 = vmatprep.subr.mxu0 0.0
  %716 = vmatpush2.msra.mxu0 0.0
  %717 = vmatprep.subr.mxu0 0.0
  %718 = vmatpush2.msra.mxu0 0.0
  %719 = vmatprep.subr.mxu0 0.0
  %720 = vmatpush2.msra.mxu0 0.0
  %721 = vmatprep.subr.mxu0 0.0
  %722 = vmatpush2.msra.mxu0 0.0
  %723 = vmatprep.subr.mxu0 0.0
  %724 = vmatpush2.msra.mxu0 0.0
  %725 = vmatprep.subr.mxu0 0.0
  %726 = vmatpush2.msra.mxu0 0.0
  %727 = vmatprep.subr.mxu0 0.0
  %728 = vmatpush2.msra.mxu0 0.0
  %729 = vmatprep.subr.mxu0 0.0
  %730 = vmatpush2.msra.mxu0 0.0
  %731 = vmatprep.subr.mxu0 0.0
  %732 = vmatpush2.msra.mxu0 0.0
  %733 = vmatprep.subr.mxu0 0.0
  %734 = vmatpush2.msra.mxu0 0.0
  %735 = vmatprep.subr.mxu0 0.0
  %736 = vmatpush2.msra.mxu0 0.0
  %737 = vmatprep.subr.mxu0 0.0
  %738 = vmatpush2.msra.mxu0 0.0
  %739 = vmatprep.subr.mxu0 0.0
  %740 = vmatpush2.msra.mxu0 0.0
  %741 = vmatprep.subr.mxu0 0.0
  %742 = vmatpush2.msra.mxu0 0.0
  %743 = vmatprep.subr.mxu0 0.0
  %744 = vmatpush2.msra.mxu0 0.0
  %745 = vmatprep.subr.mxu0 0.0
  %746 = vmatpush2.msra.mxu0 0.0
  %747 = vmatprep.mubr.f32.mxu0 0.0
  %748 = vmatmul.mubr.f32.gmra.mxu0 %v603
  %v749 = vpop.f32.mrf.mxu0
  %v750 = vadd.f32 0.0, %v749
  %v751 = vpop.f32.mrf.mxu0
  %v752 = vadd.f32 0.0, %v751
  %753 = vdwg.mxu0
  %v754 = vadd.f32 %v608, %v679
  %v755 = vadd.f32 %v609, %v681
  %v756 = vadd.f32 %v610, %v750
  %v757 = vadd.f32 %v611, %v752
  %v758 = vxor.u32 %v754, 2147483648
  %v759 = vmul.f32 %v758, 1.442695
  %v760 = vpow.pop %v759
  %v761 = vadd.f32 %v760, 1.0
  %v762 = vrcp.pop %v761
  %v763 = vmul.f32 1.0, %v762
  %v764 = vxor.u32 %v755, 2147483648
  %v765 = vmul.f32 %v764, 1.442695
  %v766 = vpow.pop %v765
  %v767 = vadd.f32 %v766, 1.0
  %v768 = vrcp.pop %v767
  %v769 = vmul.f32 1.0, %v768
  %v770 = vtanh.pop %v756
  %v771 = vxor.u32 %v757, 2147483648
  %v772 = vmul.f32 %v771, 1.442695
  %v773 = vpow.pop %v772
  %v774 = vadd.f32 %v773, 1.0
  %v775 = vrcp.pop %v774
  %v776 = vmul.f32 1.0, %v775
  %v777 = vmul.f32 %v769, %v601
  %v778 = vmul.f32 %v763, %v770
  %v779 = vadd.f32 %v777, %v778
  %v780 = vtanh.pop %v779
  %v781 = vmul.f32 %v776, %v780
  %s782 = scalar_lea.vmem [#allocation3], 8
  %783 = vst [vmem:[%s782] sm:$0xff] %v781
  %s784 = smul.u32 2, 4
  %s785 = smul.addr %s784, 8
  %s786 = scalar_lea.vmem [#allocation2], %s785
  %v787 = vld [vmem:[%s786] sm:$0xff]
  %v788 = vld [vmem:[%s786 + $0x8] sm:$0xff]
  %v789 = vld [vmem:[%s786 + $0x10] sm:$0xff]
  %v790 = vld [vmem:[%s786 + $0x18] sm:$0xff]
  %791 = vmatprep.subr.mxu0 %v98
  %792 = vmatpush1.msra.mxu0 %v97
  %793 = vmatprep.subr.mxu0 %v94
  %794 = vmatpush1.msra.mxu0 %v93
  %795 = vmatprep.subr.mxu0 %v90
  %796 = vmatpush1.msra.mxu0 %v89
  %797 = vmatprep.subr.mxu0 %v86
  %798 = vmatpush1.msra.mxu0 %v85
  %799 = vmatprep.subr.mxu0 %v82
  %800 = vmatpush1.msra.mxu0 %v81
  %801 = vmatprep.subr.mxu0 %v78
  %802 = vmatpush1.msra.mxu0 %v77
  %803 = vmatprep.subr.mxu0 %v74
  %804 = vmatpush1.msra.mxu0 %v73
  %805 = vmatprep.subr.mxu0 %v70
  %806 = vmatpush1.msra.mxu0 %v69
  %807 = vmatprep.subr.mxu0 %v66
  %808 = vmatpush1.msra.mxu0 %v65
  %809 = vmatprep.subr.mxu0 %v62
  %810 = vmatpush1.msra.mxu0 %v61
  %811 = vmatprep.subr.mxu0 %v58
  %812 = vmatpush1.msra.mxu0 %v57
  %813 = vmatprep.subr.mxu0 %v54
  %814 = vmatpush1.msra.mxu0 %v53
  %815 = vmatprep.subr.mxu0 %v50
  %816 = vmatpush1.msra.mxu0 %v49
  %817 = vmatprep.subr.mxu0 %v46
  %818 = vmatpush1.msra.mxu0 %v45
  %819 = vmatprep.subr.mxu0 %v42
  %820 = vmatpush1.msra.mxu0 %v41
  %821 = vmatprep.subr.mxu0 %v38
  %822 = vmatpush1.msra.mxu0 %v37
  %823 = vmatprep.subr.mxu0 0.0
  %824 = vmatpush2.msra.mxu0 0.0
  %825 = vmatprep.subr.mxu0 0.0
  %826 = vmatpush2.msra.mxu0 0.0
  %827 = vmatprep.subr.mxu0 0.0
  %828 = vmatpush2.msra.mxu0 0.0
  %829 = vmatprep.subr.mxu0 0.0
  %830 = vmatpush2.msra.mxu0 0.0
  %831 = vmatprep.subr.mxu0 0.0
  %832 = vmatpush2.msra.mxu0 0.0
  %833 = vmatprep.subr.mxu0 0.0
  %834 = vmatpush2.msra.mxu0 0.0
  %835 = vmatprep.subr.mxu0 0.0
  %836 = vmatpush2.msra.mxu0 0.0
  %837 = vmatprep.subr.mxu0 0.0
  %838 = vmatpush2.msra.mxu0 0.0
  %839 = vmatprep.subr.mxu0 0.0
  %840 = vmatpush2.msra.mxu0 0.0
  %841 = vmatprep.subr.mxu0 0.0
  %842 = vmatpush2.msra.mxu0 0.0
  %843 = vmatprep.subr.mxu0 0.0
  %844 = vmatpush2.msra.mxu0 0.0
  %845 = vmatprep.subr.mxu0 0.0
  %846 = vmatpush2.msra.mxu0 0.0
  %847 = vmatprep.subr.mxu0 0.0
  %848 = vmatpush2.msra.mxu0 0.0
  %849 = vmatprep.subr.mxu0 0.0
  %850 = vmatpush2.msra.mxu0 0.0
  %851 = vmatprep.subr.mxu0 0.0
  %852 = vmatpush2.msra.mxu0 0.0
  %853 = vmatprep.subr.mxu0 0.0
  %854 = vmatpush2.msra.mxu0 0.0
  %855 = vmatprep.mubr.f32.mxu0 0.0
  %856 = vmatmul.mubr.f32.gmra.mxu0 %v781
  %v857 = vpop.f32.mrf.mxu0
  %v858 = vadd.f32 0.0, %v857
  %v859 = vpop.f32.mrf.mxu0
  %v860 = vadd.f32 0.0, %v859
  %861 = vdwg.mxu0
  %862 = vmatprep.subr.mxu0 %v100
  %863 = vmatpush1.msra.mxu0 %v99
  %864 = vmatprep.subr.mxu0 %v96
  %865 = vmatpush1.msra.mxu0 %v95
  %866 = vmatprep.subr.mxu0 %v92
  %867 = vmatpush1.msra.mxu0 %v91
  %868 = vmatprep.subr.mxu0 %v88
  %869 = vmatpush1.msra.mxu0 %v87
  %870 = vmatprep.subr.mxu0 %v84
  %871 = vmatpush1.msra.mxu0 %v83
  %872 = vmatprep.subr.mxu0 %v80
  %873 = vmatpush1.msra.mxu0 %v79
  %874 = vmatprep.subr.mxu0 %v76
  %875 = vmatpush1.msra.mxu0 %v75
  %876 = vmatprep.subr.mxu0 %v72
  %877 = vmatpush1.msra.mxu0 %v71
  %878 = vmatprep.subr.mxu0 %v68
  %879 = vmatpush1.msra.mxu0 %v67
  %880 = vmatprep.subr.mxu0 %v64
  %881 = vmatpush1.msra.mxu0 %v63
  %882 = vmatprep.subr.mxu0 %v60
  %883 = vmatpush1.msra.mxu0 %v59
  %884 = vmatprep.subr.mxu0 %v56
  %885 = vmatpush1.msra.mxu0 %v55
  %886 = vmatprep.subr.mxu0 %v52
  %887 = vmatpush1.msra.mxu0 %v51
  %888 = vmatprep.subr.mxu0 %v48
  %889 = vmatpush1.msra.mxu0 %v47
  %890 = vmatprep.subr.mxu0 %v44
  %891 = vmatpush1.msra.mxu0 %v43
  %892 = vmatprep.subr.mxu0 %v40
  %893 = vmatpush1.msra.mxu0 %v39
  %894 = vmatprep.subr.mxu0 0.0
  %895 = vmatpush2.msra.mxu0 0.0
  %896 = vmatprep.subr.mxu0 0.0
  %897 = vmatpush2.msra.mxu0 0.0
  %898 = vmatprep.subr.mxu0 0.0
  %899 = vmatpush2.msra.mxu0 0.0
  %900 = vmatprep.subr.mxu0 0.0
  %901 = vmatpush2.msra.mxu0 0.0
  %902 = vmatprep.subr.mxu0 0.0
  %903 = vmatpush2.msra.mxu0 0.0
  %904 = vmatprep.subr.mxu0 0.0
  %905 = vmatpush2.msra.mxu0 0.0
  %906 = vmatprep.subr.mxu0 0.0
  %907 = vmatpush2.msra.mxu0 0.0
  %908 = vmatprep.subr.mxu0 0.0
  %909 = vmatpush2.msra.mxu0 0.0
  %910 = vmatprep.subr.mxu0 0.0
  %911 = vmatpush2.msra.mxu0 0.0
  %912 = vmatprep.subr.mxu0 0.0
  %913 = vmatpush2.msra.mxu0 0.0
  %914 = vmatprep.subr.mxu0 0.0
  %915 = vmatpush2.msra.mxu0 0.0
  %916 = vmatprep.subr.mxu0 0.0
  %917 = vmatpush2.msra.mxu0 0.0
  %918 = vmatprep.subr.mxu0 0.0
  %919 = vmatpush2.msra.mxu0 0.0
  %920 = vmatprep.subr.mxu0 0.0
  %921 = vmatpush2.msra.mxu0 0.0
  %922 = vmatprep.subr.mxu0 0.0
  %923 = vmatpush2.msra.mxu0 0.0
  %924 = vmatprep.subr.mxu0 0.0
  %925 = vmatpush2.msra.mxu0 0.0
  %926 = vmatprep.mubr.f32.mxu0 0.0
  %927 = vmatmul.mubr.f32.gmra.mxu0 %v781
  %v928 = vpop.f32.mrf.mxu0
  %v929 = vadd.f32 0.0, %v928
  %v930 = vpop.f32.mrf.mxu0
  %v931 = vadd.f32 0.0, %v930
  %932 = vdwg.mxu0
  %v933 = vadd.f32 %v787, %v858
  %v934 = vadd.f32 %v788, %v860
  %v935 = vadd.f32 %v789, %v929
  %v936 = vadd.f32 %v790, %v931
  %v937 = vxor.u32 %v933, 2147483648
  %v938 = vmul.f32 %v937, 1.442695
  %v939 = vpow.pop %v938
  %v940 = vadd.f32 %v939, 1.0
  %v941 = vrcp.pop %v940
  %v942 = vmul.f32 1.0, %v941
  %v943 = vxor.u32 %v934, 2147483648
  %v944 = vmul.f32 %v943, 1.442695
  %v945 = vpow.pop %v944
  %v946 = vadd.f32 %v945, 1.0
  %v947 = vrcp.pop %v946
  %v948 = vmul.f32 1.0, %v947
  %v949 = vtanh.pop %v935
  %v950 = vxor.u32 %v936, 2147483648
  %v951 = vmul.f32 %v950, 1.442695
  %v952 = vpow.pop %v951
  %v953 = vadd.f32 %v952, 1.0
  %v954 = vrcp.pop %v953
  %v955 = vmul.f32 1.0, %v954
  %v956 = vmul.f32 %v948, %v779
  %v957 = vmul.f32 %v942, %v949
  %v958 = vadd.f32 %v956, %v957
  %v959 = vtanh.pop %v958
  %v960 = vmul.f32 %v955, %v959
  %s961 = scalar_lea.vmem [#allocation3], 16
  %962 = vst [vmem:[%s961] sm:$0xff] %v960
  %s963 = smul.u32 3, 4
  %s964 = smul.addr %s963, 8
  %s965 = scalar_lea.vmem [#allocation2], %s964
  %v966 = vld [vmem:[%s965] sm:$0xff]
  %v967 = vld [vmem:[%s965 + $0x8] sm:$0xff]
  %v968 = vld [vmem:[%s965 + $0x10] sm:$0xff]
  %v969 = vld [vmem:[%s965 + $0x18] sm:$0xff]
  %970 = vmatprep.subr.mxu0 %v98
  %971 = vmatpush1.msra.mxu0 %v97
  %972 = vmatprep.subr.mxu0 %v94
  %973 = vmatpush1.msra.mxu0 %v93
  %974 = vmatprep.subr.mxu0 %v90
  %975 = vmatpush1.msra.mxu0 %v89
  %976 = vmatprep.subr.mxu0 %v86
  %977 = vmatpush1.msra.mxu0 %v85
  %978 = vmatprep.subr.mxu0 %v82
  %979 = vmatpush1.msra.mxu0 %v81
  %980 = vmatprep.subr.mxu0 %v78
  %981 = vmatpush1.msra.mxu0 %v77
  %982 = vmatprep.subr.mxu0 %v74
  %983 = vmatpush1.msra.mxu0 %v73
  %984 = vmatprep.subr.mxu0 %v70
  %985 = vmatpush1.msra.mxu0 %v69
  %986 = vmatprep.subr.mxu0 %v66
  %987 = vmatpush1.msra.mxu0 %v65
  %988 = vmatprep.subr.mxu0 %v62
  %989 = vmatpush1.msra.mxu0 %v61
  %990 = vmatprep.subr.mxu0 %v58
  %991 = vmatpush1.msra.mxu0 %v57
  %992 = vmatprep.subr.mxu0 %v54
  %993 = vmatpush1.msra.mxu0 %v53
  %994 = vmatprep.subr.mxu0 %v50
  %995 = vmatpush1.msra.mxu0 %v49
  %996 = vmatprep.subr.mxu0 %v46
  %997 = vmatpush1.msra.mxu0 %v45
  %998 = vmatprep.subr.mxu0 %v42
  %999 = vmatpush1.msra.mxu0 %v41
  %1000 = vmatprep.subr.mxu0 %v38
  %1001 = vmatpush1.msra.mxu0 %v37
  %1002 = vmatprep.subr.mxu0 0.0
  %1003 = vmatpush2.msra.mxu0 0.0
  %1004 = vmatprep.subr.mxu0 0.0
  %1005 = vmatpush2.msra.mxu0 0.0
  %1006 = vmatprep.subr.mxu0 0.0
  %1007 = vmatpush2.msra.mxu0 0.0
  %1008 = vmatprep.subr.mxu0 0.0
  %1009 = vmatpush2.msra.mxu0 0.0
  %1010 = vmatprep.subr.mxu0 0.0
  %1011 = vmatpush2.msra.mxu0 0.0
  %1012 = vmatprep.subr.mxu0 0.0
  %1013 = vmatpush2.msra.mxu0 0.0
  %1014 = vmatprep.subr.mxu0 0.0
  %1015 = vmatpush2.msra.mxu0 0.0
  %1016 = vmatprep.subr.mxu0 0.0
  %1017 = vmatpush2.msra.mxu0 0.0
  %1018 = vmatprep.subr.mxu0 0.0
  %1019 = vmatpush2.msra.mxu0 0.0
  %1020 = vmatprep.subr.mxu0 0.0
  %1021 = vmatpush2.msra.mxu0 0.0
  %1022 = vmatprep.subr.mxu0 0.0
  %1023 = vmatpush2.msra.mxu0 0.0
  %1024 = vmatprep.subr.mxu0 0.0
  %1025 = vmatpush2.msra.mxu0 0.0
  %1026 = vmatprep.subr.mxu0 0.0
  %1027 = vmatpush2.msra.mxu0 0.0
  %1028 = vmatprep.subr.mxu0 0.0
  %1029 = vmatpush2.msra.mxu0 0.0
  %1030 = vmatprep.subr.mxu0 0.0
  %1031 = vmatpush2.msra.mxu0 0.0
  %1032 = vmatprep.subr.mxu0 0.0
  %1033 = vmatpush2.msra.mxu0 0.0
  %1034 = vmatprep.mubr.f32.mxu0 0.0
  %1035 = vmatmul.mubr.f32.gmra.mxu0 %v960
  %v1036 = vpop.f32.mrf.mxu0
  %v1037 = vadd.f32 0.0, %v1036
  %v1038 = vpop.f32.mrf.mxu0
  %v1039 = vadd.f32 0.0, %v1038
  %1040 = vdwg.mxu0
  %1041 = vmatprep.subr.mxu0 %v100
  %1042 = vmatpush1.msra.mxu0 %v99
  %1043 = vmatprep.subr.mxu0 %v96
  %1044 = vmatpush1.msra.mxu0 %v95
  %1045 = vmatprep.subr.mxu0 %v92
  %1046 = vmatpush1.msra.mxu0 %v91
  %1047 = vmatprep.subr.mxu0 %v88
  %1048 = vmatpush1.msra.mxu0 %v87
  %1049 = vmatprep.subr.mxu0 %v84
  %1050 = vmatpush1.msra.mxu0 %v83
  %1051 = vmatprep.subr.mxu0 %v80
  %1052 = vmatpush1.msra.mxu0 %v79
  %1053 = vmatprep.subr.mxu0 %v76
  %1054 = vmatpush1.msra.mxu0 %v75
  %1055 = vmatprep.subr.mxu0 %v72
  %1056 = vmatpush1.msra.mxu0 %v71
  %1057 = vmatprep.subr.mxu0 %v68
  %1058 = vmatpush1.msra.mxu0 %v67
  %1059 = vmatprep.subr.mxu0 %v64
  %1060 = vmatpush1.msra.mxu0 %v63
  %1061 = vmatprep.subr.mxu0 %v60
  %1062 = vmatpush1.msra.mxu0 %v59
  %1063 = vmatprep.subr.mxu0 %v56
  %1064 = vmatpush1.msra.mxu0 %v55
  %1065 = vmatprep.subr.mxu0 %v52
  %1066 = vmatpush1.msra.mxu0 %v51
  %1067 = vmatprep.subr.mxu0 %v48
  %1068 = vmatpush1.msra.mxu0 %v47
  %1069 = vmatprep.subr.mxu0 %v44
  %1070 = vmatpush1.msra.mxu0 %v43
  %1071 = vmatprep.subr.mxu0 %v40
  %1072 = vmatpush1.msra.mxu0 %v39
  %1073 = vmatprep.subr.mxu0 0.0
  %1074 = vmatpush2.msra.mxu0 0.0
  %1075 = vmatprep.subr.mxu0 0.0
  %1076 = vmatpush2.msra.mxu0 0.0
  %1077 = vmatprep.subr.mxu0 0.0
  %1078 = vmatpush2.msra.mxu0 0.0
  %1079 = vmatprep.subr.mxu0 0.0
  %1080 = vmatpush2.msra.mxu0 0.0
  %1081 = vmatprep.subr.mxu0 0.0
  %1082 = vmatpush2.msra.mxu0 0.0
  %1083 = vmatprep.subr.mxu0 0.0
  %1084 = vmatpush2.msra.mxu0 0.0
  %1085 = vmatprep.subr.mxu0 0.0
  %1086 = vmatpush2.msra.mxu0 0.0
  %1087 = vmatprep.subr.mxu0 0.0
  %1088 = vmatpush2.msra.mxu0 0.0
  %1089 = vmatprep.subr.mxu0 0.0
  %1090 = vmatpush2.msra.mxu0 0.0
  %1091 = vmatprep.subr.mxu0 0.0
  %1092 = vmatpush2.msra.mxu0 0.0
  %1093 = vmatprep.subr.mxu0 0.0
  %1094 = vmatpush2.msra.mxu0 0.0
  %1095 = vmatprep.subr.mxu0 0.0
  %1096 = vmatpush2.msra.mxu0 0.0
  %1097 = vmatprep.subr.mxu0 0.0
  %1098 = vmatpush2.msra.mxu0 0.0
  %1099 = vmatprep.subr.mxu0 0.0
  %1100 = vmatpush2.msra.mxu0 0.0
  %1101 = vmatprep.subr.mxu0 0.0
  %1102 = vmatpush2.msra.mxu0 0.0
  %1103 = vmatprep.subr.mxu0 0.0
  %1104 = vmatpush2.msra.mxu0 0.0
  %1105 = vmatprep.mubr.f32.mxu0 0.0
  %1106 = vmatmul.mubr.f32.gmra.mxu0 %v960
  %v1107 = vpop.f32.mrf.mxu0
  %v1108 = vadd.f32 0.0, %v1107
  %v1109 = vpop.f32.mrf.mxu0
  %v1110 = vadd.f32 0.0, %v1109
  %1111 = vdwg.mxu0
  %v1112 = vadd.f32 %v966, %v1037
  %v1113 = vadd.f32 %v967, %v1039
  %v1114 = vadd.f32 %v968, %v1108
  %v1115 = vadd.f32 %v969, %v1110
  %v1116 = vxor.u32 %v1112, 2147483648
  %v1117 = vmul.f32 %v1116, 1.442695
  %v1118 = vpow.pop %v1117
  %v1119 = vadd.f32 %v1118, 1.0
  %v1120 = vrcp.pop %v1119
  %v1121 = vmul.f32 1.0, %v1120
  %v1122 = vxor.u32 %v1113, 2147483648
  %v1123 = vmul.f32 %v1122, 1.442695
  %v1124 = vpow.pop %v1123
  %v1125 = vadd.f32 %v1124, 1.0
  %v1126 = vrcp.pop %v1125
  %v1127 = vmul.f32 1.0, %v1126
  %v1128 = vtanh.pop %v1114
  %v1129 = vxor.u32 %v1115, 2147483648
  %v1130 = vmul.f32 %v1129, 1.442695
  %v1131 = vpow.pop %v1130
  %v1132 = vadd.f32 %v1131, 1.0
  %v1133 = vrcp.pop %v1132
  %v1134 = vmul.f32 1.0, %v1133
  %v1135 = vmul.f32 %v1127, %v958
  %v1136 = vmul.f32 %v1121, %v1128
  %v1137 = vadd.f32 %v1135, %v1136
  %v1138 = vtanh.pop %v1137
  %v1139 = vmul.f32 %v1134, %v1138
  %s1140 = scalar_lea.vmem [#allocation3], 24
  %1141 = vst [vmem:[%s1140] sm:$0xff] %v1139
  %s1142 = smul.u32 4, 4
  %s1143 = smul.addr %s1142, 8
  %s1144 = scalar_lea.vmem [#allocation2], %s1143
  %v1145 = vld [vmem:[%s1144] sm:$0xff]
  %v1146 = vld [vmem:[%s1144 + $0x8] sm:$0xff]
  %v1147 = vld [vmem:[%s1144 + $0x10] sm:$0xff]
  %v1148 = vld [vmem:[%s1144 + $0x18] sm:$0xff]
  %1149 = vmatprep.subr.mxu0 %v98
  %1150 = vmatpush1.msra.mxu0 %v97
  %1151 = vmatprep.subr.mxu0 %v94
  %1152 = vmatpush1.msra.mxu0 %v93
  %1153 = vmatprep.subr.mxu0 %v90
  %1154 = vmatpush1.msra.mxu0 %v89
  %1155 = vmatprep.subr.mxu0 %v86
  %1156 = vmatpush1.msra.mxu0 %v85
  %1157 = vmatprep.subr.mxu0 %v82
  %1158 = vmatpush1.msra.mxu0 %v81
  %1159 = vmatprep.subr.mxu0 %v78
  %1160 = vmatpush1.msra.mxu0 %v77
  %1161 = vmatprep.subr.mxu0 %v74
  %1162 = vmatpush1.msra.mxu0 %v73
  %1163 = vmatprep.subr.mxu0 %v70
  %1164 = vmatpush1.msra.mxu0 %v69
  %1165 = vmatprep.subr.mxu0 %v66
  %1166 = vmatpush1.msra.mxu0 %v65
  %1167 = vmatprep.subr.mxu0 %v62
  %1168 = vmatpush1.msra.mxu0 %v61
  %1169 = vmatprep.subr.mxu0 %v58
  %1170 = vmatpush1.msra.mxu0 %v57
  %1171 = vmatprep.subr.mxu0 %v54
  %1172 = vmatpush1.msra.mxu0 %v53
  %1173 = vmatprep.subr.mxu0 %v50
  %1174 = vmatpush1.msra.mxu0 %v49
  %1175 = vmatprep.subr.mxu0 %v46
  %1176 = vmatpush1.msra.mxu0 %v45
  %1177 = vmatprep.subr.mxu0 %v42
  %1178 = vmatpush1.msra.mxu0 %v41
  %1179 = vmatprep.subr.mxu0 %v38
  %1180 = vmatpush1.msra.mxu0 %v37
  %1181 = vmatprep.subr.mxu0 0.0
  %1182 = vmatpush2.msra.mxu0 0.0
  %1183 = vmatprep.subr.mxu0 0.0
  %1184 = vmatpush2.msra.mxu0 0.0
  %1185 = vmatprep.subr.mxu0 0.0
  %1186 = vmatpush2.msra.mxu0 0.0
  %1187 = vmatprep.subr.mxu0 0.0
  %1188 = vmatpush2.msra.mxu0 0.0
  %1189 = vmatprep.subr.mxu0 0.0
  %1190 = vmatpush2.msra.mxu0 0.0
  %1191 = vmatprep.subr.mxu0 0.0
  %1192 = vmatpush2.msra.mxu0 0.0
  %1193 = vmatprep.subr.mxu0 0.0
  %1194 = vmatpush2.msra.mxu0 0.0
  %1195 = vmatprep.subr.mxu0 0.0
  %1196 = vmatpush2.msra.mxu0 0.0
  %1197 = vmatprep.subr.mxu0 0.0
  %1198 = vmatpush2.msra.mxu0 0.0
  %1199 = vmatprep.subr.mxu0 0.0
  %1200 = vmatpush2.msra.mxu0 0.0
  %1201 = vmatprep.subr.mxu0 0.0
  %1202 = vmatpush2.msra.mxu0 0.0
  %1203 = vmatprep.subr.mxu0 0.0
  %1204 = vmatpush2.msra.mxu0 0.0
  %1205 = vmatprep.subr.mxu0 0.0
  %1206 = vmatpush2.msra.mxu0 0.0
  %1207 = vmatprep.subr.mxu0 0.0
  %1208 = vmatpush2.msra.mxu0 0.0
  %1209 = vmatprep.subr.mxu0 0.0
  %1210 = vmatpush2.msra.mxu0 0.0
  %1211 = vmatprep.subr.mxu0 0.0
  %1212 = vmatpush2.msra.mxu0 0.0
  %1213 = vmatprep.mubr.f32.mxu0 0.0
  %1214 = vmatmul.mubr.f32.gmra.mxu0 %v1139
  %v1215 = vpop.f32.mrf.mxu0
  %v1216 = vadd.f32 0.0, %v1215
  %v1217 = vpop.f32.mrf.mxu0
  %v1218 = vadd.f32 0.0, %v1217
  %1219 = vdwg.mxu0
  %1220 = vmatprep.subr.mxu0 %v100
  %1221 = vmatpush1.msra.mxu0 %v99
  %1222 = vmatprep.subr.mxu0 %v96
  %1223 = vmatpush1.msra.mxu0 %v95
  %1224 = vmatprep.subr.mxu0 %v92
  %1225 = vmatpush1.msra.mxu0 %v91
  %1226 = vmatprep.subr.mxu0 %v88
  %1227 = vmatpush1.msra.mxu0 %v87
  %1228 = vmatprep.subr.mxu0 %v84
  %1229 = vmatpush1.msra.mxu0 %v83
  %1230 = vmatprep.subr.mxu0 %v80
  %1231 = vmatpush1.msra.mxu0 %v79
  %1232 = vmatprep.subr.mxu0 %v76
  %1233 = vmatpush1.msra.mxu0 %v75
  %1234 = vmatprep.subr.mxu0 %v72
  %1235 = vmatpush1.msra.mxu0 %v71
  %1236 = vmatprep.subr.mxu0 %v68
  %1237 = vmatpush1.msra.mxu0 %v67
  %1238 = vmatprep.subr.mxu0 %v64
  %1239 = vmatpush1.msra.mxu0 %v63
  %1240 = vmatprep.subr.mxu0 %v60
  %1241 = vmatpush1.msra.mxu0 %v59
  %1242 = vmatprep.subr.mxu0 %v56
  %1243 = vmatpush1.msra.mxu0 %v55
  %1244 = vmatprep.subr.mxu0 %v52
  %1245 = vmatpush1.msra.mxu0 %v51
  %1246 = vmatprep.subr.mxu0 %v48
  %1247 = vmatpush1.msra.mxu0 %v47
  %1248 = vmatprep.subr.mxu0 %v44
  %1249 = vmatpush1.msra.mxu0 %v43
  %1250 = vmatprep.subr.mxu0 %v40
  %1251 = vmatpush1.msra.mxu0 %v39
  %1252 = vmatprep.subr.mxu0 0.0
  %1253 = vmatpush2.msra.mxu0 0.0
  %1254 = vmatprep.subr.mxu0 0.0
  %1255 = vmatpush2.msra.mxu0 0.0
  %1256 = vmatprep.subr.mxu0 0.0
  %1257 = vmatpush2.msra.mxu0 0.0
  %1258 = vmatprep.subr.mxu0 0.0
  %1259 = vmatpush2.msra.mxu0 0.0
  %1260 = vmatprep.subr.mxu0 0.0
  %1261 = vmatpush2.msra.mxu0 0.0
  %1262 = vmatprep.subr.mxu0 0.0
  %1263 = vmatpush2.msra.mxu0 0.0
  %1264 = vmatprep.subr.mxu0 0.0
  %1265 = vmatpush2.msra.mxu0 0.0
  %1266 = vmatprep.subr.mxu0 0.0
  %1267 = vmatpush2.msra.mxu0 0.0
  %1268 = vmatprep.subr.mxu0 0.0
  %1269 = vmatpush2.msra.mxu0 0.0
  %1270 = vmatprep.subr.mxu0 0.0
  %1271 = vmatpush2.msra.mxu0 0.0
  %1272 = vmatprep.subr.mxu0 0.0
  %1273 = vmatpush2.msra.mxu0 0.0
  %1274 = vmatprep.subr.mxu0 0.0
  %1275 = vmatpush2.msra.mxu0 0.0
  %1276 = vmatprep.subr.mxu0 0.0
  %1277 = vmatpush2.msra.mxu0 0.0
  %1278 = vmatprep.subr.mxu0 0.0
  %1279 = vmatpush2.msra.mxu0 0.0
  %1280 = vmatprep.subr.mxu0 0.0
  %1281 = vmatpush2.msra.mxu0 0.0
  %1282 = vmatprep.subr.mxu0 0.0
  %1283 = vmatpush2.msra.mxu0 0.0
  %1284 = vmatprep.mubr.f32.mxu0 0.0
  %1285 = vmatmul.mubr.f32.gmra.mxu0 %v1139
  %v1286 = vpop.f32.mrf.mxu0
  %v1287 = vadd.f32 0.0, %v1286
  %v1288 = vpop.f32.mrf.mxu0
  %v1289 = vadd.f32 0.0, %v1288
  %1290 = vdwg.mxu0
  %v1291 = vadd.f32 %v1145, %v1216
  %v1292 = vadd.f32 %v1146, %v1218
  %v1293 = vadd.f32 %v1147, %v1287
  %v1294 = vadd.f32 %v1148, %v1289
  %v1295 = vxor.u32 %v1291, 2147483648
  %v1296 = vmul.f32 %v1295, 1.442695
  %v1297 = vpow.pop %v1296
  %v1298 = vadd.f32 %v1297, 1.0
  %v1299 = vrcp.pop %v1298
  %v1300 = vmul.f32 1.0, %v1299
  %v1301 = vxor.u32 %v1292, 2147483648
  %v1302 = vmul.f32 %v1301, 1.442695
  %v1303 = vpow.pop %v1302
  %v1304 = vadd.f32 %v1303, 1.0
  %v1305 = vrcp.pop %v1304
  %v1306 = vmul.f32 1.0, %v1305
  %v1307 = vtanh.pop %v1293
  %v1308 = vxor.u32 %v1294, 2147483648
  %v1309 = vmul.f32 %v1308, 1.442695
  %v1310 = vpow.pop %v1309
  %v1311 = vadd.f32 %v1310, 1.0
  %v1312 = vrcp.pop %v1311
  %v1313 = vmul.f32 1.0, %v1312
  %v1314 = vmul.f32 %v1306, %v1137
  %v1315 = vmul.f32 %v1300, %v1307
  %v1316 = vadd.f32 %v1314, %v1315
  %v1317 = vtanh.pop %v1316
  %v1318 = vmul.f32 %v1313, %v1317
  %s1319 = scalar_lea.vmem [#allocation3], 32
  %1320 = vst [vmem:[%s1319] sm:$0xff] %v1318
  %s1321 = smul.u32 5, 4
  %s1322 = smul.addr %s1321, 8
  %s1323 = scalar_lea.vmem [#allocation2], %s1322
  %v1324 = vld [vmem:[%s1323] sm:$0xff]
  %v1325 = vld [vmem:[%s1323 + $0x8] sm:$0xff]
  %v1326 = vld [vmem:[%s1323 + $0x10] sm:$0xff]
  %v1327 = vld [vmem:[%s1323 + $0x18] sm:$0xff]
  %1328 = vmatprep.subr.mxu0 %v98
  %1329 = vmatpush1.msra.mxu0 %v97
  %1330 = vmatprep.subr.mxu0 %v94
  %1331 = vmatpush1.msra.mxu0 %v93
  %1332 = vmatprep.subr.mxu0 %v90
  %1333 = vmatpush1.msra.mxu0 %v89
  %1334 = vmatprep.subr.mxu0 %v86
  %1335 = vmatpush1.msra.mxu0 %v85
  %1336 = vmatprep.subr.mxu0 %v82
  %1337 = vmatpush1.msra.mxu0 %v81
  %1338 = vmatprep.subr.mxu0 %v78
  %1339 = vmatpush1.msra.mxu0 %v77
  %1340 = vmatprep.subr.mxu0 %v74
  %1341 = vmatpush1.msra.mxu0 %v73
  %1342 = vmatprep.subr.mxu0 %v70
  %1343 = vmatpush1.msra.mxu0 %v69
  %1344 = vmatprep.subr.mxu0 %v66
  %1345 = vmatpush1.msra.mxu0 %v65
  %1346 = vmatprep.subr.mxu0 %v62
  %1347 = vmatpush1.msra.mxu0 %v61
  %1348 = vmatprep.subr.mxu0 %v58
  %1349 = vmatpush1.msra.mxu0 %v57
  %1350 = vmatprep.subr.mxu0 %v54
  %1351 = vmatpush1.msra.mxu0 %v53
  %1352 = vmatprep.subr.mxu0 %v50
  %1353 = vmatpush1.msra.mxu0 %v49
  %1354 = vmatprep.subr.mxu0 %v46
  %1355 = vmatpush1.msra.mxu0 %v45
  %1356 = vmatprep.subr.mxu0 %v42
  %1357 = vmatpush1.msra.mxu0 %v41
  %1358 = vmatprep.subr.mxu0 %v38
  %1359 = vmatpush1.msra.mxu0 %v37
  %1360 = vmatprep.subr.mxu0 0.0
  %1361 = vmatpush2.msra.mxu0 0.0
  %1362 = vmatprep.subr.mxu0 0.0
  %1363 = vmatpush2.msra.mxu0 0.0
  %1364 = vmatprep.subr.mxu0 0.0
  %1365 = vmatpush2.msra.mxu0 0.0
  %1366 = vmatprep.subr.mxu0 0.0
  %1367 = vmatpush2.msra.mxu0 0.0
  %1368 = vmatprep.subr.mxu0 0.0
  %1369 = vmatpush2.msra.mxu0 0.0
  %1370 = vmatprep.subr.mxu0 0.0
  %1371 = vmatpush2.msra.mxu0 0.0
  %1372 = vmatprep.subr.mxu0 0.0
  %1373 = vmatpush2.msra.mxu0 0.0
  %1374 = vmatprep.subr.mxu0 0.0
  %1375 = vmatpush2.msra.mxu0 0.0
  %1376 = vmatprep.subr.mxu0 0.0
  %1377 = vmatpush2.msra.mxu0 0.0
  %1378 = vmatprep.subr.mxu0 0.0
  %1379 = vmatpush2.msra.mxu0 0.0
  %1380 = vmatprep.subr.mxu0 0.0
  %1381 = vmatpush2.msra.mxu0 0.0
  %1382 = vmatprep.subr.mxu0 0.0
  %1383 = vmatpush2.msra.mxu0 0.0
  %1384 = vmatprep.subr.mxu0 0.0
  %1385 = vmatpush2.msra.mxu0 0.0
  %1386 = vmatprep.subr.mxu0 0.0
  %1387 = vmatpush2.msra.mxu0 0.0
  %1388 = vmatprep.subr.mxu0 0.0
  %1389 = vmatpush2.msra.mxu0 0.0
  %1390 = vmatprep.subr.mxu0 0.0
  %1391 = vmatpush2.msra.mxu0 0.0
  %1392 = vmatprep.mubr.f32.mxu0 0.0
  %1393 = vmatmul.mubr.f32.gmra.mxu0 %v1318
  %v1394 = vpop.f32.mrf.mxu0
  %v1395 = vadd.f32 0.0, %v1394
  %v1396 = vpop.f32.mrf.mxu0
  %v1397 = vadd.f32 0.0, %v1396
  %1398 = vdwg.mxu0
  %1399 = vmatprep.subr.mxu0 %v100
  %1400 = vmatpush1.msra.mxu0 %v99
  %1401 = vmatprep.subr.mxu0 %v96
  %1402 = vmatpush1.msra.mxu0 %v95
  %1403 = vmatprep.subr.mxu0 %v92
  %1404 = vmatpush1.msra.mxu0 %v91
  %1405 = vmatprep.subr.mxu0 %v88
  %1406 = vmatpush1.msra.mxu0 %v87
  %1407 = vmatprep.subr.mxu0 %v84
  %1408 = vmatpush1.msra.mxu0 %v83
  %1409 = vmatprep.subr.mxu0 %v80
  %1410 = vmatpush1.msra.mxu0 %v79
  %1411 = vmatprep.subr.mxu0 %v76
  %1412 = vmatpush1.msra.mxu0 %v75
  %1413 = vmatprep.subr.mxu0 %v72
  %1414 = vmatpush1.msra.mxu0 %v71
  %1415 = vmatprep.subr.mxu0 %v68
  %1416 = vmatpush1.msra.mxu0 %v67
  %1417 = vmatprep.subr.mxu0 %v64
  %1418 = vmatpush1.msra.mxu0 %v63
  %1419 = vmatprep.subr.mxu0 %v60
  %1420 = vmatpush1.msra.mxu0 %v59
  %1421 = vmatprep.subr.mxu0 %v56
  %1422 = vmatpush1.msra.mxu0 %v55
  %1423 = vmatprep.subr.mxu0 %v52
  %1424 = vmatpush1.msra.mxu0 %v51
  %1425 = vmatprep.subr.mxu0 %v48
  %1426 = vmatpush1.msra.mxu0 %v47
  %1427 = vmatprep.subr.mxu0 %v44
  %1428 = vmatpush1.msra.mxu0 %v43
  %1429 = vmatprep.subr.mxu0 %v40
  %1430 = vmatpush1.msra.mxu0 %v39
  %1431 = vmatprep.subr.mxu0 0.0
  %1432 = vmatpush2.msra.mxu0 0.0
  %1433 = vmatprep.subr.mxu0 0.0
  %1434 = vmatpush2.msra.mxu0 0.0
  %1435 = vmatprep.subr.mxu0 0.0
  %1436 = vmatpush2.msra.mxu0 0.0
  %1437 = vmatprep.subr.mxu0 0.0
  %1438 = vmatpush2.msra.mxu0 0.0
  %1439 = vmatprep.subr.mxu0 0.0
  %1440 = vmatpush2.msra.mxu0 0.0
  %1441 = vmatprep.subr.mxu0 0.0
  %1442 = vmatpush2.msra.mxu0 0.0
  %1443 = vmatprep.subr.mxu0 0.0
  %1444 = vmatpush2.msra.mxu0 0.0
  %1445 = vmatprep.subr.mxu0 0.0
  %1446 = vmatpush2.msra.mxu0 0.0
  %1447 = vmatprep.subr.mxu0 0.0
  %1448 = vmatpush2.msra.mxu0 0.0
  %1449 = vmatprep.subr.mxu0 0.0
  %1450 = vmatpush2.msra.mxu0 0.0
  %1451 = vmatprep.subr.mxu0 0.0
  %1452 = vmatpush2.msra.mxu0 0.0
  %1453 = vmatprep.subr.mxu0 0.0
  %1454 = vmatpush2.msra.mxu0 0.0
  %1455 = vmatprep.subr.mxu0 0.0
  %1456 = vmatpush2.msra.mxu0 0.0
  %1457 = vmatprep.subr.mxu0 0.0
  %1458 = vmatpush2.msra.mxu0 0.0
  %1459 = vmatprep.subr.mxu0 0.0
  %1460 = vmatpush2.msra.mxu0 0.0
  %1461 = vmatprep.subr.mxu0 0.0
  %1462 = vmatpush2.msra.mxu0 0.0
  %1463 = vmatprep.mubr.f32.mxu0 0.0
  %1464 = vmatmul.mubr.f32.gmra.mxu0 %v1318
  %v1465 = vpop.f32.mrf.mxu0
  %v1466 = vadd.f32 0.0, %v1465
  %v1467 = vpop.f32.mrf.mxu0
  %v1468 = vadd.f32 0.0, %v1467
  %1469 = vdwg.mxu0
  %v1470 = vadd.f32 %v1324, %v1395
  %v1471 = vadd.f32 %v1325, %v1397
  %v1472 = vadd.f32 %v1326, %v1466
  %v1473 = vadd.f32 %v1327, %v1468
  %v1474 = vxor.u32 %v1470, 2147483648
  %v1475 = vmul.f32 %v1474, 1.442695
  %v1476 = vpow.pop %v1475
  %v1477 = vadd.f32 %v1476, 1.0
  %v1478 = vrcp.pop %v1477
  %v1479 = vmul.f32 1.0, %v1478
  %v1480 = vxor.u32 %v1471, 2147483648
  %v1481 = vmul.f32 %v1480, 1.442695
  %v1482 = vpow.pop %v1481
  %v1483 = vadd.f32 %v1482, 1.0
  %v1484 = vrcp.pop %v1483
  %v1485 = vmul.f32 1.0, %v1484
  %v1486 = vtanh.pop %v1472
  %v1487 = vxor.u32 %v1473, 2147483648
  %v1488 = vmul.f32 %v1487, 1.442695
  %v1489 = vpow.pop %v1488
  %v1490 = vadd.f32 %v1489, 1.0
  %v1491 = vrcp.pop %v1490
  %v1492 = vmul.f32 1.0, %v1491
  %v1493 = vmul.f32 %v1485, %v1316
  %v1494 = vmul.f32 %v1479, %v1486
  %v1495 = vadd.f32 %v1493, %v1494
  %v1496 = vtanh.pop %v1495
  %v1497 = vmul.f32 %v1492, %v1496
  %s1498 = scalar_lea.vmem [#allocation3], 40
  %1499 = vst [vmem:[%s1498] sm:$0xff] %v1497
  %s1500 = smul.u32 6, 4
  %s1501 = smul.addr %s1500, 8
  %s1502 = scalar_lea.vmem [#allocation2], %s1501
  %v1503 = vld [vmem:[%s1502] sm:$0xff]
  %v1504 = vld [vmem:[%s1502 + $0x8] sm:$0xff]
  %v1505 = vld [vmem:[%s1502 + $0x10] sm:$0xff]
  %v1506 = vld [vmem:[%s1502 + $0x18] sm:$0xff]
  %1507 = vmatprep.subr.mxu0 %v98
  %1508 = vmatpush1.msra.mxu0 %v97
  %1509 = vmatprep.subr.mxu0 %v94
  %1510 = vmatpush1.msra.mxu0 %v93
  %1511 = vmatprep.subr.mxu0 %v90
  %1512 = vmatpush1.msra.mxu0 %v89
  %1513 = vmatprep.subr.mxu0 %v86
  %1514 = vmatpush1.msra.mxu0 %v85
  %1515 = vmatprep.subr.mxu0 %v82
  %1516 = vmatpush1.msra.mxu0 %v81
  %1517 = vmatprep.subr.mxu0 %v78
  %1518 = vmatpush1.msra.mxu0 %v77
  %1519 = vmatprep.subr.mxu0 %v74
  %1520 = vmatpush1.msra.mxu0 %v73
  %1521 = vmatprep.subr.mxu0 %v70
  %1522 = vmatpush1.msra.mxu0 %v69
  %1523 = vmatprep.subr.mxu0 %v66
  %1524 = vmatpush1.msra.mxu0 %v65
  %1525 = vmatprep.subr.mxu0 %v62
  %1526 = vmatpush1.msra.mxu0 %v61
  %1527 = vmatprep.subr.mxu0 %v58
  %1528 = vmatpush1.msra.mxu0 %v57
  %1529 = vmatprep.subr.mxu0 %v54
  %1530 = vmatpush1.msra.mxu0 %v53
  %1531 = vmatprep.subr.mxu0 %v50
  %1532 = vmatpush1.msra.mxu0 %v49
  %1533 = vmatprep.subr.mxu0 %v46
  %1534 = vmatpush1.msra.mxu0 %v45
  %1535 = vmatprep.subr.mxu0 %v42
  %1536 = vmatpush1.msra.mxu0 %v41
  %1537 = vmatprep.subr.mxu0 %v38
  %1538 = vmatpush1.msra.mxu0 %v37
  %1539 = vmatprep.subr.mxu0 0.0
  %1540 = vmatpush2.msra.mxu0 0.0
  %1541 = vmatprep.subr.mxu0 0.0
  %1542 = vmatpush2.msra.mxu0 0.0
  %1543 = vmatprep.subr.mxu0 0.0
  %1544 = vmatpush2.msra.mxu0 0.0
  %1545 = vmatprep.subr.mxu0 0.0
  %1546 = vmatpush2.msra.mxu0 0.0
  %1547 = vmatprep.subr.mxu0 0.0
  %1548 = vmatpush2.msra.mxu0 0.0
  %1549 = vmatprep.subr.mxu0 0.0
  %1550 = vmatpush2.msra.mxu0 0.0
  %1551 = vmatprep.subr.mxu0 0.0
  %1552 = vmatpush2.msra.mxu0 0.0
  %1553 = vmatprep.subr.mxu0 0.0
  %1554 = vmatpush2.msra.mxu0 0.0
  %1555 = vmatprep.subr.mxu0 0.0
  %1556 = vmatpush2.msra.mxu0 0.0
  %1557 = vmatprep.subr.mxu0 0.0
  %1558 = vmatpush2.msra.mxu0 0.0
  %1559 = vmatprep.subr.mxu0 0.0
  %1560 = vmatpush2.msra.mxu0 0.0
  %1561 = vmatprep.subr.mxu0 0.0
  %1562 = vmatpush2.msra.mxu0 0.0
  %1563 = vmatprep.subr.mxu0 0.0
  %1564 = vmatpush2.msra.mxu0 0.0
  %1565 = vmatprep.subr.mxu0 0.0
  %1566 = vmatpush2.msra.mxu0 0.0
  %1567 = vmatprep.subr.mxu0 0.0
  %1568 = vmatpush2.msra.mxu0 0.0
  %1569 = vmatprep.subr.mxu0 0.0
  %1570 = vmatpush2.msra.mxu0 0.0
  %1571 = vmatprep.mubr.f32.mxu0 0.0
  %1572 = vmatmul.mubr.f32.gmra.mxu0 %v1497
  %v1573 = vpop.f32.mrf.mxu0
  %v1574 = vadd.f32 0.0, %v1573
  %v1575 = vpop.f32.mrf.mxu0
  %v1576 = vadd.f32 0.0, %v1575
  %1577 = vdwg.mxu0
  %1578 = vmatprep.subr.mxu0 %v100
  %1579 = vmatpush1.msra.mxu0 %v99
  %1580 = vmatprep.subr.mxu0 %v96
  %1581 = vmatpush1.msra.mxu0 %v95
  %1582 = vmatprep.subr.mxu0 %v92
  %1583 = vmatpush1.msra.mxu0 %v91
  %1584 = vmatprep.subr.mxu0 %v88
  %1585 = vmatpush1.msra.mxu0 %v87
  %1586 = vmatprep.subr.mxu0 %v84
  %1587 = vmatpush1.msra.mxu0 %v83
  %1588 = vmatprep.subr.mxu0 %v80
  %1589 = vmatpush1.msra.mxu0 %v79
  %1590 = vmatprep.subr.mxu0 %v76
  %1591 = vmatpush1.msra.mxu0 %v75
  %1592 = vmatprep.subr.mxu0 %v72
  %1593 = vmatpush1.msra.mxu0 %v71
  %1594 = vmatprep.subr.mxu0 %v68
  %1595 = vmatpush1.msra.mxu0 %v67
  %1596 = vmatprep.subr.mxu0 %v64
  %1597 = vmatpush1.msra.mxu0 %v63
  %1598 = vmatprep.subr.mxu0 %v60
  %1599 = vmatpush1.msra.mxu0 %v59
  %1600 = vmatprep.subr.mxu0 %v56
  %1601 = vmatpush1.msra.mxu0 %v55
  %1602 = vmatprep.subr.mxu0 %v52
  %1603 = vmatpush1.msra.mxu0 %v51
  %1604 = vmatprep.subr.mxu0 %v48
  %1605 = vmatpush1.msra.mxu0 %v47
  %1606 = vmatprep.subr.mxu0 %v44
  %1607 = vmatpush1.msra.mxu0 %v43
  %1608 = vmatprep.subr.mxu0 %v40
  %1609 = vmatpush1.msra.mxu0 %v39
  %1610 = vmatprep.subr.mxu0 0.0
  %1611 = vmatpush2.msra.mxu0 0.0
  %1612 = vmatprep.subr.mxu0 0.0
  %1613 = vmatpush2.msra.mxu0 0.0
  %1614 = vmatprep.subr.mxu0 0.0
  %1615 = vmatpush2.msra.mxu0 0.0
  %1616 = vmatprep.subr.mxu0 0.0
  %1617 = vmatpush2.msra.mxu0 0.0
  %1618 = vmatprep.subr.mxu0 0.0
  %1619 = vmatpush2.msra.mxu0 0.0
  %1620 = vmatprep.subr.mxu0 0.0
  %1621 = vmatpush2.msra.mxu0 0.0
  %1622 = vmatprep.subr.mxu0 0.0
  %1623 = vmatpush2.msra.mxu0 0.0
  %1624 = vmatprep.subr.mxu0 0.0
  %1625 = vmatpush2.msra.mxu0 0.0
  %1626 = vmatprep.subr.mxu0 0.0
  %1627 = vmatpush2.msra.mxu0 0.0
  %1628 = vmatprep.subr.mxu0 0.0
  %1629 = vmatpush2.msra.mxu0 0.0
  %1630 = vmatprep.subr.mxu0 0.0
  %1631 = vmatpush2.msra.mxu0 0.0
  %1632 = vmatprep.subr.mxu0 0.0
  %1633 = vmatpush2.msra.mxu0 0.0
  %1634 = vmatprep.subr.mxu0 0.0
  %1635 = vmatpush2.msra.mxu0 0.0
  %1636 = vmatprep.subr.mxu0 0.0
  %1637 = vmatpush2.msra.mxu0 0.0
  %1638 = vmatprep.subr.mxu0 0.0
  %1639 = vmatpush2.msra.mxu0 0.0
  %1640 = vmatprep.subr.mxu0 0.0
  %1641 = vmatpush2.msra.mxu0 0.0
  %1642 = vmatprep.mubr.f32.mxu0 0.0
  %1643 = vmatmul.mubr.f32.gmra.mxu0 %v1497
  %v1644 = vpop.f32.mrf.mxu0
  %v1645 = vadd.f32 0.0, %v1644
  %v1646 = vpop.f32.mrf.mxu0
  %v1647 = vadd.f32 0.0, %v1646
  %1648 = vdwg.mxu0
  %v1649 = vadd.f32 %v1503, %v1574
  %v1650 = vadd.f32 %v1504, %v1576
  %v1651 = vadd.f32 %v1505, %v1645
  %v1652 = vadd.f32 %v1506, %v1647
  %v1653 = vxor.u32 %v1649, 2147483648
  %v1654 = vmul.f32 %v1653, 1.442695
  %v1655 = vpow.pop %v1654
  %v1656 = vadd.f32 %v1655, 1.0
  %v1657 = vrcp.pop %v1656
  %v1658 = vmul.f32 1.0, %v1657
  %v1659 = vxor.u32 %v1650, 2147483648
  %v1660 = vmul.f32 %v1659, 1.442695
  %v1661 = vpow.pop %v1660
  %v1662 = vadd.f32 %v1661, 1.0
  %v1663 = vrcp.pop %v1662
  %v1664 = vmul.f32 1.0, %v1663
  %v1665 = vtanh.pop %v1651
  %v1666 = vxor.u32 %v1652, 2147483648
  %v1667 = vmul.f32 %v1666, 1.442695
  %v1668 = vpow.pop %v1667
  %v1669 = vadd.f32 %v1668, 1.0
  %v1670 = vrcp.pop %v1669
  %v1671 = vmul.f32 1.0, %v1670
  %v1672 = vmul.f32 %v1664, %v1495
  %v1673 = vmul.f32 %v1658, %v1665
  %v1674 = vadd.f32 %v1672, %v1673
  %v1675 = vtanh.pop %v1674
  %v1676 = vmul.f32 %v1671, %v1675
  %s1677 = scalar_lea.vmem [#allocation3], 48
  %1678 = vst [vmem:[%s1677] sm:$0xff] %v1676
  %s1679 = smul.u32 7, 4
  %s1680 = smul.addr %s1679, 8
  %s1681 = scalar_lea.vmem [#allocation2], %s1680
  %v1682 = vld [vmem:[%s1681] sm:$0xff]
  %v1683 = vld [vmem:[%s1681 + $0x8] sm:$0xff]
  %v1684 = vld [vmem:[%s1681 + $0x10] sm:$0xff]
  %v1685 = vld [vmem:[%s1681 + $0x18] sm:$0xff]
  %1686 = vmatprep.subr.mxu0 %v98
  %1687 = vmatpush1.msra.mxu0 %v97
  %1688 = vmatprep.subr.mxu0 %v94
  %1689 = vmatpush1.msra.mxu0 %v93
  %1690 = vmatprep.subr.mxu0 %v90
  %1691 = vmatpush1.msra.mxu0 %v89
  %1692 = vmatprep.subr.mxu0 %v86
  %1693 = vmatpush1.msra.mxu0 %v85
  %1694 = vmatprep.subr.mxu0 %v82
  %1695 = vmatpush1.msra.mxu0 %v81
  %1696 = vmatprep.subr.mxu0 %v78
  %1697 = vmatpush1.msra.mxu0 %v77
  %1698 = vmatprep.subr.mxu0 %v74
  %1699 = vmatpush1.msra.mxu0 %v73
  %1700 = vmatprep.subr.mxu0 %v70
  %1701 = vmatpush1.msra.mxu0 %v69
  %1702 = vmatprep.subr.mxu0 %v66
  %1703 = vmatpush1.msra.mxu0 %v65
  %1704 = vmatprep.subr.mxu0 %v62
  %1705 = vmatpush1.msra.mxu0 %v61
  %1706 = vmatprep.subr.mxu0 %v58
  %1707 = vmatpush1.msra.mxu0 %v57
  %1708 = vmatprep.subr.mxu0 %v54
  %1709 = vmatpush1.msra.mxu0 %v53
  %1710 = vmatprep.subr.mxu0 %v50
  %1711 = vmatpush1.msra.mxu0 %v49
  %1712 = vmatprep.subr.mxu0 %v46
  %1713 = vmatpush1.msra.mxu0 %v45
  %1714 = vmatprep.subr.mxu0 %v42
  %1715 = vmatpush1.msra.mxu0 %v41
  %1716 = vmatprep.subr.mxu0 %v38
  %1717 = vmatpush1.msra.mxu0 %v37
  %1718 = vmatprep.subr.mxu0 0.0
  %1719 = vmatpush2.msra.mxu0 0.0
  %1720 = vmatprep.subr.mxu0 0.0
  %1721 = vmatpush2.msra.mxu0 0.0
  %1722 = vmatprep.subr.mxu0 0.0
  %1723 = vmatpush2.msra.mxu0 0.0
  %1724 = vmatprep.subr.mxu0 0.0
  %1725 = vmatpush2.msra.mxu0 0.0
  %1726 = vmatprep.subr.mxu0 0.0
  %1727 = vmatpush2.msra.mxu0 0.0
  %1728 = vmatprep.subr.mxu0 0.0
  %1729 = vmatpush2.msra.mxu0 0.0
  %1730 = vmatprep.subr.mxu0 0.0
  %1731 = vmatpush2.msra.mxu0 0.0
  %1732 = vmatprep.subr.mxu0 0.0
  %1733 = vmatpush2.msra.mxu0 0.0
  %1734 = vmatprep.subr.mxu0 0.0
  %1735 = vmatpush2.msra.mxu0 0.0
  %1736 = vmatprep.subr.mxu0 0.0
  %1737 = vmatpush2.msra.mxu0 0.0
  %1738 = vmatprep.subr.mxu0 0.0
  %1739 = vmatpush2.msra.mxu0 0.0
  %1740 = vmatprep.subr.mxu0 0.0
  %1741 = vmatpush2.msra.mxu0 0.0
  %1742 = vmatprep.subr.mxu0 0.0
  %1743 = vmatpush2.msra.mxu0 0.0
  %1744 = vmatprep.subr.mxu0 0.0
  %1745 = vmatpush2.msra.mxu0 0.0
  %1746 = vmatprep.subr.mxu0 0.0
  %1747 = vmatpush2.msra.mxu0 0.0
  %1748 = vmatprep.subr.mxu0 0.0
  %1749 = vmatpush2.msra.mxu0 0.0
  %1750 = vmatprep.mubr.f32.mxu0 0.0
  %1751 = vmatmul.mubr.f32.gmra.mxu0 %v1676
  %v1752 = vpop.f32.mrf.mxu0
  %v1753 = vadd.f32 0.0, %v1752
  %v1754 = vpop.f32.mrf.mxu0
  %v1755 = vadd.f32 0.0, %v1754
  %1756 = vdwg.mxu0
  %1757 = vmatprep.subr.mxu0 %v100
  %1758 = vmatpush1.msra.mxu0 %v99
  %1759 = vmatprep.subr.mxu0 %v96
  %1760 = vmatpush1.msra.mxu0 %v95
  %1761 = vmatprep.subr.mxu0 %v92
  %1762 = vmatpush1.msra.mxu0 %v91
  %1763 = vmatprep.subr.mxu0 %v88
  %1764 = vmatpush1.msra.mxu0 %v87
  %1765 = vmatprep.subr.mxu0 %v84
  %1766 = vmatpush1.msra.mxu0 %v83
  %1767 = vmatprep.subr.mxu0 %v80
  %1768 = vmatpush1.msra.mxu0 %v79
  %1769 = vmatprep.subr.mxu0 %v76
  %1770 = vmatpush1.msra.mxu0 %v75
  %1771 = vmatprep.subr.mxu0 %v72
  %1772 = vmatpush1.msra.mxu0 %v71
  %1773 = vmatprep.subr.mxu0 %v68
  %1774 = vmatpush1.msra.mxu0 %v67
  %1775 = vmatprep.subr.mxu0 %v64
  %1776 = vmatpush1.msra.mxu0 %v63
  %1777 = vmatprep.subr.mxu0 %v60
  %1778 = vmatpush1.msra.mxu0 %v59
  %1779 = vmatprep.subr.mxu0 %v56
  %1780 = vmatpush1.msra.mxu0 %v55
  %1781 = vmatprep.subr.mxu0 %v52
  %1782 = vmatpush1.msra.mxu0 %v51
  %1783 = vmatprep.subr.mxu0 %v48
  %1784 = vmatpush1.msra.mxu0 %v47
  %1785 = vmatprep.subr.mxu0 %v44
  %1786 = vmatpush1.msra.mxu0 %v43
  %1787 = vmatprep.subr.mxu0 %v40
  %1788 = vmatpush1.msra.mxu0 %v39
  %1789 = vmatprep.subr.mxu0 0.0
  %1790 = vmatpush2.msra.mxu0 0.0
  %1791 = vmatprep.subr.mxu0 0.0
  %1792 = vmatpush2.msra.mxu0 0.0
  %1793 = vmatprep.subr.mxu0 0.0
  %1794 = vmatpush2.msra.mxu0 0.0
  %1795 = vmatprep.subr.mxu0 0.0
  %1796 = vmatpush2.msra.mxu0 0.0
  %1797 = vmatprep.subr.mxu0 0.0
  %1798 = vmatpush2.msra.mxu0 0.0
  %1799 = vmatprep.subr.mxu0 0.0
  %1800 = vmatpush2.msra.mxu0 0.0
  %1801 = vmatprep.subr.mxu0 0.0
  %1802 = vmatpush2.msra.mxu0 0.0
  %1803 = vmatprep.subr.mxu0 0.0
  %1804 = vmatpush2.msra.mxu0 0.0
  %1805 = vmatprep.subr.mxu0 0.0
  %1806 = vmatpush2.msra.mxu0 0.0
  %1807 = vmatprep.subr.mxu0 0.0
  %1808 = vmatpush2.msra.mxu0 0.0
  %1809 = vmatprep.subr.mxu0 0.0
  %1810 = vmatpush2.msra.mxu0 0.0
  %1811 = vmatprep.subr.mxu0 0.0
  %1812 = vmatpush2.msra.mxu0 0.0
  %1813 = vmatprep.subr.mxu0 0.0
  %1814 = vmatpush2.msra.mxu0 0.0
  %1815 = vmatprep.subr.mxu0 0.0
  %1816 = vmatpush2.msra.mxu0 0.0
  %1817 = vmatprep.subr.mxu0 0.0
  %1818 = vmatpush2.msra.mxu0 0.0
  %1819 = vmatprep.subr.mxu0 0.0
  %1820 = vmatpush2.msra.mxu0 0.0
  %1821 = vmatprep.mubr.f32.mxu0 0.0
  %1822 = vmatmul.mubr.f32.gmra.mxu0 %v1676
  %v1823 = vpop.f32.mrf.mxu0
  %v1824 = vadd.f32 0.0, %v1823
  %v1825 = vpop.f32.mrf.mxu0
  %v1826 = vadd.f32 0.0, %v1825
  %1827 = vdwg.mxu0
  %v1828 = vadd.f32 %v1682, %v1753
  %v1829 = vadd.f32 %v1683, %v1755
  %v1830 = vadd.f32 %v1684, %v1824
  %v1831 = vadd.f32 %v1685, %v1826
  %v1832 = vxor.u32 %v1828, 2147483648
  %v1833 = vmul.f32 %v1832, 1.442695
  %v1834 = vpow.pop %v1833
  %v1835 = vadd.f32 %v1834, 1.0
  %v1836 = vrcp.pop %v1835
  %v1837 = vmul.f32 1.0, %v1836
  %v1838 = vxor.u32 %v1829, 2147483648
  %v1839 = vmul.f32 %v1838, 1.442695
  %v1840 = vpow.pop %v1839
  %v1841 = vadd.f32 %v1840, 1.0
  %v1842 = vrcp.pop %v1841
  %v1843 = vmul.f32 1.0, %v1842
  %v1844 = vtanh.pop %v1830
  %v1845 = vxor.u32 %v1831, 2147483648
  %v1846 = vmul.f32 %v1845, 1.442695
  %v1847 = vpow.pop %v1846
  %v1848 = vadd.f32 %v1847, 1.0
  %v1849 = vrcp.pop %v1848
  %v1850 = vmul.f32 1.0, %v1849
  %v1851 = vmul.f32 %v1843, %v1674
  %v1852 = vmul.f32 %v1837, %v1844
  %v1853 = vadd.f32 %v1851, %v1852
  %v1854 = vtanh.pop %v1853
  %v1855 = vmul.f32 %v1850, %v1854
  %s1856 = scalar_lea.vmem [#allocation3], 56
  %1857 = vst [vmem:[%s1856] sm:$0xff] %v1855
  %v1858 = vld [vmem:[%s4] sm:$0xff]
  %v1859 = vld [vmem:[%s4 + $0x8] sm:$0xff]
  %v1860 = vld [vmem:[%s4 + $0x10] sm:$0xff]
  %v1861 = vld [vmem:[%s4 + $0x18] sm:$0xff]
  %v1862 = vld [vmem:[%s4 + $0x20] sm:$0xff]
  %v1863 = vld [vmem:[%s4 + $0x28] sm:$0xff]
  %v1864 = vld [vmem:[%s4 + $0x30] sm:$0xff]
  %v1865 = vld [vmem:[%s4 + $0x38] sm:$0xff]
  %v1866 = vld [vmem:[%s4 + $0x40] sm:$0xff]
  %v1867 = vld [vmem:[%s4 + $0x48] sm:$0xff]
  %v1868 = vld [vmem:[%s4 + $0x50] sm:$0xff]
  %v1869 = vld [vmem:[%s4 + $0x58] sm:$0xff]
  %v1870 = vld [vmem:[%s4 + $0x60] sm:$0xff]
  %v1871 = vld [vmem:[%s4 + $0x68] sm:$0xff]
  %v1872 = vld [vmem:[%s4 + $0x70] sm:$0xff]
  %v1873 = vld [vmem:[%s4 + $0x78] sm:$0xff]
  %v1874 = vld [vmem:[%s4 + $0x80] sm:$0xff]
  %v1875 = vld [vmem:[%s4 + $0x88] sm:$0xff]
  %v1876 = vld [vmem:[%s4 + $0x90] sm:$0xff]
  %v1877 = vld [vmem:[%s4 + $0x98] sm:$0xff]
  %v1878 = vld [vmem:[%s4 + $0xa0] sm:$0xff]
  %v1879 = vld [vmem:[%s4 + $0xa8] sm:$0xff]
  %v1880 = vld [vmem:[%s4 + $0xb0] sm:$0xff]
  %v1881 = vld [vmem:[%s4 + $0xb8] sm:$0xff]
  %v1882 = vld [vmem:[%s4 + $0xc0] sm:$0xff]
  %v1883 = vld [vmem:[%s4 + $0xc8] sm:$0xff]
  %v1884 = vld [vmem:[%s4 + $0xd0] sm:$0xff]
  %v1885 = vld [vmem:[%s4 + $0xd8] sm:$0xff]
  %v1886 = vld [vmem:[%s4 + $0xe0] sm:$0xff]
  %v1887 = vld [vmem:[%s4 + $0xe8] sm:$0xff]
  %v1888 = vld [vmem:[%s4 + $0xf0] sm:$0xff]
  %v1889 = vld [vmem:[%s4 + $0xf8] sm:$0xff]
  %v1890 = vld [vmem:[%s4 + $0x100] sm:$0xff]
  %v1891 = vld [vmem:[%s4 + $0x108] sm:$0xff]
  %v1892 = vld [vmem:[%s4 + $0x110] sm:$0xff]
  %v1893 = vld [vmem:[%s4 + $0x118] sm:$0xff]
  %v1894 = vld [vmem:[%s4 + $0x120] sm:$0xff]
  %v1895 = vld [vmem:[%s4 + $0x128] sm:$0xff]
  %v1896 = vld [vmem:[%s4 + $0x130] sm:$0xff]
  %v1897 = vld [vmem:[%s4 + $0x138] sm:$0xff]
  %v1898 = vld [vmem:[%s4 + $0x140] sm:$0xff]
  %v1899 = vld [vmem:[%s4 + $0x148] sm:$0xff]
  %v1900 = vld [vmem:[%s4 + $0x150] sm:$0xff]
  %v1901 = vld [vmem:[%s4 + $0x158] sm:$0xff]
  %v1902 = vld [vmem:[%s4 + $0x160] sm:$0xff]
  %v1903 = vld [vmem:[%s4 + $0x168] sm:$0xff]
  %v1904 = vld [vmem:[%s4 + $0x170] sm:$0xff]
  %v1905 = vld [vmem:[%s4 + $0x178] sm:$0xff]
  %v1906 = vld [vmem:[%s4 + $0x180] sm:$0xff]
  %v1907 = vld [vmem:[%s4 + $0x188] sm:$0xff]
  %v1908 = vld [vmem:[%s4 + $0x190] sm:$0xff]
  %v1909 = vld [vmem:[%s4 + $0x198] sm:$0xff]
  %v1910 = vld [vmem:[%s4 + $0x1a0] sm:$0xff]
  %v1911 = vld [vmem:[%s4 + $0x1a8] sm:$0xff]
  %v1912 = vld [vmem:[%s4 + $0x1b0] sm:$0xff]
  %v1913 = vld [vmem:[%s4 + $0x1b8] sm:$0xff]
  %v1914 = vld [vmem:[%s4 + $0x1c0] sm:$0xff]
  %v1915 = vld [vmem:[%s4 + $0x1c8] sm:$0xff]
  %v1916 = vld [vmem:[%s4 + $0x1d0] sm:$0xff]
  %v1917 = vld [vmem:[%s4 + $0x1d8] sm:$0xff]
  %v1918 = vld [vmem:[%s4 + $0x1e0] sm:$0xff]
  %v1919 = vld [vmem:[%s4 + $0x1e8] sm:$0xff]
  %v1920 = vld [vmem:[%s4 + $0x1f0] sm:$0xff]
  %v1921 = vld [vmem:[%s4 + $0x1f8] sm:$0xff]
  %v1922 = vld [vmem:[%s5] sm:$0xff]
  %v1923 = vld [vmem:[%s5 + $0x8] sm:$0xff]
  %v1924 = vld [vmem:[%s5 + $0x10] sm:$0xff]
  %v1925 = vld [vmem:[%s5 + $0x18] sm:$0xff]
  %v1926 = vld [vmem:[%s5 + $0x20] sm:$0xff]
  %v1927 = vld [vmem:[%s5 + $0x28] sm:$0xff]
  %v1928 = vld [vmem:[%s5 + $0x30] sm:$0xff]
  %v1929 = vld [vmem:[%s5 + $0x38] sm:$0xff]
  %v1930 = vld [vmem:[%s5 + $0x40] sm:$0xff]
  %v1931 = vld [vmem:[%s5 + $0x48] sm:$0xff]
  %v1932 = vld [vmem:[%s5 + $0x50] sm:$0xff]
  %v1933 = vld [vmem:[%s5 + $0x58] sm:$0xff]
  %v1934 = vld [vmem:[%s5 + $0x60] sm:$0xff]
  %v1935 = vld [vmem:[%s5 + $0x68] sm:$0xff]
  %v1936 = vld [vmem:[%s5 + $0x70] sm:$0xff]
  %v1937 = vld [vmem:[%s5 + $0x78] sm:$0xff]
  %v1938 = vld [vmem:[%s5 + $0x80] sm:$0xff]
  %v1939 = vld [vmem:[%s5 + $0x88] sm:$0xff]
  %v1940 = vld [vmem:[%s5 + $0x90] sm:$0xff]
  %v1941 = vld [vmem:[%s5 + $0x98] sm:$0xff]
  %v1942 = vld [vmem:[%s5 + $0xa0] sm:$0xff]
  %v1943 = vld [vmem:[%s5 + $0xa8] sm:$0xff]
  %v1944 = vld [vmem:[%s5 + $0xb0] sm:$0xff]
  %v1945 = vld [vmem:[%s5 + $0xb8] sm:$0xff]
  %v1946 = vld [vmem:[%s5 + $0xc0] sm:$0xff]
  %v1947 = vld [vmem:[%s5 + $0xc8] sm:$0xff]
  %v1948 = vld [vmem:[%s5 + $0xd0] sm:$0xff]
  %v1949 = vld [vmem:[%s5 + $0xd8] sm:$0xff]
  %v1950 = vld [vmem:[%s5 + $0xe0] sm:$0xff]
  %v1951 = vld [vmem:[%s5 + $0xe8] sm:$0xff]
  %v1952 = vld [vmem:[%s5 + $0xf0] sm:$0xff]
  %v1953 = vld [vmem:[%s5 + $0xf8] sm:$0xff]
  %v1954 = vld [vmem:[%s5 + $0x100] sm:$0xff]
  %v1955 = vld [vmem:[%s5 + $0x108] sm:$0xff]
  %v1956 = vld [vmem:[%s5 + $0x110] sm:$0xff]
  %v1957 = vld [vmem:[%s5 + $0x118] sm:$0xff]
  %v1958 = vld [vmem:[%s5 + $0x120] sm:$0xff]
  %v1959 = vld [vmem:[%s5 + $0x128] sm:$0xff]
  %v1960 = vld [vmem:[%s5 + $0x130] sm:$0xff]
  %v1961 = vld [vmem:[%s5 + $0x138] sm:$0xff]
  %v1962 = vld [vmem:[%s5 + $0x140] sm:$0xff]
  %v1963 = vld [vmem:[%s5 + $0x148] sm:$0xff]
  %v1964 = vld [vmem:[%s5 + $0x150] sm:$0xff]
  %v1965 = vld [vmem:[%s5 + $0x158] sm:$0xff]
  %v1966 = vld [vmem:[%s5 + $0x160] sm:$0xff]
  %v1967 = vld [vmem:[%s5 + $0x168] sm:$0xff]
  %v1968 = vld [vmem:[%s5 + $0x170] sm:$0xff]
  %v1969 = vld [vmem:[%s5 + $0x178] sm:$0xff]
  %v1970 = vld [vmem:[%s5 + $0x180] sm:$0xff]
  %v1971 = vld [vmem:[%s5 + $0x188] sm:$0xff]
  %v1972 = vld [vmem:[%s5 + $0x190] sm:$0xff]
  %v1973 = vld [vmem:[%s5 + $0x198] sm:$0xff]
  %v1974 = vld [vmem:[%s5 + $0x1a0] sm:$0xff]
  %v1975 = vld [vmem:[%s5 + $0x1a8] sm:$0xff]
  %v1976 = vld [vmem:[%s5 + $0x1b0] sm:$0xff]
  %v1977 = vld [vmem:[%s5 + $0x1b8] sm:$0xff]
  %v1978 = vld [vmem:[%s5 + $0x1c0] sm:$0xff]
  %v1979 = vld [vmem:[%s5 + $0x1c8] sm:$0xff]
  %v1980 = vld [vmem:[%s5 + $0x1d0] sm:$0xff]
  %v1981 = vld [vmem:[%s5 + $0x1d8] sm:$0xff]
  %v1982 = vld [vmem:[%s5 + $0x1e0] sm:$0xff]
  %v1983 = vld [vmem:[%s5 + $0x1e8] sm:$0xff]
  %v1984 = vld [vmem:[%s5 + $0x1f0] sm:$0xff]
  %v1985 = vld [vmem:[%s5 + $0x1f8] sm:$0xff]
  %v1986 = vld [vmem:[%s6] sm:$0xf]
  %v1987 = vld [vmem:[#allocation3] sm:$0xff]
  %v1988 = vld [vmem:[#allocation3 + $0x8] sm:$0xff]
  %v1989 = vld [vmem:[#allocation3 + $0x10] sm:$0xff]
  %v1990 = vld [vmem:[#allocation3 + $0x18] sm:$0xff]
  %v1991 = vld [vmem:[#allocation3 + $0x20] sm:$0xff]
  %v1992 = vld [vmem:[#allocation3 + $0x28] sm:$0xff]
  %v1993 = vld [vmem:[#allocation3 + $0x30] sm:$0xff]
  %v1994 = vld [vmem:[#allocation3 + $0x38] sm:$0xff]
  %v1996 = vlaneseq
  %v1997 = vshrl.u32 %v1996, 7
  %v1998 = vsub.s32 0, %v1997
  %v1999 = vrot.slane %v1986, %v1998
  %v2000 = vlaneseq
  %v2001 = vshrl.u32 %v2000, 7
  %v2002 = vsub.s32 1, %v2001
  %v2003 = vrot.slane %v1986, %v2002
  %v2004 = vlaneseq
  %v2005 = vshrl.u32 %v2004, 7
  %v2006 = vsub.s32 2, %v2005
  %v2007 = vrot.slane %v1986, %v2006
  %v2008 = vlaneseq
  %v2009 = vshrl.u32 %v2008, 7
  %v2010 = vsub.s32 3, %v2009
  %v2011 = vrot.slane %v1986, %v2010
  %2016 = vmatprep.subr.mxu0 %v1919
  %2017 = vmatpush1.msra.mxu0 %v1918
  %2018 = vmatprep.subr.mxu0 %v1915
  %2019 = vmatpush1.msra.mxu0 %v1914
  %2020 = vmatprep.subr.mxu0 %v1911
  %2021 = vmatpush1.msra.mxu0 %v1910
  %2022 = vmatprep.subr.mxu0 %v1907
  %2023 = vmatpush1.msra.mxu0 %v1906
  %2024 = vmatprep.subr.mxu0 %v1903
  %2025 = vmatpush1.msra.mxu0 %v1902
  %2026 = vmatprep.subr.mxu0 %v1899
  %2027 = vmatpush1.msra.mxu0 %v1898
  %2028 = vmatprep.subr.mxu0 %v1895
  %2029 = vmatpush1.msra.mxu0 %v1894
  %2030 = vmatprep.subr.mxu0 %v1891
  %2031 = vmatpush1.msra.mxu0 %v1890
  %2032 = vmatprep.subr.mxu0 %v1887
  %2033 = vmatpush1.msra.mxu0 %v1886
  %2034 = vmatprep.subr.mxu0 %v1883
  %2035 = vmatpush1.msra.mxu0 %v1882
  %2036 = vmatprep.subr.mxu0 %v1879
  %2037 = vmatpush1.msra.mxu0 %v1878
  %2038 = vmatprep.subr.mxu0 %v1875
  %2039 = vmatpush1.msra.mxu0 %v1874
  %2040 = vmatprep.subr.mxu0 %v1871
  %2041 = vmatpush1.msra.mxu0 %v1870
  %2042 = vmatprep.subr.mxu0 %v1867
  %2043 = vmatpush1.msra.mxu0 %v1866
  %2044 = vmatprep.subr.mxu0 %v1863
  %2045 = vmatpush1.msra.mxu0 %v1862
  %2046 = vmatprep.subr.mxu0 %v1859
  %2047 = vmatpush1.msra.mxu0 %v1858
  %2048 = vmatprep.subr.mxu0 0.0
  %2049 = vmatpush2.msra.mxu0 0.0
  %2050 = vmatprep.subr.mxu0 0.0
  %2051 = vmatpush2.msra.mxu0 0.0
  %2052 = vmatprep.subr.mxu0 0.0
  %2053 = vmatpush2.msra.mxu0 0.0
  %2054 = vmatprep.subr.mxu0 0.0
  %2055 = vmatpush2.msra.mxu0 0.0
  %2056 = vmatprep.subr.mxu0 0.0
  %2057 = vmatpush2.msra.mxu0 0.0
  %2058 = vmatprep.subr.mxu0 0.0
  %2059 = vmatpush2.msra.mxu0 0.0
  %2060 = vmatprep.subr.mxu0 0.0
  %2061 = vmatpush2.msra.mxu0 0.0
  %2062 = vmatprep.subr.mxu0 0.0
  %2063 = vmatpush2.msra.mxu0 0.0
  %2064 = vmatprep.subr.mxu0 0.0
  %2065 = vmatpush2.msra.mxu0 0.0
  %2066 = vmatprep.subr.mxu0 0.0
  %2067 = vmatpush2.msra.mxu0 0.0
  %2068 = vmatprep.subr.mxu0 0.0
  %2069 = vmatpush2.msra.mxu0 0.0
  %2070 = vmatprep.subr.mxu0 0.0
  %2071 = vmatpush2.msra.mxu0 0.0
  %2072 = vmatprep.subr.mxu0 0.0
  %2073 = vmatpush2.msra.mxu0 0.0
  %2074 = vmatprep.subr.mxu0 0.0
  %2075 = vmatpush2.msra.mxu0 0.0
  %2076 = vmatprep.subr.mxu0 0.0
  %2077 = vmatpush2.msra.mxu0 0.0
  %2078 = vmatprep.subr.mxu0 0.0
  %2079 = vmatpush2.msra.mxu0 0.0
  %2080 = vmatprep.mubr.f32.mxu0 0.0
  %2081 = vmatmul.mubr.f32.gmra.mxu0 %v1987
  %v2082 = vpop.f32.mrf.mxu0
  %v2083 = vadd.f32 %v1999, %v2082
  %v2084 = vpop.f32.mrf.mxu0
  %v2085 = vadd.f32 %v2003, %v2084
  %2086 = vmatprep.mubr.f32.mxu0 0.0
  %2087 = vmatmul.mubr.f32.gmra.mxu0 %v1988
  %v2088 = vpop.f32.mrf.mxu0
  %v2089 = vadd.f32 %v1999, %v2088
  %v2090 = vpop.f32.mrf.mxu0
  %v2091 = vadd.f32 %v2003, %v2090
  %2092 = vmatprep.mubr.f32.mxu0 0.0
  %2093 = vmatmul.mubr.f32.gmra.mxu0 %v1989
  %v2094 = vpop.f32.mrf.mxu0
  %v2095 = vadd.f32 %v1999, %v2094
  %v2096 = vpop.f32.mrf.mxu0
  %v2097 = vadd.f32 %v2003, %v2096
  %2098 = vmatprep.mubr.f32.mxu0 0.0
  %2099 = vmatmul.mubr.f32.gmra.mxu0 %v1990
  %v2100 = vpop.f32.mrf.mxu0
  %v2101 = vadd.f32 %v1999, %v2100
  %v2102 = vpop.f32.mrf.mxu0
  %v2103 = vadd.f32 %v2003, %v2102
  %2104 = vmatprep.mubr.f32.mxu0 0.0
  %2105 = vmatmul.mubr.f32.gmra.mxu0 %v1991
  %v2106 = vpop.f32.mrf.mxu0
  %v2107 = vadd.f32 %v1999, %v2106
  %v2108 = vpop.f32.mrf.mxu0
  %v2109 = vadd.f32 %v2003, %v2108
  %2110 = vmatprep.mubr.f32.mxu0 0.0
  %2111 = vmatmul.mubr.f32.gmra.mxu0 %v1992
  %v2112 = vpop.f32.mrf.mxu0
  %v2113 = vadd.f32 %v1999, %v2112
  %v2114 = vpop.f32.mrf.mxu0
  %v2115 = vadd.f32 %v2003, %v2114
  %2116 = vmatprep.mubr.f32.mxu0 0.0
  %2117 = vmatmul.mubr.f32.gmra.mxu0 %v1993
  %v2118 = vpop.f32.mrf.mxu0
  %v2119 = vadd.f32 %v1999, %v2118
  %v2120 = vpop.f32.mrf.mxu0
  %v2121 = vadd.f32 %v2003, %v2120
  %2122 = vmatprep.mubr.f32.mxu0 0.0
  %2123 = vmatmul.mubr.f32.gmra.mxu0 %v1994
  %v2124 = vpop.f32.mrf.mxu0
  %v2125 = vadd.f32 %v1999, %v2124
  %v2126 = vpop.f32.mrf.mxu0
  %v2127 = vadd.f32 %v2003, %v2126
  %2128 = vdwg.mxu0
  %2129 = vmatprep.subr.mxu0 %v1921
  %2130 = vmatpush1.msra.mxu0 %v1920
  %2131 = vmatprep.subr.mxu0 %v1917
  %2132 = vmatpush1.msra.mxu0 %v1916
  %2133 = vmatprep.subr.mxu0 %v1913
  %2134 = vmatpush1.msra.mxu0 %v1912
  %2135 = vmatprep.subr.mxu0 %v1909
  %2136 = vmatpush1.msra.mxu0 %v1908
  %2137 = vmatprep.subr.mxu0 %v1905
  %2138 = vmatpush1.msra.mxu0 %v1904
  %2139 = vmatprep.subr.mxu0 %v1901
  %2140 = vmatpush1.msra.mxu0 %v1900
  %2141 = vmatprep.subr.mxu0 %v1897
  %2142 = vmatpush1.msra.mxu0 %v1896
  %2143 = vmatprep.subr.mxu0 %v1893
  %2144 = vmatpush1.msra.mxu0 %v1892
  %2145 = vmatprep.subr.mxu0 %v1889
  %2146 = vmatpush1.msra.mxu0 %v1888
  %2147 = vmatprep.subr.mxu0 %v1885
  %2148 = vmatpush1.msra.mxu0 %v1884
  %2149 = vmatprep.subr.mxu0 %v1881
  %2150 = vmatpush1.msra.mxu0 %v1880
  %2151 = vmatprep.subr.mxu0 %v1877
  %2152 = vmatpush1.msra.mxu0 %v1876
  %2153 = vmatprep.subr.mxu0 %v1873
  %2154 = vmatpush1.msra.mxu0 %v1872
  %2155 = vmatprep.subr.mxu0 %v1869
  %2156 = vmatpush1.msra.mxu0 %v1868
  %2157 = vmatprep.subr.mxu0 %v1865
  %2158 = vmatpush1.msra.mxu0 %v1864
  %2159 = vmatprep.subr.mxu0 %v1861
  %2160 = vmatpush1.msra.mxu0 %v1860
  %2161 = vmatprep.subr.mxu0 0.0
  %2162 = vmatpush2.msra.mxu0 0.0
  %2163 = vmatprep.subr.mxu0 0.0
  %2164 = vmatpush2.msra.mxu0 0.0
  %2165 = vmatprep.subr.mxu0 0.0
  %2166 = vmatpush2.msra.mxu0 0.0
  %2167 = vmatprep.subr.mxu0 0.0
  %2168 = vmatpush2.msra.mxu0 0.0
  %2169 = vmatprep.subr.mxu0 0.0
  %2170 = vmatpush2.msra.mxu0 0.0
  %2171 = vmatprep.subr.mxu0 0.0
  %2172 = vmatpush2.msra.mxu0 0.0
  %2173 = vmatprep.subr.mxu0 0.0
  %2174 = vmatpush2.msra.mxu0 0.0
  %2175 = vmatprep.subr.mxu0 0.0
  %2176 = vmatpush2.msra.mxu0 0.0
  %2177 = vmatprep.subr.mxu0 0.0
  %2178 = vmatpush2.msra.mxu0 0.0
  %2179 = vmatprep.subr.mxu0 0.0
  %2180 = vmatpush2.msra.mxu0 0.0
  %2181 = vmatprep.subr.mxu0 0.0
  %2182 = vmatpush2.msra.mxu0 0.0
  %2183 = vmatprep.subr.mxu0 0.0
  %2184 = vmatpush2.msra.mxu0 0.0
  %2185 = vmatprep.subr.mxu0 0.0
  %2186 = vmatpush2.msra.mxu0 0.0
  %2187 = vmatprep.subr.mxu0 0.0
  %2188 = vmatpush2.msra.mxu0 0.0
  %2189 = vmatprep.subr.mxu0 0.0
  %2190 = vmatpush2.msra.mxu0 0.0
  %2191 = vmatprep.subr.mxu0 0.0
  %2192 = vmatpush2.msra.mxu0 0.0
  %2193 = vmatprep.mubr.f32.mxu0 0.0
  %2194 = vmatmul.mubr.f32.gmra.mxu0 %v1987
  %v2195 = vpop.f32.mrf.mxu0
  %v2196 = vadd.f32 %v2007, %v2195
  %v2197 = vpop.f32.mrf.mxu0
  %v2198 = vadd.f32 %v2011, %v2197
  %2199 = vmatprep.mubr.f32.mxu0 0.0
  %2200 = vmatmul.mubr.f32.gmra.mxu0 %v1988
  %v2201 = vpop.f32.mrf.mxu0
  %v2202 = vadd.f32 %v2007, %v2201
  %v2203 = vpop.f32.mrf.mxu0
  %v2204 = vadd.f32 %v2011, %v2203
  %2205 = vmatprep.mubr.f32.mxu0 0.0
  %2206 = vmatmul.mubr.f32.gmra.mxu0 %v1989
  %v2207 = vpop.f32.mrf.mxu0
  %v2208 = vadd.f32 %v2007, %v2207
  %v2209 = vpop.f32.mrf.mxu0
  %v2210 = vadd.f32 %v2011, %v2209
  %2211 = vmatprep.mubr.f32.mxu0 0.0
  %2212 = vmatmul.mubr.f32.gmra.mxu0 %v1990
  %v2213 = vpop.f32.mrf.mxu0
  %v2214 = vadd.f32 %v2007, %v2213
  %v2215 = vpop.f32.mrf.mxu0
  %v2216 = vadd.f32 %v2011, %v2215
  %2217 = vmatprep.mubr.f32.mxu0 0.0
  %2218 = vmatmul.mubr.f32.gmra.mxu0 %v1991
  %v2219 = vpop.f32.mrf.mxu0
  %v2220 = vadd.f32 %v2007, %v2219
  %v2221 = vpop.f32.mrf.mxu0
  %v2222 = vadd.f32 %v2011, %v2221
  %2223 = vmatprep.mubr.f32.mxu0 0.0
  %2224 = vmatmul.mubr.f32.gmra.mxu0 %v1992
  %v2225 = vpop.f32.mrf.mxu0
  %v2226 = vadd.f32 %v2007, %v2225
  %v2227 = vpop.f32.mrf.mxu0
  %v2228 = vadd.f32 %v2011, %v2227
  %2229 = vmatprep.mubr.f32.mxu0 0.0
  %2230 = vmatmul.mubr.f32.gmra.mxu0 %v1993
  %v2231 = vpop.f32.mrf.mxu0
  %v2232 = vadd.f32 %v2007, %v2231
  %v2233 = vpop.f32.mrf.mxu0
  %v2234 = vadd.f32 %v2011, %v2233
  %2235 = vmatprep.mubr.f32.mxu0 0.0
  %2236 = vmatmul.mubr.f32.gmra.mxu0 %v1994
  %v2237 = vpop.f32.mrf.mxu0
  %v2238 = vadd.f32 %v2007, %v2237
  %v2239 = vpop.f32.mrf.mxu0
  %v2240 = vadd.f32 %v2011, %v2239
  %2241 = vdwg.mxu0
  %2242 = vst [vmem:[#allocation2] sm:$0xff] %v2083
  %2243 = vst [vmem:[#allocation2 + $0x8] sm:$0xff] %v2085
  %2244 = vst [vmem:[#allocation2 + $0x10] sm:$0xff] %v2196
  %2245 = vst [vmem:[#allocation2 + $0x18] sm:$0xff] %v2198
  %2246 = vst [vmem:[#allocation2 + $0x20] sm:$0xff] %v2089
  %2247 = vst [vmem:[#allocation2 + $0x28] sm:$0xff] %v2091
  %2248 = vst [vmem:[#allocation2 + $0x30] sm:$0xff] %v2202
  %2249 = vst [vmem:[#allocation2 + $0x38] sm:$0xff] %v2204
  %2250 = vst [vmem:[#allocation2 + $0x40] sm:$0xff] %v2095
  %2251 = vst [vmem:[#allocation2 + $0x48] sm:$0xff] %v2097
  %2252 = vst [vmem:[#allocation2 + $0x50] sm:$0xff] %v2208
  %2253 = vst [vmem:[#allocation2 + $0x58] sm:$0xff] %v2210
  %2254 = vst [vmem:[#allocation2 + $0x60] sm:$0xff] %v2101
  %2255 = vst [vmem:[#allocation2 + $0x68] sm:$0xff] %v2103
  %2256 = vst [vmem:[#allocation2 + $0x70] sm:$0xff] %v2214
  %2257 = vst [vmem:[#allocation2 + $0x78] sm:$0xff] %v2216
  %2258 = vst [vmem:[#allocation2 + $0x80] sm:$0xff] %v2107
  %2259 = vst [vmem:[#allocation2 + $0x88] sm:$0xff] %v2109
  %2260 = vst [vmem:[#allocation2 + $0x90] sm:$0xff] %v2220
  %2261 = vst [vmem:[#allocation2 + $0x98] sm:$0xff] %v2222
  %2262 = vst [vmem:[#allocation2 + $0xa0] sm:$0xff] %v2113
  %2263 = vst [vmem:[#allocation2 + $0xa8] sm:$0xff] %v2115
  %2264 = vst [vmem:[#allocation2 + $0xb0] sm:$0xff] %v2226
  %2265 = vst [vmem:[#allocation2 + $0xb8] sm:$0xff] %v2228
  %2266 = vst [vmem:[#allocation2 + $0xc0] sm:$0xff] %v2119
  %2267 = vst [vmem:[#allocation2 + $0xc8] sm:$0xff] %v2121
  %2268 = vst [vmem:[#allocation2 + $0xd0] sm:$0xff] %v2232
  %2269 = vst [vmem:[#allocation2 + $0xd8] sm:$0xff] %v2234
  %2270 = vst [vmem:[#allocation2 + $0xe0] sm:$0xff] %v2125
  %2271 = vst [vmem:[#allocation2 + $0xe8] sm:$0xff] %v2127
  %2272 = vst [vmem:[#allocation2 + $0xf0] sm:$0xff] %v2238
  %2273 = vst [vmem:[#allocation2 + $0xf8] sm:$0xff] %v2240
  %v2274 = vld [vmem:[%s7] sm:$0x1]
  %v2276 = vlaneseq
  %v2277 = vshrl.u32 %v2276, 7
  %v2278 = vsub.s32 0, %v2277
  %v2279 = vrot.slane %v2274, %v2278
  %v2281 = vld [vmem:[%s429] sm:$0xff]
  %v2282 = vld [vmem:[%s429 + $0x8] sm:$0xff]
  %v2283 = vld [vmem:[%s429 + $0x10] sm:$0xff]
  %v2284 = vld [vmem:[%s429 + $0x18] sm:$0xff]
  %2285 = vmatprep.subr.mxu0 %v1983
  %2286 = vmatpush1.msra.mxu0 %v1982
  %2287 = vmatprep.subr.mxu0 %v1979
  %2288 = vmatpush1.msra.mxu0 %v1978
  %2289 = vmatprep.subr.mxu0 %v1975
  %2290 = vmatpush1.msra.mxu0 %v1974
  %2291 = vmatprep.subr.mxu0 %v1971
  %2292 = vmatpush1.msra.mxu0 %v1970
  %2293 = vmatprep.subr.mxu0 %v1967
  %2294 = vmatpush1.msra.mxu0 %v1966
  %2295 = vmatprep.subr.mxu0 %v1963
  %2296 = vmatpush1.msra.mxu0 %v1962
  %2297 = vmatprep.subr.mxu0 %v1959
  %2298 = vmatpush1.msra.mxu0 %v1958
  %2299 = vmatprep.subr.mxu0 %v1955
  %2300 = vmatpush1.msra.mxu0 %v1954
  %2301 = vmatprep.subr.mxu0 %v1951
  %2302 = vmatpush1.msra.mxu0 %v1950
  %2303 = vmatprep.subr.mxu0 %v1947
  %2304 = vmatpush1.msra.mxu0 %v1946
  %2305 = vmatprep.subr.mxu0 %v1943
  %2306 = vmatpush1.msra.mxu0 %v1942
  %2307 = vmatprep.subr.mxu0 %v1939
  %2308 = vmatpush1.msra.mxu0 %v1938
  %2309 = vmatprep.subr.mxu0 %v1935
  %2310 = vmatpush1.msra.mxu0 %v1934
  %2311 = vmatprep.subr.mxu0 %v1931
  %2312 = vmatpush1.msra.mxu0 %v1930
  %2313 = vmatprep.subr.mxu0 %v1927
  %2314 = vmatpush1.msra.mxu0 %v1926
  %2315 = vmatprep.subr.mxu0 %v1923
  %2316 = vmatpush1.msra.mxu0 %v1922
  %2317 = vmatprep.subr.mxu0 0.0
  %2318 = vmatpush2.msra.mxu0 0.0
  %2319 = vmatprep.subr.mxu0 0.0
  %2320 = vmatpush2.msra.mxu0 0.0
  %2321 = vmatprep.subr.mxu0 0.0
  %2322 = vmatpush2.msra.mxu0 0.0
  %2323 = vmatprep.subr.mxu0 0.0
  %2324 = vmatpush2.msra.mxu0 0.0
  %2325 = vmatprep.subr.mxu0 0.0
  %2326 = vmatpush2.msra.mxu0 0.0
  %2327 = vmatprep.subr.mxu0 0.0
  %2328 = vmatpush2.msra.mxu0 0.0
  %2329 = vmatprep.subr.mxu0 0.0
  %2330 = vmatpush2.msra.mxu0 0.0
  %2331 = vmatprep.subr.mxu0 0.0
  %2332 = vmatpush2.msra.mxu0 0.0
  %2333 = vmatprep.subr.mxu0 0.0
  %2334 = vmatpush2.msra.mxu0 0.0
  %2335 = vmatprep.subr.mxu0 0.0
  %2336 = vmatpush2.msra.mxu0 0.0
  %2337 = vmatprep.subr.mxu0 0.0
  %2338 = vmatpush2.msra.mxu0 0.0
  %2339 = vmatprep.subr.mxu0 0.0
  %2340 = vmatpush2.msra.mxu0 0.0
  %2341 = vmatprep.subr.mxu0 0.0
  %2342 = vmatpush2.msra.mxu0 0.0
  %2343 = vmatprep.subr.mxu0 0.0
  %2344 = vmatpush2.msra.mxu0 0.0
  %2345 = vmatprep.subr.mxu0 0.0
  %2346 = vmatpush2.msra.mxu0 0.0
  %2347 = vmatprep.subr.mxu0 0.0
  %2348 = vmatpush2.msra.mxu0 0.0
  %2349 = vmatprep.mubr.f32.mxu0 0.0
  %2350 = vmatmul.mubr.f32.gmra.mxu0 0.0
  %v2351 = vpop.f32.mrf.mxu0
  %v2352 = vadd.f32 0.0, %v2351
  %v2353 = vpop.f32.mrf.mxu0
  %v2354 = vadd.f32 0.0, %v2353
  %2355 = vdwg.mxu0
  %2356 = vmatprep.subr.mxu0 %v1985
  %2357 = vmatpush1.msra.mxu0 %v1984
  %2358 = vmatprep.subr.mxu0 %v1981
  %2359 = vmatpush1.msra.mxu0 %v1980
  %2360 = vmatprep.subr.mxu0 %v1977
  %2361 = vmatpush1.msra.mxu0 %v1976
  %2362 = vmatprep.subr.mxu0 %v1973
  %2363 = vmatpush1.msra.mxu0 %v1972
  %2364 = vmatprep.subr.mxu0 %v1969
  %2365 = vmatpush1.msra.mxu0 %v1968
  %2366 = vmatprep.subr.mxu0 %v1965
  %2367 = vmatpush1.msra.mxu0 %v1964
  %2368 = vmatprep.subr.mxu0 %v1961
  %2369 = vmatpush1.msra.mxu0 %v1960
  %2370 = vmatprep.subr.mxu0 %v1957
  %2371 = vmatpush1.msra.mxu0 %v1956
  %2372 = vmatprep.subr.mxu0 %v1953
  %2373 = vmatpush1.msra.mxu0 %v1952
  %2374 = vmatprep.subr.mxu0 %v1949
  %2375 = vmatpush1.msra.mxu0 %v1948
  %2376 = vmatprep.subr.mxu0 %v1945
  %2377 = vmatpush1.msra.mxu0 %v1944
  %2378 = vmatprep.subr.mxu0 %v1941
  %2379 = vmatpush1.msra.mxu0 %v1940
  %2380 = vmatprep.subr.mxu0 %v1937
  %2381 = vmatpush1.msra.mxu0 %v1936
  %2382 = vmatprep.subr.mxu0 %v1933
  %2383 = vmatpush1.msra.mxu0 %v1932
  %2384 = vmatprep.subr.mxu0 %v1929
  %2385 = vmatpush1.msra.mxu0 %v1928
  %2386 = vmatprep.subr.mxu0 %v1925
  %2387 = vmatpush1.msra.mxu0 %v1924
  %2388 = vmatprep.subr.mxu0 0.0
  %2389 = vmatpush2.msra.mxu0 0.0
  %2390 = vmatprep.subr.mxu0 0.0
  %2391 = vmatpush2.msra.mxu0 0.0
  %2392 = vmatprep.subr.mxu0 0.0
  %2393 = vmatpush2.msra.mxu0 0.0
  %2394 = vmatprep.subr.mxu0 0.0
  %2395 = vmatpush2.msra.mxu0 0.0
  %2396 = vmatprep.subr.mxu0 0.0
  %2397 = vmatpush2.msra.mxu0 0.0
  %2398 = vmatprep.subr.mxu0 0.0
  %2399 = vmatpush2.msra.mxu0 0.0
  %2400 = vmatprep.subr.mxu0 0.0
  %2401 = vmatpush2.msra.mxu0 0.0
  %2402 = vmatprep.subr.mxu0 0.0
  %2403 = vmatpush2.msra.mxu0 0.0
  %2404 = vmatprep.subr.mxu0 0.0
  %2405 = vmatpush2.msra.mxu0 0.0
  %2406 = vmatprep.subr.mxu0 0.0
  %2407 = vmatpush2.msra.mxu0 0.0
  %2408 = vmatprep.subr.mxu0 0.0
  %2409 = vmatpush2.msra.mxu0 0.0
  %2410 = vmatprep.subr.mxu0 0.0
  %2411 = vmatpush2.msra.mxu0 0.0
  %2412 = vmatprep.subr.mxu0 0.0
  %2413 = vmatpush2.msra.mxu0 0.0
  %2414 = vmatprep.subr.mxu0 0.0
  %2415 = vmatpush2.msra.mxu0 0.0
  %2416 = vmatprep.subr.mxu0 0.0
  %2417 = vmatpush2.msra.mxu0 0.0
  %2418 = vmatprep.subr.mxu0 0.0
  %2419 = vmatpush2.msra.mxu0 0.0
  %2420 = vmatprep.mubr.f32.mxu0 0.0
  %2421 = vmatmul.mubr.f32.gmra.mxu0 0.0
  %v2422 = vpop.f32.mrf.mxu0
  %v2423 = vadd.f32 0.0, %v2422
  %v2424 = vpop.f32.mrf.mxu0
  %v2425 = vadd.f32 0.0, %v2424
  %2426 = vdwg.mxu0
  %v2427 = vadd.f32 %v2281, %v2352
  %v2428 = vadd.f32 %v2282, %v2354
  %v2429 = vadd.f32 %v2283, %v2423
  %v2430 = vadd.f32 %v2284, %v2425
  %v2431 = vxor.u32 %v2427, 2147483648
  %v2432 = vmul.f32 %v2431, 1.442695
  %v2433 = vpow.pop %v2432
  %v2434 = vadd.f32 %v2433, 1.0
  %v2435 = vrcp.pop %v2434
  %v2436 = vmul.f32 1.0, %v2435
  %v2437 = vxor.u32 %v2428, 2147483648
  %v2438 = vmul.f32 %v2437, 1.442695
  %v2439 = vpow.pop %v2438
  %v2440 = vadd.f32 %v2439, 1.0
  %v2441 = vrcp.pop %v2440
  %v2442 = vmul.f32 1.0, %v2441
  %v2443 = vtanh.pop %v2429
  %v2444 = vxor.u32 %v2430, 2147483648
  %v2445 = vmul.f32 %v2444, 1.442695
  %v2446 = vpow.pop %v2445
  %v2447 = vadd.f32 %v2446, 1.0
  %v2448 = vrcp.pop %v2447
  %v2449 = vmul.f32 1.0, %v2448
  %v2450 = vmul.f32 %v2442, 0.0
  %v2451 = vmul.f32 %v2436, %v2443
  %v2452 = vadd.f32 %v2450, %v2451
  %v2453 = vtanh.pop %v2452
  %v2454 = vmul.f32 %v2449, %v2453
  %v2455 = vmul.f32 %v2454, %v2279
  %2456 = vadd.xlane.f32.xlu0 %v2455
  %v2457 = vpop.xlane.xlu0 %2456
  %v2458 = vsub.f32 -inf, %v2457
  %v2459 = vmul.f32 %v2458, 1.442695
  %v2460 = vpow.pop %v2459
  %v2461 = vsub.f32 %v2457, %v2457
  %v2462 = vmul.f32 %v2461, 1.442695
  %v2463 = vpow.pop %v2462
  %v2464 = vmul.f32 %v2460, 0.0
  %v2465 = vadd.f32 %v2464, %v2463
  %v2466 = vmul.f32 %v2463, %v2454
  %v2467 = vadd.f32 %v2464, %v2466
  %v2468 = vld [vmem:[%s607] sm:$0xff]
  %v2469 = vld [vmem:[%s607 + $0x8] sm:$0xff]
  %v2470 = vld [vmem:[%s607 + $0x10] sm:$0xff]
  %v2471 = vld [vmem:[%s607 + $0x18] sm:$0xff]
  %2472 = vmatprep.subr.mxu0 %v1983
  %2473 = vmatpush1.msra.mxu0 %v1982
  %2474 = vmatprep.subr.mxu0 %v1979
  %2475 = vmatpush1.msra.mxu0 %v1978
  %2476 = vmatprep.subr.mxu0 %v1975
  %2477 = vmatpush1.msra.mxu0 %v1974
  %2478 = vmatprep.subr.mxu0 %v1971
  %2479 = vmatpush1.msra.mxu0 %v1970
  %2480 = vmatprep.subr.mxu0 %v1967
  %2481 = vmatpush1.msra.mxu0 %v1966
  %2482 = vmatprep.subr.mxu0 %v1963
  %2483 = vmatpush1.msra.mxu0 %v1962
  %2484 = vmatprep.subr.mxu0 %v1959
  %2485 = vmatpush1.msra.mxu0 %v1958
  %2486 = vmatprep.subr.mxu0 %v1955
  %2487 = vmatpush1.msra.mxu0 %v1954
  %2488 = vmatprep.subr.mxu0 %v1951
  %2489 = vmatpush1.msra.mxu0 %v1950
  %2490 = vmatprep.subr.mxu0 %v1947
  %2491 = vmatpush1.msra.mxu0 %v1946
  %2492 = vmatprep.subr.mxu0 %v1943
  %2493 = vmatpush1.msra.mxu0 %v1942
  %2494 = vmatprep.subr.mxu0 %v1939
  %2495 = vmatpush1.msra.mxu0 %v1938
  %2496 = vmatprep.subr.mxu0 %v1935
  %2497 = vmatpush1.msra.mxu0 %v1934
  %2498 = vmatprep.subr.mxu0 %v1931
  %2499 = vmatpush1.msra.mxu0 %v1930
  %2500 = vmatprep.subr.mxu0 %v1927
  %2501 = vmatpush1.msra.mxu0 %v1926
  %2502 = vmatprep.subr.mxu0 %v1923
  %2503 = vmatpush1.msra.mxu0 %v1922
  %2504 = vmatprep.subr.mxu0 0.0
  %2505 = vmatpush2.msra.mxu0 0.0
  %2506 = vmatprep.subr.mxu0 0.0
  %2507 = vmatpush2.msra.mxu0 0.0
  %2508 = vmatprep.subr.mxu0 0.0
  %2509 = vmatpush2.msra.mxu0 0.0
  %2510 = vmatprep.subr.mxu0 0.0
  %2511 = vmatpush2.msra.mxu0 0.0
  %2512 = vmatprep.subr.mxu0 0.0
  %2513 = vmatpush2.msra.mxu0 0.0
  %2514 = vmatprep.subr.mxu0 0.0
  %2515 = vmatpush2.msra.mxu0 0.0
  %2516 = vmatprep.subr.mxu0 0.0
  %2517 = vmatpush2.msra.mxu0 0.0
  %2518 = vmatprep.subr.mxu0 0.0
  %2519 = vmatpush2.msra.mxu0 0.0
  %2520 = vmatprep.subr.mxu0 0.0
  %2521 = vmatpush2.msra.mxu0 0.0
  %2522 = vmatprep.subr.mxu0 0.0
  %2523 = vmatpush2.msra.mxu0 0.0
  %2524 = vmatprep.subr.mxu0 0.0
  %2525 = vmatpush2.msra.mxu0 0.0
  %2526 = vmatprep.subr.mxu0 0.0
  %2527 = vmatpush2.msra.mxu0 0.0
  %2528 = vmatprep.subr.mxu0 0.0
  %2529 = vmatpush2.msra.mxu0 0.0
  %2530 = vmatprep.subr.mxu0 0.0
  %2531 = vmatpush2.msra.mxu0 0.0
  %2532 = vmatprep.subr.mxu0 0.0
  %2533 = vmatpush2.msra.mxu0 0.0
  %2534 = vmatprep.subr.mxu0 0.0
  %2535 = vmatpush2.msra.mxu0 0.0
  %2536 = vmatprep.mubr.f32.mxu0 0.0
  %2537 = vmatmul.mubr.f32.gmra.mxu0 %v2454
  %v2538 = vpop.f32.mrf.mxu0
  %v2539 = vadd.f32 0.0, %v2538
  %v2540 = vpop.f32.mrf.mxu0
  %v2541 = vadd.f32 0.0, %v2540
  %2542 = vdwg.mxu0
  %2543 = vmatprep.subr.mxu0 %v1985
  %2544 = vmatpush1.msra.mxu0 %v1984
  %2545 = vmatprep.subr.mxu0 %v1981
  %2546 = vmatpush1.msra.mxu0 %v1980
  %2547 = vmatprep.subr.mxu0 %v1977
  %2548 = vmatpush1.msra.mxu0 %v1976
  %2549 = vmatprep.subr.mxu0 %v1973
  %2550 = vmatpush1.msra.mxu0 %v1972
  %2551 = vmatprep.subr.mxu0 %v1969
  %2552 = vmatpush1.msra.mxu0 %v1968
  %2553 = vmatprep.subr.mxu0 %v1965
  %2554 = vmatpush1.msra.mxu0 %v1964
  %2555 = vmatprep.subr.mxu0 %v1961
  %2556 = vmatpush1.msra.mxu0 %v1960
  %2557 = vmatprep.subr.mxu0 %v1957
  %2558 = vmatpush1.msra.mxu0 %v1956
  %2559 = vmatprep.subr.mxu0 %v1953
  %2560 = vmatpush1.msra.mxu0 %v1952
  %2561 = vmatprep.subr.mxu0 %v1949
  %2562 = vmatpush1.msra.mxu0 %v1948
  %2563 = vmatprep.subr.mxu0 %v1945
  %2564 = vmatpush1.msra.mxu0 %v1944
  %2565 = vmatprep.subr.mxu0 %v1941
  %2566 = vmatpush1.msra.mxu0 %v1940
  %2567 = vmatprep.subr.mxu0 %v1937
  %2568 = vmatpush1.msra.mxu0 %v1936
  %2569 = vmatprep.subr.mxu0 %v1933
  %2570 = vmatpush1.msra.mxu0 %v1932
  %2571 = vmatprep.subr.mxu0 %v1929
  %2572 = vmatpush1.msra.mxu0 %v1928
  %2573 = vmatprep.subr.mxu0 %v1925
  %2574 = vmatpush1.msra.mxu0 %v1924
  %2575 = vmatprep.subr.mxu0 0.0
  %2576 = vmatpush2.msra.mxu0 0.0
  %2577 = vmatprep.subr.mxu0 0.0
  %2578 = vmatpush2.msra.mxu0 0.0
  %2579 = vmatprep.subr.mxu0 0.0
  %2580 = vmatpush2.msra.mxu0 0.0
  %2581 = vmatprep.subr.mxu0 0.0
  %2582 = vmatpush2.msra.mxu0 0.0
  %2583 = vmatprep.subr.mxu0 0.0
  %2584 = vmatpush2.msra.mxu0 0.0
  %2585 = vmatprep.subr.mxu0 0.0
  %2586 = vmatpush2.msra.mxu0 0.0
  %2587 = vmatprep.subr.mxu0 0.0
  %2588 = vmatpush2.msra.mxu0 0.0
  %2589 = vmatprep.subr.mxu0 0.0
  %2590 = vmatpush2.msra.mxu0 0.0
  %2591 = vmatprep.subr.mxu0 0.0
  %2592 = vmatpush2.msra.mxu0 0.0
  %2593 = vmatprep.subr.mxu0 0.0
  %2594 = vmatpush2.msra.mxu0 0.0
  %2595 = vmatprep.subr.mxu0 0.0
  %2596 = vmatpush2.msra.mxu0 0.0
  %2597 = vmatprep.subr.mxu0 0.0
  %2598 = vmatpush2.msra.mxu0 0.0
  %2599 = vmatprep.subr.mxu0 0.0
  %2600 = vmatpush2.msra.mxu0 0.0
  %2601 = vmatprep.subr.mxu0 0.0
  %2602 = vmatpush2.msra.mxu0 0.0
  %2603 = vmatprep.subr.mxu0 0.0
  %2604 = vmatpush2.msra.mxu0 0.0
  %2605 = vmatprep.subr.mxu0 0.0
  %2606 = vmatpush2.msra.mxu0 0.0
  %2607 = vmatprep.mubr.f32.mxu0 0.0
  %2608 = vmatmul.mubr.f32.gmra.mxu0 %v2454
  %v2609 = vpop.f32.mrf.mxu0
  %v2610 = vadd.f32 0.0, %v2609
  %v2611 = vpop.f32.mrf.mxu0
  %v2612 = vadd.f32 0.0, %v2611
  %2613 = vdwg.mxu0
  %v2614 = vadd.f32 %v2468, %v2539
  %v2615 = vadd.f32 %v2469, %v2541
  %v2616 = vadd.f32 %v2470, %v2610
  %v2617 = vadd.f32 %v2471, %v2612
  %v2618 = vxor.u32 %v2614, 2147483648
  %v2619 = vmul.f32 %v2618, 1.442695
  %v2620 = vpow.pop %v2619
  %v2621 = vadd.f32 %v2620, 1.0
  %v2622 = vrcp.pop %v2621
  %v2623 = vmul.f32 1.0, %v2622
  %v2624 = vxor.u32 %v2615, 2147483648
  %v2625 = vmul.f32 %v2624, 1.442695
  %v2626 = vpow.pop %v2625
  %v2627 = vadd.f32 %v2626, 1.0
  %v2628 = vrcp.pop %v2627
  %v2629 = vmul.f32 1.0, %v2628
  %v2630 = vtanh.pop %v2616
  %v2631 = vxor.u32 %v2617, 2147483648
  %v2632 = vmul.f32 %v2631, 1.442695
  %v2633 = vpow.pop %v2632
  %v2634 = vadd.f32 %v2633, 1.0
  %v2635 = vrcp.pop %v2634
  %v2636 = vmul.f32 1.0, %v2635
  %v2637 = vmul.f32 %v2629, %v2452
  %v2638 = vmul.f32 %v2623, %v2630
  %v2639 = vadd.f32 %v2637, %v2638
  %v2640 = vtanh.pop %v2639
  %v2641 = vmul.f32 %v2636, %v2640
  %v2642 = vmul.f32 %v2641, %v2279
  %2643 = vadd.xlane.f32.xlu0 %v2642
  %v2644 = vpop.xlane.xlu0 %2643
  %v2645 = vmax.f32 %v2457, %v2644
  %v2646 = vsub.f32 %v2457, %v2645
  %v2647 = vmul.f32 %v2646, 1.442695
  %v2648 = vpow.pop %v2647
  %v2649 = vsub.f32 %v2644, %v2645
  %v2650 = vmul.f32 %v2649, 1.442695
  %v2651 = vpow.pop %v2650
  %v2652 = vmul.f32 %v2648, %v2465
  %v2653 = vadd.f32 %v2652, %v2651
  %v2654 = vmul.f32 %v2648, %v2467
  %v2655 = vmul.f32 %v2651, %v2641
  %v2656 = vadd.f32 %v2654, %v2655
  %v2657 = vld [vmem:[%s786] sm:$0xff]
  %v2658 = vld [vmem:[%s786 + $0x8] sm:$0xff]
  %v2659 = vld [vmem:[%s786 + $0x10] sm:$0xff]
  %v2660 = vld [vmem:[%s786 + $0x18] sm:$0xff]
  %2661 = vmatprep.subr.mxu0 %v1983
  %2662 = vmatpush1.msra.mxu0 %v1982
  %2663 = vmatprep.subr.mxu0 %v1979
  %2664 = vmatpush1.msra.mxu0 %v1978
  %2665 = vmatprep.subr.mxu0 %v1975
  %2666 = vmatpush1.msra.mxu0 %v1974
  %2667 = vmatprep.subr.mxu0 %v1971
  %2668 = vmatpush1.msra.mxu0 %v1970
  %2669 = vmatprep.subr.mxu0 %v1967
  %2670 = vmatpush1.msra.mxu0 %v1966
  %2671 = vmatprep.subr.mxu0 %v1963
  %2672 = vmatpush1.msra.mxu0 %v1962
  %2673 = vmatprep.subr.mxu0 %v1959
  %2674 = vmatpush1.msra.mxu0 %v1958
  %2675 = vmatprep.subr.mxu0 %v1955
  %2676 = vmatpush1.msra.mxu0 %v1954
  %2677 = vmatprep.subr.mxu0 %v1951
  %2678 = vmatpush1.msra.mxu0 %v1950
  %2679 = vmatprep.subr.mxu0 %v1947
  %2680 = vmatpush1.msra.mxu0 %v1946
  %2681 = vmatprep.subr.mxu0 %v1943
  %2682 = vmatpush1.msra.mxu0 %v1942
  %2683 = vmatprep.subr.mxu0 %v1939
  %2684 = vmatpush1.msra.mxu0 %v1938
  %2685 = vmatprep.subr.mxu0 %v1935
  %2686 = vmatpush1.msra.mxu0 %v1934
  %2687 = vmatprep.subr.mxu0 %v1931
  %2688 = vmatpush1.msra.mxu0 %v1930
  %2689 = vmatprep.subr.mxu0 %v1927
  %2690 = vmatpush1.msra.mxu0 %v1926
  %2691 = vmatprep.subr.mxu0 %v1923
  %2692 = vmatpush1.msra.mxu0 %v1922
  %2693 = vmatprep.subr.mxu0 0.0
  %2694 = vmatpush2.msra.mxu0 0.0
  %2695 = vmatprep.subr.mxu0 0.0
  %2696 = vmatpush2.msra.mxu0 0.0
  %2697 = vmatprep.subr.mxu0 0.0
  %2698 = vmatpush2.msra.mxu0 0.0
  %2699 = vmatprep.subr.mxu0 0.0
  %2700 = vmatpush2.msra.mxu0 0.0
  %2701 = vmatprep.subr.mxu0 0.0
  %2702 = vmatpush2.msra.mxu0 0.0
  %2703 = vmatprep.subr.mxu0 0.0
  %2704 = vmatpush2.msra.mxu0 0.0
  %2705 = vmatprep.subr.mxu0 0.0
  %2706 = vmatpush2.msra.mxu0 0.0
  %2707 = vmatprep.subr.mxu0 0.0
  %2708 = vmatpush2.msra.mxu0 0.0
  %2709 = vmatprep.subr.mxu0 0.0
  %2710 = vmatpush2.msra.mxu0 0.0
  %2711 = vmatprep.subr.mxu0 0.0
  %2712 = vmatpush2.msra.mxu0 0.0
  %2713 = vmatprep.subr.mxu0 0.0
  %2714 = vmatpush2.msra.mxu0 0.0
  %2715 = vmatprep.subr.mxu0 0.0
  %2716 = vmatpush2.msra.mxu0 0.0
  %2717 = vmatprep.subr.mxu0 0.0
  %2718 = vmatpush2.msra.mxu0 0.0
  %2719 = vmatprep.subr.mxu0 0.0
  %2720 = vmatpush2.msra.mxu0 0.0
  %2721 = vmatprep.subr.mxu0 0.0
  %2722 = vmatpush2.msra.mxu0 0.0
  %2723 = vmatprep.subr.mxu0 0.0
  %2724 = vmatpush2.msra.mxu0 0.0
  %2725 = vmatprep.mubr.f32.mxu0 0.0
  %2726 = vmatmul.mubr.f32.gmra.mxu0 %v2641
  %v2727 = vpop.f32.mrf.mxu0
  %v2728 = vadd.f32 0.0, %v2727
  %v2729 = vpop.f32.mrf.mxu0
  %v2730 = vadd.f32 0.0, %v2729
  %2731 = vdwg.mxu0
  %2732 = vmatprep.subr.mxu0 %v1985
  %2733 = vmatpush1.msra.mxu0 %v1984
  %2734 = vmatprep.subr.mxu0 %v1981
  %2735 = vmatpush1.msra.mxu0 %v1980
  %2736 = vmatprep.subr.mxu0 %v1977
  %2737 = vmatpush1.msra.mxu0 %v1976
  %2738 = vmatprep.subr.mxu0 %v1973
  %2739 = vmatpush1.msra.mxu0 %v1972
  %2740 = vmatprep.subr.mxu0 %v1969
  %2741 = vmatpush1.msra.mxu0 %v1968
  %2742 = vmatprep.subr.mxu0 %v1965
  %2743 = vmatpush1.msra.mxu0 %v1964
  %2744 = vmatprep.subr.mxu0 %v1961
  %2745 = vmatpush1.msra.mxu0 %v1960
  %2746 = vmatprep.subr.mxu0 %v1957
  %2747 = vmatpush1.msra.mxu0 %v1956
  %2748 = vmatprep.subr.mxu0 %v1953
  %2749 = vmatpush1.msra.mxu0 %v1952
  %2750 = vmatprep.subr.mxu0 %v1949
  %2751 = vmatpush1.msra.mxu0 %v1948
  %2752 = vmatprep.subr.mxu0 %v1945
  %2753 = vmatpush1.msra.mxu0 %v1944
  %2754 = vmatprep.subr.mxu0 %v1941
  %2755 = vmatpush1.msra.mxu0 %v1940
  %2756 = vmatprep.subr.mxu0 %v1937
  %2757 = vmatpush1.msra.mxu0 %v1936
  %2758 = vmatprep.subr.mxu0 %v1933
  %2759 = vmatpush1.msra.mxu0 %v1932
  %2760 = vmatprep.subr.mxu0 %v1929
  %2761 = vmatpush1.msra.mxu0 %v1928
  %2762 = vmatprep.subr.mxu0 %v1925
  %2763 = vmatpush1.msra.mxu0 %v1924
  %2764 = vmatprep.subr.mxu0 0.0
  %2765 = vmatpush2.msra.mxu0 0.0
  %2766 = vmatprep.subr.mxu0 0.0
  %2767 = vmatpush2.msra.mxu0 0.0
  %2768 = vmatprep.subr.mxu0 0.0
  %2769 = vmatpush2.msra.mxu0 0.0
  %2770 = vmatprep.subr.mxu0 0.0
  %2771 = vmatpush2.msra.mxu0 0.0
  %2772 = vmatprep.subr.mxu0 0.0
  %2773 = vmatpush2.msra.mxu0 0.0
  %2774 = vmatprep.subr.mxu0 0.0
  %2775 = vmatpush2.msra.mxu0 0.0
  %2776 = vmatprep.subr.mxu0 0.0
  %2777 = vmatpush2.msra.mxu0 0.0
  %2778 = vmatprep.subr.mxu0 0.0
  %2779 = vmatpush2.msra.mxu0 0.0
  %2780 = vmatprep.subr.mxu0 0.0
  %2781 = vmatpush2.msra.mxu0 0.0
  %2782 = vmatprep.subr.mxu0 0.0
  %2783 = vmatpush2.msra.mxu0 0.0
  %2784 = vmatprep.subr.mxu0 0.0
  %2785 = vmatpush2.msra.mxu0 0.0
  %2786 = vmatprep.subr.mxu0 0.0
  %2787 = vmatpush2.msra.mxu0 0.0
  %2788 = vmatprep.subr.mxu0 0.0
  %2789 = vmatpush2.msra.mxu0 0.0
  %2790 = vmatprep.subr.mxu0 0.0
  %2791 = vmatpush2.msra.mxu0 0.0
  %2792 = vmatprep.subr.mxu0 0.0
  %2793 = vmatpush2.msra.mxu0 0.0
  %2794 = vmatprep.subr.mxu0 0.0
  %2795 = vmatpush2.msra.mxu0 0.0
  %2796 = vmatprep.mubr.f32.mxu0 0.0
  %2797 = vmatmul.mubr.f32.gmra.mxu0 %v2641
  %v2798 = vpop.f32.mrf.mxu0
  %v2799 = vadd.f32 0.0, %v2798
  %v2800 = vpop.f32.mrf.mxu0
  %v2801 = vadd.f32 0.0, %v2800
  %2802 = vdwg.mxu0
  %v2803 = vadd.f32 %v2657, %v2728
  %v2804 = vadd.f32 %v2658, %v2730
  %v2805 = vadd.f32 %v2659, %v2799
  %v2806 = vadd.f32 %v2660, %v2801
  %v2807 = vxor.u32 %v2803, 2147483648
  %v2808 = vmul.f32 %v2807, 1.442695
  %v2809 = vpow.pop %v2808
  %v2810 = vadd.f32 %v2809, 1.0
  %v2811 = vrcp.pop %v2810
  %v2812 = vmul.f32 1.0, %v2811
  %v2813 = vxor.u32 %v2804, 2147483648
  %v2814 = vmul.f32 %v2813, 1.442695
  %v2815 = vpow.pop %v2814
  %v2816 = vadd.f32 %v2815, 1.0
  %v2817 = vrcp.pop %v2816
  %v2818 = vmul.f32 1.0, %v2817
  %v2819 = vtanh.pop %v2805
  %v2820 = vxor.u32 %v2806, 2147483648
  %v2821 = vmul.f32 %v2820, 1.442695
  %v2822 = vpow.pop %v2821
  %v2823 = vadd.f32 %v2822, 1.0
  %v2824 = vrcp.pop %v2823
  %v2825 = vmul.f32 1.0, %v2824
  %v2826 = vmul.f32 %v2818, %v2639
  %v2827 = vmul.f32 %v2812, %v2819
  %v2828 = vadd.f32 %v2826, %v2827
  %v2829 = vtanh.pop %v2828
  %v2830 = vmul.f32 %v2825, %v2829
  %v2831 = vmul.f32 %v2830, %v2279
  %2832 = vadd.xlane.f32.xlu0 %v2831
  %v2833 = vpop.xlane.xlu0 %2832
  %v2834 = vmax.f32 %v2645, %v2833
  %v2835 = vsub.f32 %v2645, %v2834
  %v2836 = vmul.f32 %v2835, 1.442695
  %v2837 = vpow.pop %v2836
  %v2838 = vsub.f32 %v2833, %v2834
  %v2839 = vmul.f32 %v2838, 1.442695
  %v2840 = vpow.pop %v2839
  %v2841 = vmul.f32 %v2837, %v2653
  %v2842 = vadd.f32 %v2841, %v2840
  %v2843 = vmul.f32 %v2837, %v2656
  %v2844 = vmul.f32 %v2840, %v2830
  %v2845 = vadd.f32 %v2843, %v2844
  %v2846 = vld [vmem:[%s965] sm:$0xff]
  %v2847 = vld [vmem:[%s965 + $0x8] sm:$0xff]
  %v2848 = vld [vmem:[%s965 + $0x10] sm:$0xff]
  %v2849 = vld [vmem:[%s965 + $0x18] sm:$0xff]
  %2850 = vmatprep.subr.mxu0 %v1983
  %2851 = vmatpush1.msra.mxu0 %v1982
  %2852 = vmatprep.subr.mxu0 %v1979
  %2853 = vmatpush1.msra.mxu0 %v1978
  %2854 = vmatprep.subr.mxu0 %v1975
  %2855 = vmatpush1.msra.mxu0 %v1974
  %2856 = vmatprep.subr.mxu0 %v1971
  %2857 = vmatpush1.msra.mxu0 %v1970
  %2858 = vmatprep.subr.mxu0 %v1967
  %2859 = vmatpush1.msra.mxu0 %v1966
  %2860 = vmatprep.subr.mxu0 %v1963
  %2861 = vmatpush1.msra.mxu0 %v1962
  %2862 = vmatprep.subr.mxu0 %v1959
  %2863 = vmatpush1.msra.mxu0 %v1958
  %2864 = vmatprep.subr.mxu0 %v1955
  %2865 = vmatpush1.msra.mxu0 %v1954
  %2866 = vmatprep.subr.mxu0 %v1951
  %2867 = vmatpush1.msra.mxu0 %v1950
  %2868 = vmatprep.subr.mxu0 %v1947
  %2869 = vmatpush1.msra.mxu0 %v1946
  %2870 = vmatprep.subr.mxu0 %v1943
  %2871 = vmatpush1.msra.mxu0 %v1942
  %2872 = vmatprep.subr.mxu0 %v1939
  %2873 = vmatpush1.msra.mxu0 %v1938
  %2874 = vmatprep.subr.mxu0 %v1935
  %2875 = vmatpush1.msra.mxu0 %v1934
  %2876 = vmatprep.subr.mxu0 %v1931
  %2877 = vmatpush1.msra.mxu0 %v1930
  %2878 = vmatprep.subr.mxu0 %v1927
  %2879 = vmatpush1.msra.mxu0 %v1926
  %2880 = vmatprep.subr.mxu0 %v1923
  %2881 = vmatpush1.msra.mxu0 %v1922
  %2882 = vmatprep.subr.mxu0 0.0
  %2883 = vmatpush2.msra.mxu0 0.0
  %2884 = vmatprep.subr.mxu0 0.0
  %2885 = vmatpush2.msra.mxu0 0.0
  %2886 = vmatprep.subr.mxu0 0.0
  %2887 = vmatpush2.msra.mxu0 0.0
  %2888 = vmatprep.subr.mxu0 0.0
  %2889 = vmatpush2.msra.mxu0 0.0
  %2890 = vmatprep.subr.mxu0 0.0
  %2891 = vmatpush2.msra.mxu0 0.0
  %2892 = vmatprep.subr.mxu0 0.0
  %2893 = vmatpush2.msra.mxu0 0.0
  %2894 = vmatprep.subr.mxu0 0.0
  %2895 = vmatpush2.msra.mxu0 0.0
  %2896 = vmatprep.subr.mxu0 0.0
  %2897 = vmatpush2.msra.mxu0 0.0
  %2898 = vmatprep.subr.mxu0 0.0
  %2899 = vmatpush2.msra.mxu0 0.0
  %2900 = vmatprep.subr.mxu0 0.0
  %2901 = vmatpush2.msra.mxu0 0.0
  %2902 = vmatprep.subr.mxu0 0.0
  %2903 = vmatpush2.msra.mxu0 0.0
  %2904 = vmatprep.subr.mxu0 0.0
  %2905 = vmatpush2.msra.mxu0 0.0
  %2906 = vmatprep.subr.mxu0 0.0
  %2907 = vmatpush2.msra.mxu0 0.0
  %2908 = vmatprep.subr.mxu0 0.0
  %2909 = vmatpush2.msra.mxu0 0.0
  %2910 = vmatprep.subr.mxu0 0.0
  %2911 = vmatpush2.msra.mxu0 0.0
  %2912 = vmatprep.subr.mxu0 0.0
  %2913 = vmatpush2.msra.mxu0 0.0
  %2914 = vmatprep.mubr.f32.mxu0 0.0
  %2915 = vmatmul.mubr.f32.gmra.mxu0 %v2830
  %v2916 = vpop.f32.mrf.mxu0
  %v2917 = vadd.f32 0.0, %v2916
  %v2918 = vpop.f32.mrf.mxu0
  %v2919 = vadd.f32 0.0, %v2918
  %2920 = vdwg.mxu0
  %2921 = vmatprep.subr.mxu0 %v1985
  %2922 = vmatpush1.msra.mxu0 %v1984
  %2923 = vmatprep.subr.mxu0 %v1981
  %2924 = vmatpush1.msra.mxu0 %v1980
  %2925 = vmatprep.subr.mxu0 %v1977
  %2926 = vmatpush1.msra.mxu0 %v1976
  %2927 = vmatprep.subr.mxu0 %v1973
  %2928 = vmatpush1.msra.mxu0 %v1972
  %2929 = vmatprep.subr.mxu0 %v1969
  %2930 = vmatpush1.msra.mxu0 %v1968
  %2931 = vmatprep.subr.mxu0 %v1965
  %2932 = vmatpush1.msra.mxu0 %v1964
  %2933 = vmatprep.subr.mxu0 %v1961
  %2934 = vmatpush1.msra.mxu0 %v1960
  %2935 = vmatprep.subr.mxu0 %v1957
  %2936 = vmatpush1.msra.mxu0 %v1956
  %2937 = vmatprep.subr.mxu0 %v1953
  %2938 = vmatpush1.msra.mxu0 %v1952
  %2939 = vmatprep.subr.mxu0 %v1949
  %2940 = vmatpush1.msra.mxu0 %v1948
  %2941 = vmatprep.subr.mxu0 %v1945
  %2942 = vmatpush1.msra.mxu0 %v1944
  %2943 = vmatprep.subr.mxu0 %v1941
  %2944 = vmatpush1.msra.mxu0 %v1940
  %2945 = vmatprep.subr.mxu0 %v1937
  %2946 = vmatpush1.msra.mxu0 %v1936
  %2947 = vmatprep.subr.mxu0 %v1933
  %2948 = vmatpush1.msra.mxu0 %v1932
  %2949 = vmatprep.subr.mxu0 %v1929
  %2950 = vmatpush1.msra.mxu0 %v1928
  %2951 = vmatprep.subr.mxu0 %v1925
  %2952 = vmatpush1.msra.mxu0 %v1924
  %2953 = vmatprep.subr.mxu0 0.0
  %2954 = vmatpush2.msra.mxu0 0.0
  %2955 = vmatprep.subr.mxu0 0.0
  %2956 = vmatpush2.msra.mxu0 0.0
  %2957 = vmatprep.subr.mxu0 0.0
  %2958 = vmatpush2.msra.mxu0 0.0
  %2959 = vmatprep.subr.mxu0 0.0
  %2960 = vmatpush2.msra.mxu0 0.0
  %2961 = vmatprep.subr.mxu0 0.0
  %2962 = vmatpush2.msra.mxu0 0.0
  %2963 = vmatprep.subr.mxu0 0.0
  %2964 = vmatpush2.msra.mxu0 0.0
  %2965 = vmatprep.subr.mxu0 0.0
  %2966 = vmatpush2.msra.mxu0 0.0
  %2967 = vmatprep.subr.mxu0 0.0
  %2968 = vmatpush2.msra.mxu0 0.0
  %2969 = vmatprep.subr.mxu0 0.0
  %2970 = vmatpush2.msra.mxu0 0.0
  %2971 = vmatprep.subr.mxu0 0.0
  %2972 = vmatpush2.msra.mxu0 0.0
  %2973 = vmatprep.subr.mxu0 0.0
  %2974 = vmatpush2.msra.mxu0 0.0
  %2975 = vmatprep.subr.mxu0 0.0
  %2976 = vmatpush2.msra.mxu0 0.0
  %2977 = vmatprep.subr.mxu0 0.0
  %2978 = vmatpush2.msra.mxu0 0.0
  %2979 = vmatprep.subr.mxu0 0.0
  %2980 = vmatpush2.msra.mxu0 0.0
  %2981 = vmatprep.subr.mxu0 0.0
  %2982 = vmatpush2.msra.mxu0 0.0
  %2983 = vmatprep.subr.mxu0 0.0
  %2984 = vmatpush2.msra.mxu0 0.0
  %2985 = vmatprep.mubr.f32.mxu0 0.0
  %2986 = vmatmul.mubr.f32.gmra.mxu0 %v2830
  %v2987 = vpop.f32.mrf.mxu0
  %v2988 = vadd.f32 0.0, %v2987
  %v2989 = vpop.f32.mrf.mxu0
  %v2990 = vadd.f32 0.0, %v2989
  %2991 = vdwg.mxu0
  %v2992 = vadd.f32 %v2846, %v2917
  %v2993 = vadd.f32 %v2847, %v2919
  %v2994 = vadd.f32 %v2848, %v2988
  %v2995 = vadd.f32 %v2849, %v2990
  %v2996 = vxor.u32 %v2992, 2147483648
  %v2997 = vmul.f32 %v2996, 1.442695
  %v2998 = vpow.pop %v2997
  %v2999 = vadd.f32 %v2998, 1.0
  %v3000 = vrcp.pop %v2999
  %v3001 = vmul.f32 1.0, %v3000
  %v3002 = vxor.u32 %v2993, 2147483648
  %v3003 = vmul.f32 %v3002, 1.442695
  %v3004 = vpow.pop %v3003
  %v3005 = vadd.f32 %v3004, 1.0
  %v3006 = vrcp.pop %v3005
  %v3007 = vmul.f32 1.0, %v3006
  %v3008 = vtanh.pop %v2994
  %v3009 = vxor.u32 %v2995, 2147483648
  %v3010 = vmul.f32 %v3009, 1.442695
  %v3011 = vpow.pop %v3010
  %v3012 = vadd.f32 %v3011, 1.0
  %v3013 = vrcp.pop %v3012
  %v3014 = vmul.f32 1.0, %v3013
  %v3015 = vmul.f32 %v3007, %v2828
  %v3016 = vmul.f32 %v3001, %v3008
  %v3017 = vadd.f32 %v3015, %v3016
  %v3018 = vtanh.pop %v3017
  %v3019 = vmul.f32 %v3014, %v3018
  %v3020 = vmul.f32 %v3019, %v2279
  %3021 = vadd.xlane.f32.xlu0 %v3020
  %v3022 = vpop.xlane.xlu0 %3021
  %v3023 = vmax.f32 %v2834, %v3022
  %v3024 = vsub.f32 %v2834, %v3023
  %v3025 = vmul.f32 %v3024, 1.442695
  %v3026 = vpow.pop %v3025
  %v3027 = vsub.f32 %v3022, %v3023
  %v3028 = vmul.f32 %v3027, 1.442695
  %v3029 = vpow.pop %v3028
  %v3030 = vmul.f32 %v3026, %v2842
  %v3031 = vadd.f32 %v3030, %v3029
  %v3032 = vmul.f32 %v3026, %v2845
  %v3033 = vmul.f32 %v3029, %v3019
  %v3034 = vadd.f32 %v3032, %v3033
  %v3035 = vld [vmem:[%s1144] sm:$0xff]
  %v3036 = vld [vmem:[%s1144 + $0x8] sm:$0xff]
  %v3037 = vld [vmem:[%s1144 + $0x10] sm:$0xff]
  %v3038 = vld [vmem:[%s1144 + $0x18] sm:$0xff]
  %3039 = vmatprep.subr.mxu0 %v1983
  %3040 = vmatpush1.msra.mxu0 %v1982
  %3041 = vmatprep.subr.mxu0 %v1979
  %3042 = vmatpush1.msra.mxu0 %v1978
  %3043 = vmatprep.subr.mxu0 %v1975
  %3044 = vmatpush1.msra.mxu0 %v1974
  %3045 = vmatprep.subr.mxu0 %v1971
  %3046 = vmatpush1.msra.mxu0 %v1970
  %3047 = vmatprep.subr.mxu0 %v1967
  %3048 = vmatpush1.msra.mxu0 %v1966
  %3049 = vmatprep.subr.mxu0 %v1963
  %3050 = vmatpush1.msra.mxu0 %v1962
  %3051 = vmatprep.subr.mxu0 %v1959
  %3052 = vmatpush1.msra.mxu0 %v1958
  %3053 = vmatprep.subr.mxu0 %v1955
  %3054 = vmatpush1.msra.mxu0 %v1954
  %3055 = vmatprep.subr.mxu0 %v1951
  %3056 = vmatpush1.msra.mxu0 %v1950
  %3057 = vmatprep.subr.mxu0 %v1947
  %3058 = vmatpush1.msra.mxu0 %v1946
  %3059 = vmatprep.subr.mxu0 %v1943
  %3060 = vmatpush1.msra.mxu0 %v1942
  %3061 = vmatprep.subr.mxu0 %v1939
  %3062 = vmatpush1.msra.mxu0 %v1938
  %3063 = vmatprep.subr.mxu0 %v1935
  %3064 = vmatpush1.msra.mxu0 %v1934
  %3065 = vmatprep.subr.mxu0 %v1931
  %3066 = vmatpush1.msra.mxu0 %v1930
  %3067 = vmatprep.subr.mxu0 %v1927
  %3068 = vmatpush1.msra.mxu0 %v1926
  %3069 = vmatprep.subr.mxu0 %v1923
  %3070 = vmatpush1.msra.mxu0 %v1922
  %3071 = vmatprep.subr.mxu0 0.0
  %3072 = vmatpush2.msra.mxu0 0.0
  %3073 = vmatprep.subr.mxu0 0.0
  %3074 = vmatpush2.msra.mxu0 0.0
  %3075 = vmatprep.subr.mxu0 0.0
  %3076 = vmatpush2.msra.mxu0 0.0
  %3077 = vmatprep.subr.mxu0 0.0
  %3078 = vmatpush2.msra.mxu0 0.0
  %3079 = vmatprep.subr.mxu0 0.0
  %3080 = vmatpush2.msra.mxu0 0.0
  %3081 = vmatprep.subr.mxu0 0.0
  %3082 = vmatpush2.msra.mxu0 0.0
  %3083 = vmatprep.subr.mxu0 0.0
  %3084 = vmatpush2.msra.mxu0 0.0
  %3085 = vmatprep.subr.mxu0 0.0
  %3086 = vmatpush2.msra.mxu0 0.0
  %3087 = vmatprep.subr.mxu0 0.0
  %3088 = vmatpush2.msra.mxu0 0.0
  %3089 = vmatprep.subr.mxu0 0.0
  %3090 = vmatpush2.msra.mxu0 0.0
  %3091 = vmatprep.subr.mxu0 0.0
  %3092 = vmatpush2.msra.mxu0 0.0
  %3093 = vmatprep.subr.mxu0 0.0
  %3094 = vmatpush2.msra.mxu0 0.0
  %3095 = vmatprep.subr.mxu0 0.0
  %3096 = vmatpush2.msra.mxu0 0.0
  %3097 = vmatprep.subr.mxu0 0.0
  %3098 = vmatpush2.msra.mxu0 0.0
  %3099 = vmatprep.subr.mxu0 0.0
  %3100 = vmatpush2.msra.mxu0 0.0
  %3101 = vmatprep.subr.mxu0 0.0
  %3102 = vmatpush2.msra.mxu0 0.0
  %3103 = vmatprep.mubr.f32.mxu0 0.0
  %3104 = vmatmul.mubr.f32.gmra.mxu0 %v3019
  %v3105 = vpop.f32.mrf.mxu0
  %v3106 = vadd.f32 0.0, %v3105
  %v3107 = vpop.f32.mrf.mxu0
  %v3108 = vadd.f32 0.0, %v3107
  %3109 = vdwg.mxu0
  %3110 = vmatprep.subr.mxu0 %v1985
  %3111 = vmatpush1.msra.mxu0 %v1984
  %3112 = vmatprep.subr.mxu0 %v1981
  %3113 = vmatpush1.msra.mxu0 %v1980
  %3114 = vmatprep.subr.mxu0 %v1977
  %3115 = vmatpush1.msra.mxu0 %v1976
  %3116 = vmatprep.subr.mxu0 %v1973
  %3117 = vmatpush1.msra.mxu0 %v1972
  %3118 = vmatprep.subr.mxu0 %v1969
  %3119 = vmatpush1.msra.mxu0 %v1968
  %3120 = vmatprep.subr.mxu0 %v1965
  %3121 = vmatpush1.msra.mxu0 %v1964
  %3122 = vmatprep.subr.mxu0 %v1961
  %3123 = vmatpush1.msra.mxu0 %v1960
  %3124 = vmatprep.subr.mxu0 %v1957
  %3125 = vmatpush1.msra.mxu0 %v1956
  %3126 = vmatprep.subr.mxu0 %v1953
  %3127 = vmatpush1.msra.mxu0 %v1952
  %3128 = vmatprep.subr.mxu0 %v1949
  %3129 = vmatpush1.msra.mxu0 %v1948
  %3130 = vmatprep.subr.mxu0 %v1945
  %3131 = vmatpush1.msra.mxu0 %v1944
  %3132 = vmatprep.subr.mxu0 %v1941
  %3133 = vmatpush1.msra.mxu0 %v1940
  %3134 = vmatprep.subr.mxu0 %v1937
  %3135 = vmatpush1.msra.mxu0 %v1936
  %3136 = vmatprep.subr.mxu0 %v1933
  %3137 = vmatpush1.msra.mxu0 %v1932
  %3138 = vmatprep.subr.mxu0 %v1929
  %3139 = vmatpush1.msra.mxu0 %v1928
  %3140 = vmatprep.subr.mxu0 %v1925
  %3141 = vmatpush1.msra.mxu0 %v1924
  %3142 = vmatprep.subr.mxu0 0.0
  %3143 = vmatpush2.msra.mxu0 0.0
  %3144 = vmatprep.subr.mxu0 0.0
  %3145 = vmatpush2.msra.mxu0 0.0
  %3146 = vmatprep.subr.mxu0 0.0
  %3147 = vmatpush2.msra.mxu0 0.0
  %3148 = vmatprep.subr.mxu0 0.0
  %3149 = vmatpush2.msra.mxu0 0.0
  %3150 = vmatprep.subr.mxu0 0.0
  %3151 = vmatpush2.msra.mxu0 0.0
  %3152 = vmatprep.subr.mxu0 0.0
  %3153 = vmatpush2.msra.mxu0 0.0
  %3154 = vmatprep.subr.mxu0 0.0
  %3155 = vmatpush2.msra.mxu0 0.0
  %3156 = vmatprep.subr.mxu0 0.0
  %3157 = vmatpush2.msra.mxu0 0.0
  %3158 = vmatprep.subr.mxu0 0.0
  %3159 = vmatpush2.msra.mxu0 0.0
  %3160 = vmatprep.subr.mxu0 0.0
  %3161 = vmatpush2.msra.mxu0 0.0
  %3162 = vmatprep.subr.mxu0 0.0
  %3163 = vmatpush2.msra.mxu0 0.0
  %3164 = vmatprep.subr.mxu0 0.0
  %3165 = vmatpush2.msra.mxu0 0.0
  %3166 = vmatprep.subr.mxu0 0.0
  %3167 = vmatpush2.msra.mxu0 0.0
  %3168 = vmatprep.subr.mxu0 0.0
  %3169 = vmatpush2.msra.mxu0 0.0
  %3170 = vmatprep.subr.mxu0 0.0
  %3171 = vmatpush2.msra.mxu0 0.0
  %3172 = vmatprep.subr.mxu0 0.0
  %3173 = vmatpush2.msra.mxu0 0.0
  %3174 = vmatprep.mubr.f32.mxu0 0.0
  %3175 = vmatmul.mubr.f32.gmra.mxu0 %v3019
  %v3176 = vpop.f32.mrf.mxu0
  %v3177 = vadd.f32 0.0, %v3176
  %v3178 = vpop.f32.mrf.mxu0
  %v3179 = vadd.f32 0.0, %v3178
  %3180 = vdwg.mxu0
  %v3181 = vadd.f32 %v3035, %v3106
  %v3182 = vadd.f32 %v3036, %v3108
  %v3183 = vadd.f32 %v3037, %v3177
  %v3184 = vadd.f32 %v3038, %v3179
  %v3185 = vxor.u32 %v3181, 2147483648
  %v3186 = vmul.f32 %v3185, 1.442695
  %v3187 = vpow.pop %v3186
  %v3188 = vadd.f32 %v3187, 1.0
  %v3189 = vrcp.pop %v3188
  %v3190 = vmul.f32 1.0, %v3189
  %v3191 = vxor.u32 %v3182, 2147483648
  %v3192 = vmul.f32 %v3191, 1.442695
  %v3193 = vpow.pop %v3192
  %v3194 = vadd.f32 %v3193, 1.0
  %v3195 = vrcp.pop %v3194
  %v3196 = vmul.f32 1.0, %v3195
  %v3197 = vtanh.pop %v3183
  %v3198 = vxor.u32 %v3184, 2147483648
  %v3199 = vmul.f32 %v3198, 1.442695
  %v3200 = vpow.pop %v3199
  %v3201 = vadd.f32 %v3200, 1.0
  %v3202 = vrcp.pop %v3201
  %v3203 = vmul.f32 1.0, %v3202
  %v3204 = vmul.f32 %v3196, %v3017
  %v3205 = vmul.f32 %v3190, %v3197
  %v3206 = vadd.f32 %v3204, %v3205
  %v3207 = vtanh.pop %v3206
  %v3208 = vmul.f32 %v3203, %v3207
  %v3209 = vmul.f32 %v3208, %v2279
  %3210 = vadd.xlane.f32.xlu0 %v3209
  %v3211 = vpop.xlane.xlu0 %3210
  %v3212 = vmax.f32 %v3023, %v3211
  %v3213 = vsub.f32 %v3023, %v3212
  %v3214 = vmul.f32 %v3213, 1.442695
  %v3215 = vpow.pop %v3214
  %v3216 = vsub.f32 %v3211, %v3212
  %v3217 = vmul.f32 %v3216, 1.442695
  %v3218 = vpow.pop %v3217
  %v3219 = vmul.f32 %v3215, %v3031
  %v3220 = vadd.f32 %v3219, %v3218
  %v3221 = vmul.f32 %v3215, %v3034
  %v3222 = vmul.f32 %v3218, %v3208
  %v3223 = vadd.f32 %v3221, %v3222
  %v3224 = vld [vmem:[%s1323] sm:$0xff]
  %v3225 = vld [vmem:[%s1323 + $0x8] sm:$0xff]
  %v3226 = vld [vmem:[%s1323 + $0x10] sm:$0xff]
  %v3227 = vld [vmem:[%s1323 + $0x18] sm:$0xff]
  %3228 = vmatprep.subr.mxu0 %v1983
  %3229 = vmatpush1.msra.mxu0 %v1982
  %3230 = vmatprep.subr.mxu0 %v1979
  %3231 = vmatpush1.msra.mxu0 %v1978
  %3232 = vmatprep.subr.mxu0 %v1975
  %3233 = vmatpush1.msra.mxu0 %v1974
  %3234 = vmatprep.subr.mxu0 %v1971
  %3235 = vmatpush1.msra.mxu0 %v1970
  %3236 = vmatprep.subr.mxu0 %v1967
  %3237 = vmatpush1.msra.mxu0 %v1966
  %3238 = vmatprep.subr.mxu0 %v1963
  %3239 = vmatpush1.msra.mxu0 %v1962
  %3240 = vmatprep.subr.mxu0 %v1959
  %3241 = vmatpush1.msra.mxu0 %v1958
  %3242 = vmatprep.subr.mxu0 %v1955
  %3243 = vmatpush1.msra.mxu0 %v1954
  %3244 = vmatprep.subr.mxu0 %v1951
  %3245 = vmatpush1.msra.mxu0 %v1950
  %3246 = vmatprep.subr.mxu0 %v1947
  %3247 = vmatpush1.msra.mxu0 %v1946
  %3248 = vmatprep.subr.mxu0 %v1943
  %3249 = vmatpush1.msra.mxu0 %v1942
  %3250 = vmatprep.subr.mxu0 %v1939
  %3251 = vmatpush1.msra.mxu0 %v1938
  %3252 = vmatprep.subr.mxu0 %v1935
  %3253 = vmatpush1.msra.mxu0 %v1934
  %3254 = vmatprep.subr.mxu0 %v1931
  %3255 = vmatpush1.msra.mxu0 %v1930
  %3256 = vmatprep.subr.mxu0 %v1927
  %3257 = vmatpush1.msra.mxu0 %v1926
  %3258 = vmatprep.subr.mxu0 %v1923
  %3259 = vmatpush1.msra.mxu0 %v1922
  %3260 = vmatprep.subr.mxu0 0.0
  %3261 = vmatpush2.msra.mxu0 0.0
  %3262 = vmatprep.subr.mxu0 0.0
  %3263 = vmatpush2.msra.mxu0 0.0
  %3264 = vmatprep.subr.mxu0 0.0
  %3265 = vmatpush2.msra.mxu0 0.0
  %3266 = vmatprep.subr.mxu0 0.0
  %3267 = vmatpush2.msra.mxu0 0.0
  %3268 = vmatprep.subr.mxu0 0.0
  %3269 = vmatpush2.msra.mxu0 0.0
  %3270 = vmatprep.subr.mxu0 0.0
  %3271 = vmatpush2.msra.mxu0 0.0
  %3272 = vmatprep.subr.mxu0 0.0
  %3273 = vmatpush2.msra.mxu0 0.0
  %3274 = vmatprep.subr.mxu0 0.0
  %3275 = vmatpush2.msra.mxu0 0.0
  %3276 = vmatprep.subr.mxu0 0.0
  %3277 = vmatpush2.msra.mxu0 0.0
  %3278 = vmatprep.subr.mxu0 0.0
  %3279 = vmatpush2.msra.mxu0 0.0
  %3280 = vmatprep.subr.mxu0 0.0
  %3281 = vmatpush2.msra.mxu0 0.0
  %3282 = vmatprep.subr.mxu0 0.0
  %3283 = vmatpush2.msra.mxu0 0.0
  %3284 = vmatprep.subr.mxu0 0.0
  %3285 = vmatpush2.msra.mxu0 0.0
  %3286 = vmatprep.subr.mxu0 0.0
  %3287 = vmatpush2.msra.mxu0 0.0
  %3288 = vmatprep.subr.mxu0 0.0
  %3289 = vmatpush2.msra.mxu0 0.0
  %3290 = vmatprep.subr.mxu0 0.0
  %3291 = vmatpush2.msra.mxu0 0.0
  %3292 = vmatprep.mubr.f32.mxu0 0.0
  %3293 = vmatmul.mubr.f32.gmra.mxu0 %v3208
  %v3294 = vpop.f32.mrf.mxu0
  %v3295 = vadd.f32 0.0, %v3294
  %v3296 = vpop.f32.mrf.mxu0
  %v3297 = vadd.f32 0.0, %v3296
  %3298 = vdwg.mxu0
  %3299 = vmatprep.subr.mxu0 %v1985
  %3300 = vmatpush1.msra.mxu0 %v1984
  %3301 = vmatprep.subr.mxu0 %v1981
  %3302 = vmatpush1.msra.mxu0 %v1980
  %3303 = vmatprep.subr.mxu0 %v1977
  %3304 = vmatpush1.msra.mxu0 %v1976
  %3305 = vmatprep.subr.mxu0 %v1973
  %3306 = vmatpush1.msra.mxu0 %v1972
  %3307 = vmatprep.subr.mxu0 %v1969
  %3308 = vmatpush1.msra.mxu0 %v1968
  %3309 = vmatprep.subr.mxu0 %v1965
  %3310 = vmatpush1.msra.mxu0 %v1964
  %3311 = vmatprep.subr.mxu0 %v1961
  %3312 = vmatpush1.msra.mxu0 %v1960
  %3313 = vmatprep.subr.mxu0 %v1957
  %3314 = vmatpush1.msra.mxu0 %v1956
  %3315 = vmatprep.subr.mxu0 %v1953
  %3316 = vmatpush1.msra.mxu0 %v1952
  %3317 = vmatprep.subr.mxu0 %v1949
  %3318 = vmatpush1.msra.mxu0 %v1948
  %3319 = vmatprep.subr.mxu0 %v1945
  %3320 = vmatpush1.msra.mxu0 %v1944
  %3321 = vmatprep.subr.mxu0 %v1941
  %3322 = vmatpush1.msra.mxu0 %v1940
  %3323 = vmatprep.subr.mxu0 %v1937
  %3324 = vmatpush1.msra.mxu0 %v1936
  %3325 = vmatprep.subr.mxu0 %v1933
  %3326 = vmatpush1.msra.mxu0 %v1932
  %3327 = vmatprep.subr.mxu0 %v1929
  %3328 = vmatpush1.msra.mxu0 %v1928
  %3329 = vmatprep.subr.mxu0 %v1925
  %3330 = vmatpush1.msra.mxu0 %v1924
  %3331 = vmatprep.subr.mxu0 0.0
  %3332 = vmatpush2.msra.mxu0 0.0
  %3333 = vmatprep.subr.mxu0 0.0
  %3334 = vmatpush2.msra.mxu0 0.0
  %3335 = vmatprep.subr.mxu0 0.0
  %3336 = vmatpush2.msra.mxu0 0.0
  %3337 = vmatprep.subr.mxu0 0.0
  %3338 = vmatpush2.msra.mxu0 0.0
  %3339 = vmatprep.subr.mxu0 0.0
  %3340 = vmatpush2.msra.mxu0 0.0
  %3341 = vmatprep.subr.mxu0 0.0
  %3342 = vmatpush2.msra.mxu0 0.0
  %3343 = vmatprep.subr.mxu0 0.0
  %3344 = vmatpush2.msra.mxu0 0.0
  %3345 = vmatprep.subr.mxu0 0.0
  %3346 = vmatpush2.msra.mxu0 0.0
  %3347 = vmatprep.subr.mxu0 0.0
  %3348 = vmatpush2.msra.mxu0 0.0
  %3349 = vmatprep.subr.mxu0 0.0
  %3350 = vmatpush2.msra.mxu0 0.0
  %3351 = vmatprep.subr.mxu0 0.0
  %3352 = vmatpush2.msra.mxu0 0.0
  %3353 = vmatprep.subr.mxu0 0.0
  %3354 = vmatpush2.msra.mxu0 0.0
  %3355 = vmatprep.subr.mxu0 0.0
  %3356 = vmatpush2.msra.mxu0 0.0
  %3357 = vmatprep.subr.mxu0 0.0
  %3358 = vmatpush2.msra.mxu0 0.0
  %3359 = vmatprep.subr.mxu0 0.0
  %3360 = vmatpush2.msra.mxu0 0.0
  %3361 = vmatprep.subr.mxu0 0.0
  %3362 = vmatpush2.msra.mxu0 0.0
  %3363 = vmatprep.mubr.f32.mxu0 0.0
  %3364 = vmatmul.mubr.f32.gmra.mxu0 %v3208
  %v3365 = vpop.f32.mrf.mxu0
  %v3366 = vadd.f32 0.0, %v3365
  %v3367 = vpop.f32.mrf.mxu0
  %v3368 = vadd.f32 0.0, %v3367
  %3369 = vdwg.mxu0
  %v3370 = vadd.f32 %v3224, %v3295
  %v3371 = vadd.f32 %v3225, %v3297
  %v3372 = vadd.f32 %v3226, %v3366
  %v3373 = vadd.f32 %v3227, %v3368
  %v3374 = vxor.u32 %v3370, 2147483648
  %v3375 = vmul.f32 %v3374, 1.442695
  %v3376 = vpow.pop %v3375
  %v3377 = vadd.f32 %v3376, 1.0
  %v3378 = vrcp.pop %v3377
  %v3379 = vmul.f32 1.0, %v3378
  %v3380 = vxor.u32 %v3371, 2147483648
  %v3381 = vmul.f32 %v3380, 1.442695
  %v3382 = vpow.pop %v3381
  %v3383 = vadd.f32 %v3382, 1.0
  %v3384 = vrcp.pop %v3383
  %v3385 = vmul.f32 1.0, %v3384
  %v3386 = vtanh.pop %v3372
  %v3387 = vxor.u32 %v3373, 2147483648
  %v3388 = vmul.f32 %v3387, 1.442695
  %v3389 = vpow.pop %v3388
  %v3390 = vadd.f32 %v3389, 1.0
  %v3391 = vrcp.pop %v3390
  %v3392 = vmul.f32 1.0, %v3391
  %v3393 = vmul.f32 %v3385, %v3206
  %v3394 = vmul.f32 %v3379, %v3386
  %v3395 = vadd.f32 %v3393, %v3394
  %v3396 = vtanh.pop %v3395
  %v3397 = vmul.f32 %v3392, %v3396
  %v3398 = vmul.f32 %v3397, %v2279
  %3399 = vadd.xlane.f32.xlu0 %v3398
  %v3400 = vpop.xlane.xlu0 %3399
  %v3401 = vmax.f32 %v3212, %v3400
  %v3402 = vsub.f32 %v3212, %v3401
  %v3403 = vmul.f32 %v3402, 1.442695
  %v3404 = vpow.pop %v3403
  %v3405 = vsub.f32 %v3400, %v3401
  %v3406 = vmul.f32 %v3405, 1.442695
  %v3407 = vpow.pop %v3406
  %v3408 = vmul.f32 %v3404, %v3220
  %v3409 = vadd.f32 %v3408, %v3407
  %v3410 = vmul.f32 %v3404, %v3223
  %v3411 = vmul.f32 %v3407, %v3397
  %v3412 = vadd.f32 %v3410, %v3411
  %v3413 = vld [vmem:[%s1502] sm:$0xff]
  %v3414 = vld [vmem:[%s1502 + $0x8] sm:$0xff]
  %v3415 = vld [vmem:[%s1502 + $0x10] sm:$0xff]
  %v3416 = vld [vmem:[%s1502 + $0x18] sm:$0xff]
  %3417 = vmatprep.subr.mxu0 %v1983
  %3418 = vmatpush1.msra.mxu0 %v1982
  %3419 = vmatprep.subr.mxu0 %v1979
  %3420 = vmatpush1.msra.mxu0 %v1978
  %3421 = vmatprep.subr.mxu0 %v1975
  %3422 = vmatpush1.msra.mxu0 %v1974
  %3423 = vmatprep.subr.mxu0 %v1971
  %3424 = vmatpush1.msra.mxu0 %v1970
  %3425 = vmatprep.subr.mxu0 %v1967
  %3426 = vmatpush1.msra.mxu0 %v1966
  %3427 = vmatprep.subr.mxu0 %v1963
  %3428 = vmatpush1.msra.mxu0 %v1962
  %3429 = vmatprep.subr.mxu0 %v1959
  %3430 = vmatpush1.msra.mxu0 %v1958
  %3431 = vmatprep.subr.mxu0 %v1955
  %3432 = vmatpush1.msra.mxu0 %v1954
  %3433 = vmatprep.subr.mxu0 %v1951
  %3434 = vmatpush1.msra.mxu0 %v1950
  %3435 = vmatprep.subr.mxu0 %v1947
  %3436 = vmatpush1.msra.mxu0 %v1946
  %3437 = vmatprep.subr.mxu0 %v1943
  %3438 = vmatpush1.msra.mxu0 %v1942
  %3439 = vmatprep.subr.mxu0 %v1939
  %3440 = vmatpush1.msra.mxu0 %v1938
  %3441 = vmatprep.subr.mxu0 %v1935
  %3442 = vmatpush1.msra.mxu0 %v1934
  %3443 = vmatprep.subr.mxu0 %v1931
  %3444 = vmatpush1.msra.mxu0 %v1930
  %3445 = vmatprep.subr.mxu0 %v1927
  %3446 = vmatpush1.msra.mxu0 %v1926
  %3447 = vmatprep.subr.mxu0 %v1923
  %3448 = vmatpush1.msra.mxu0 %v1922
  %3449 = vmatprep.subr.mxu0 0.0
  %3450 = vmatpush2.msra.mxu0 0.0
  %3451 = vmatprep.subr.mxu0 0.0
  %3452 = vmatpush2.msra.mxu0 0.0
  %3453 = vmatprep.subr.mxu0 0.0
  %3454 = vmatpush2.msra.mxu0 0.0
  %3455 = vmatprep.subr.mxu0 0.0
  %3456 = vmatpush2.msra.mxu0 0.0
  %3457 = vmatprep.subr.mxu0 0.0
  %3458 = vmatpush2.msra.mxu0 0.0
  %3459 = vmatprep.subr.mxu0 0.0
  %3460 = vmatpush2.msra.mxu0 0.0
  %3461 = vmatprep.subr.mxu0 0.0
  %3462 = vmatpush2.msra.mxu0 0.0
  %3463 = vmatprep.subr.mxu0 0.0
  %3464 = vmatpush2.msra.mxu0 0.0
  %3465 = vmatprep.subr.mxu0 0.0
  %3466 = vmatpush2.msra.mxu0 0.0
  %3467 = vmatprep.subr.mxu0 0.0
  %3468 = vmatpush2.msra.mxu0 0.0
  %3469 = vmatprep.subr.mxu0 0.0
  %3470 = vmatpush2.msra.mxu0 0.0
  %3471 = vmatprep.subr.mxu0 0.0
  %3472 = vmatpush2.msra.mxu0 0.0
  %3473 = vmatprep.subr.mxu0 0.0
  %3474 = vmatpush2.msra.mxu0 0.0
  %3475 = vmatprep.subr.mxu0 0.0
  %3476 = vmatpush2.msra.mxu0 0.0
  %3477 = vmatprep.subr.mxu0 0.0
  %3478 = vmatpush2.msra.mxu0 0.0
  %3479 = vmatprep.subr.mxu0 0.0
  %3480 = vmatpush2.msra.mxu0 0.0
  %3481 = vmatprep.mubr.f32.mxu0 0.0
  %3482 = vmatmul.mubr.f32.gmra.mxu0 %v3397
  %v3483 = vpop.f32.mrf.mxu0
  %v3484 = vadd.f32 0.0, %v3483
  %v3485 = vpop.f32.mrf.mxu0
  %v3486 = vadd.f32 0.0, %v3485
  %3487 = vdwg.mxu0
  %3488 = vmatprep.subr.mxu0 %v1985
  %3489 = vmatpush1.msra.mxu0 %v1984
  %3490 = vmatprep.subr.mxu0 %v1981
  %3491 = vmatpush1.msra.mxu0 %v1980
  %3492 = vmatprep.subr.mxu0 %v1977
  %3493 = vmatpush1.msra.mxu0 %v1976
  %3494 = vmatprep.subr.mxu0 %v1973
  %3495 = vmatpush1.msra.mxu0 %v1972
  %3496 = vmatprep.subr.mxu0 %v1969
  %3497 = vmatpush1.msra.mxu0 %v1968
  %3498 = vmatprep.subr.mxu0 %v1965
  %3499 = vmatpush1.msra.mxu0 %v1964
  %3500 = vmatprep.subr.mxu0 %v1961
  %3501 = vmatpush1.msra.mxu0 %v1960
  %3502 = vmatprep.subr.mxu0 %v1957
  %3503 = vmatpush1.msra.mxu0 %v1956
  %3504 = vmatprep.subr.mxu0 %v1953
  %3505 = vmatpush1.msra.mxu0 %v1952
  %3506 = vmatprep.subr.mxu0 %v1949
  %3507 = vmatpush1.msra.mxu0 %v1948
  %3508 = vmatprep.subr.mxu0 %v1945
  %3509 = vmatpush1.msra.mxu0 %v1944
  %3510 = vmatprep.subr.mxu0 %v1941
  %3511 = vmatpush1.msra.mxu0 %v1940
  %3512 = vmatprep.subr.mxu0 %v1937
  %3513 = vmatpush1.msra.mxu0 %v1936
  %3514 = vmatprep.subr.mxu0 %v1933
  %3515 = vmatpush1.msra.mxu0 %v1932
  %3516 = vmatprep.subr.mxu0 %v1929
  %3517 = vmatpush1.msra.mxu0 %v1928
  %3518 = vmatprep.subr.mxu0 %v1925
  %3519 = vmatpush1.msra.mxu0 %v1924
  %3520 = vmatprep.subr.mxu0 0.0
  %3521 = vmatpush2.msra.mxu0 0.0
  %3522 = vmatprep.subr.mxu0 0.0
  %3523 = vmatpush2.msra.mxu0 0.0
  %3524 = vmatprep.subr.mxu0 0.0
  %3525 = vmatpush2.msra.mxu0 0.0
  %3526 = vmatprep.subr.mxu0 0.0
  %3527 = vmatpush2.msra.mxu0 0.0
  %3528 = vmatprep.subr.mxu0 0.0
  %3529 = vmatpush2.msra.mxu0 0.0
  %3530 = vmatprep.subr.mxu0 0.0
  %3531 = vmatpush2.msra.mxu0 0.0
  %3532 = vmatprep.subr.mxu0 0.0
  %3533 = vmatpush2.msra.mxu0 0.0
  %3534 = vmatprep.subr.mxu0 0.0
  %3535 = vmatpush2.msra.mxu0 0.0
  %3536 = vmatprep.subr.mxu0 0.0
  %3537 = vmatpush2.msra.mxu0 0.0
  %3538 = vmatprep.subr.mxu0 0.0
  %3539 = vmatpush2.msra.mxu0 0.0
  %3540 = vmatprep.subr.mxu0 0.0
  %3541 = vmatpush2.msra.mxu0 0.0
  %3542 = vmatprep.subr.mxu0 0.0
  %3543 = vmatpush2.msra.mxu0 0.0
  %3544 = vmatprep.subr.mxu0 0.0
  %3545 = vmatpush2.msra.mxu0 0.0
  %3546 = vmatprep.subr.mxu0 0.0
  %3547 = vmatpush2.msra.mxu0 0.0
  %3548 = vmatprep.subr.mxu0 0.0
  %3549 = vmatpush2.msra.mxu0 0.0
  %3550 = vmatprep.subr.mxu0 0.0
  %3551 = vmatpush2.msra.mxu0 0.0
  %3552 = vmatprep.mubr.f32.mxu0 0.0
  %3553 = vmatmul.mubr.f32.gmra.mxu0 %v3397
  %v3554 = vpop.f32.mrf.mxu0
  %v3555 = vadd.f32 0.0, %v3554
  %v3556 = vpop.f32.mrf.mxu0
  %v3557 = vadd.f32 0.0, %v3556
  %3558 = vdwg.mxu0
  %v3559 = vadd.f32 %v3413, %v3484
  %v3560 = vadd.f32 %v3414, %v3486
  %v3561 = vadd.f32 %v3415, %v3555
  %v3562 = vadd.f32 %v3416, %v3557
  %v3563 = vxor.u32 %v3559, 2147483648
  %v3564 = vmul.f32 %v3563, 1.442695
  %v3565 = vpow.pop %v3564
  %v3566 = vadd.f32 %v3565, 1.0
  %v3567 = vrcp.pop %v3566
  %v3568 = vmul.f32 1.0, %v3567
  %v3569 = vxor.u32 %v3560, 2147483648
  %v3570 = vmul.f32 %v3569, 1.442695
  %v3571 = vpow.pop %v3570
  %v3572 = vadd.f32 %v3571, 1.0
  %v3573 = vrcp.pop %v3572
  %v3574 = vmul.f32 1.0, %v3573
  %v3575 = vtanh.pop %v3561
  %v3576 = vxor.u32 %v3562, 2147483648
  %v3577 = vmul.f32 %v3576, 1.442695
  %v3578 = vpow.pop %v3577
  %v3579 = vadd.f32 %v3578, 1.0
  %v3580 = vrcp.pop %v3579
  %v3581 = vmul.f32 1.0, %v3580
  %v3582 = vmul.f32 %v3574, %v3395
  %v3583 = vmul.f32 %v3568, %v3575
  %v3584 = vadd.f32 %v3582, %v3583
  %v3585 = vtanh.pop %v3584
  %v3586 = vmul.f32 %v3581, %v3585
  %v3587 = vmul.f32 %v3586, %v2279
  %3588 = vadd.xlane.f32.xlu0 %v3587
  %v3589 = vpop.xlane.xlu0 %3588
  %v3590 = vmax.f32 %v3401, %v3589
  %v3591 = vsub.f32 %v3401, %v3590
  %v3592 = vmul.f32 %v3591, 1.442695
  %v3593 = vpow.pop %v3592
  %v3594 = vsub.f32 %v3589, %v3590
  %v3595 = vmul.f32 %v3594, 1.442695
  %v3596 = vpow.pop %v3595
  %v3597 = vmul.f32 %v3593, %v3409
  %v3598 = vadd.f32 %v3597, %v3596
  %v3599 = vmul.f32 %v3593, %v3412
  %v3600 = vmul.f32 %v3596, %v3586
  %v3601 = vadd.f32 %v3599, %v3600
  %v3602 = vld [vmem:[%s1681] sm:$0xff]
  %v3603 = vld [vmem:[%s1681 + $0x8] sm:$0xff]
  %v3604 = vld [vmem:[%s1681 + $0x10] sm:$0xff]
  %v3605 = vld [vmem:[%s1681 + $0x18] sm:$0xff]
  %3606 = vmatprep.subr.mxu0 %v1983
  %3607 = vmatpush1.msra.mxu0 %v1982
  %3608 = vmatprep.subr.mxu0 %v1979
  %3609 = vmatpush1.msra.mxu0 %v1978
  %3610 = vmatprep.subr.mxu0 %v1975
  %3611 = vmatpush1.msra.mxu0 %v1974
  %3612 = vmatprep.subr.mxu0 %v1971
  %3613 = vmatpush1.msra.mxu0 %v1970
  %3614 = vmatprep.subr.mxu0 %v1967
  %3615 = vmatpush1.msra.mxu0 %v1966
  %3616 = vmatprep.subr.mxu0 %v1963
  %3617 = vmatpush1.msra.mxu0 %v1962
  %3618 = vmatprep.subr.mxu0 %v1959
  %3619 = vmatpush1.msra.mxu0 %v1958
  %3620 = vmatprep.subr.mxu0 %v1955
  %3621 = vmatpush1.msra.mxu0 %v1954
  %3622 = vmatprep.subr.mxu0 %v1951
  %3623 = vmatpush1.msra.mxu0 %v1950
  %3624 = vmatprep.subr.mxu0 %v1947
  %3625 = vmatpush1.msra.mxu0 %v1946
  %3626 = vmatprep.subr.mxu0 %v1943
  %3627 = vmatpush1.msra.mxu0 %v1942
  %3628 = vmatprep.subr.mxu0 %v1939
  %3629 = vmatpush1.msra.mxu0 %v1938
  %3630 = vmatprep.subr.mxu0 %v1935
  %3631 = vmatpush1.msra.mxu0 %v1934
  %3632 = vmatprep.subr.mxu0 %v1931
  %3633 = vmatpush1.msra.mxu0 %v1930
  %3634 = vmatprep.subr.mxu0 %v1927
  %3635 = vmatpush1.msra.mxu0 %v1926
  %3636 = vmatprep.subr.mxu0 %v1923
  %3637 = vmatpush1.msra.mxu0 %v1922
  %3638 = vmatprep.subr.mxu0 0.0
  %3639 = vmatpush2.msra.mxu0 0.0
  %3640 = vmatprep.subr.mxu0 0.0
  %3641 = vmatpush2.msra.mxu0 0.0
  %3642 = vmatprep.subr.mxu0 0.0
  %3643 = vmatpush2.msra.mxu0 0.0
  %3644 = vmatprep.subr.mxu0 0.0
  %3645 = vmatpush2.msra.mxu0 0.0
  %3646 = vmatprep.subr.mxu0 0.0
  %3647 = vmatpush2.msra.mxu0 0.0
  %3648 = vmatprep.subr.mxu0 0.0
  %3649 = vmatpush2.msra.mxu0 0.0
  %3650 = vmatprep.subr.mxu0 0.0
  %3651 = vmatpush2.msra.mxu0 0.0
  %3652 = vmatprep.subr.mxu0 0.0
  %3653 = vmatpush2.msra.mxu0 0.0
  %3654 = vmatprep.subr.mxu0 0.0
  %3655 = vmatpush2.msra.mxu0 0.0
  %3656 = vmatprep.subr.mxu0 0.0
  %3657 = vmatpush2.msra.mxu0 0.0
  %3658 = vmatprep.subr.mxu0 0.0
  %3659 = vmatpush2.msra.mxu0 0.0
  %3660 = vmatprep.subr.mxu0 0.0
  %3661 = vmatpush2.msra.mxu0 0.0
  %3662 = vmatprep.subr.mxu0 0.0
  %3663 = vmatpush2.msra.mxu0 0.0
  %3664 = vmatprep.subr.mxu0 0.0
  %3665 = vmatpush2.msra.mxu0 0.0
  %3666 = vmatprep.subr.mxu0 0.0
  %3667 = vmatpush2.msra.mxu0 0.0
  %3668 = vmatprep.subr.mxu0 0.0
  %3669 = vmatpush2.msra.mxu0 0.0
  %3670 = vmatprep.mubr.f32.mxu0 0.0
  %3671 = vmatmul.mubr.f32.gmra.mxu0 %v3586
  %v3672 = vpop.f32.mrf.mxu0
  %v3673 = vadd.f32 0.0, %v3672
  %v3674 = vpop.f32.mrf.mxu0
  %v3675 = vadd.f32 0.0, %v3674
  %3676 = vdwg.mxu0
  %3677 = vmatprep.subr.mxu0 %v1985
  %3678 = vmatpush1.msra.mxu0 %v1984
  %3679 = vmatprep.subr.mxu0 %v1981
  %3680 = vmatpush1.msra.mxu0 %v1980
  %3681 = vmatprep.subr.mxu0 %v1977
  %3682 = vmatpush1.msra.mxu0 %v1976
  %3683 = vmatprep.subr.mxu0 %v1973
  %3684 = vmatpush1.msra.mxu0 %v1972
  %3685 = vmatprep.subr.mxu0 %v1969
  %3686 = vmatpush1.msra.mxu0 %v1968
  %3687 = vmatprep.subr.mxu0 %v1965
  %3688 = vmatpush1.msra.mxu0 %v1964
  %3689 = vmatprep.subr.mxu0 %v1961
  %3690 = vmatpush1.msra.mxu0 %v1960
  %3691 = vmatprep.subr.mxu0 %v1957
  %3692 = vmatpush1.msra.mxu0 %v1956
  %3693 = vmatprep.subr.mxu0 %v1953
  %3694 = vmatpush1.msra.mxu0 %v1952
  %3695 = vmatprep.subr.mxu0 %v1949
  %3696 = vmatpush1.msra.mxu0 %v1948
  %3697 = vmatprep.subr.mxu0 %v1945
  %3698 = vmatpush1.msra.mxu0 %v1944
  %3699 = vmatprep.subr.mxu0 %v1941
  %3700 = vmatpush1.msra.mxu0 %v1940
  %3701 = vmatprep.subr.mxu0 %v1937
  %3702 = vmatpush1.msra.mxu0 %v1936
  %3703 = vmatprep.subr.mxu0 %v1933
  %3704 = vmatpush1.msra.mxu0 %v1932
  %3705 = vmatprep.subr.mxu0 %v1929
  %3706 = vmatpush1.msra.mxu0 %v1928
  %3707 = vmatprep.subr.mxu0 %v1925
  %3708 = vmatpush1.msra.mxu0 %v1924
  %3709 = vmatprep.subr.mxu0 0.0
  %3710 = vmatpush2.msra.mxu0 0.0
  %3711 = vmatprep.subr.mxu0 0.0
  %3712 = vmatpush2.msra.mxu0 0.0
  %3713 = vmatprep.subr.mxu0 0.0
  %3714 = vmatpush2.msra.mxu0 0.0
  %3715 = vmatprep.subr.mxu0 0.0
  %3716 = vmatpush2.msra.mxu0 0.0
  %3717 = vmatprep.subr.mxu0 0.0
  %3718 = vmatpush2.msra.mxu0 0.0
  %3719 = vmatprep.subr.mxu0 0.0
  %3720 = vmatpush2.msra.mxu0 0.0
  %3721 = vmatprep.subr.mxu0 0.0
  %3722 = vmatpush2.msra.mxu0 0.0
  %3723 = vmatprep.subr.mxu0 0.0
  %3724 = vmatpush2.msra.mxu0 0.0
  %3725 = vmatprep.subr.mxu0 0.0
  %3726 = vmatpush2.msra.mxu0 0.0
  %3727 = vmatprep.subr.mxu0 0.0
  %3728 = vmatpush2.msra.mxu0 0.0
  %3729 = vmatprep.subr.mxu0 0.0
  %3730 = vmatpush2.msra.mxu0 0.0
  %3731 = vmatprep.subr.mxu0 0.0
  %3732 = vmatpush2.msra.mxu0 0.0
  %3733 = vmatprep.subr.mxu0 0.0
  %3734 = vmatpush2.msra.mxu0 0.0
  %3735 = vmatprep.subr.mxu0 0.0
  %3736 = vmatpush2.msra.mxu0 0.0
  %3737 = vmatprep.subr.mxu0 0.0
  %3738 = vmatpush2.msra.mxu0 0.0
  %3739 = vmatprep.subr.mxu0 0.0
  %3740 = vmatpush2.msra.mxu0 0.0
  %3741 = vmatprep.mubr.f32.mxu0 0.0
  %3742 = vmatmul.mubr.f32.gmra.mxu0 %v3586
  %v3743 = vpop.f32.mrf.mxu0
  %v3744 = vadd.f32 0.0, %v3743
  %v3745 = vpop.f32.mrf.mxu0
  %v3746 = vadd.f32 0.0, %v3745
  %3747 = vdwg.mxu0
  %v3748 = vadd.f32 %v3602, %v3673
  %v3749 = vadd.f32 %v3603, %v3675
  %v3750 = vadd.f32 %v3604, %v3744
  %v3751 = vadd.f32 %v3605, %v3746
  %v3752 = vxor.u32 %v3748, 2147483648
  %v3753 = vmul.f32 %v3752, 1.442695
  %v3754 = vpow.pop %v3753
  %v3755 = vadd.f32 %v3754, 1.0
  %v3756 = vrcp.pop %v3755
  %v3757 = vmul.f32 1.0, %v3756
  %v3758 = vxor.u32 %v3749, 2147483648
  %v3759 = vmul.f32 %v3758, 1.442695
  %v3760 = vpow.pop %v3759
  %v3761 = vadd.f32 %v3760, 1.0
  %v3762 = vrcp.pop %v3761
  %v3763 = vmul.f32 1.0, %v3762
  %v3764 = vtanh.pop %v3750
  %v3765 = vxor.u32 %v3751, 2147483648
  %v3766 = vmul.f32 %v3765, 1.442695
  %v3767 = vpow.pop %v3766
  %v3768 = vadd.f32 %v3767, 1.0
  %v3769 = vrcp.pop %v3768
  %v3770 = vmul.f32 1.0, %v3769
  %v3771 = vmul.f32 %v3763, %v3584
  %v3772 = vmul.f32 %v3757, %v3764
  %v3773 = vadd.f32 %v3771, %v3772
  %v3774 = vtanh.pop %v3773
  %v3775 = vmul.f32 %v3770, %v3774
  %v3776 = vmul.f32 %v3775, %v2279
  %3777 = vadd.xlane.f32.xlu0 %v3776
  %v3778 = vpop.xlane.xlu0 %3777
  %v3779 = vmax.f32 %v3590, %v3778
  %v3780 = vsub.f32 %v3590, %v3779
  %v3781 = vmul.f32 %v3780, 1.442695
  %v3782 = vpow.pop %v3781
  %v3783 = vsub.f32 %v3778, %v3779
  %v3784 = vmul.f32 %v3783, 1.442695
  %v3785 = vpow.pop %v3784
  %v3786 = vmul.f32 %v3782, %v3598
  %v3787 = vadd.f32 %v3786, %v3785
  %v3788 = vmul.f32 %v3782, %v3601
  %v3789 = vmul.f32 %v3785, %v3775
  %v3790 = vadd.f32 %v3788, %v3789
  %v3791 = vrcp.pop %v3787
  %v3792 = vmul.f32 %v3790, %v3791
  %v3793 = vld [vmem:[%s8] sm:$0xff]
  %v3794 = vld [vmem:[%s8 + $0x8] sm:$0xff]
  %v3795 = vld [vmem:[%s8 + $0x10] sm:$0xff]
  %v3796 = vld [vmem:[%s8 + $0x18] sm:$0xff]
  %v3797 = vld [vmem:[%s8 + $0x20] sm:$0xff]
  %v3798 = vld [vmem:[%s8 + $0x28] sm:$0xff]
  %v3799 = vld [vmem:[%s8 + $0x30] sm:$0xff]
  %v3800 = vld [vmem:[%s8 + $0x38] sm:$0xff]
  %v3801 = vld [vmem:[%s8 + $0x40] sm:$0xff]
  %v3802 = vld [vmem:[%s8 + $0x48] sm:$0xff]
  %v3803 = vld [vmem:[%s8 + $0x50] sm:$0xff]
  %v3804 = vld [vmem:[%s8 + $0x58] sm:$0xff]
  %v3805 = vld [vmem:[%s8 + $0x60] sm:$0xff]
  %v3806 = vld [vmem:[%s8 + $0x68] sm:$0xff]
  %v3807 = vld [vmem:[%s8 + $0x70] sm:$0xff]
  %v3808 = vld [vmem:[%s8 + $0x78] sm:$0xff]
  %v3809 = vld [vmem:[%s9] sm:$0x1]
  %v3811 = vlaneseq
  %v3812 = vshrl.u32 %v3811, 7
  %v3813 = vsub.s32 0, %v3812
  %v3814 = vrot.slane %v3809, %v3813
  %3816 = vmatprep.subr.mxu0 0.0
  %3817 = vmatpush1.msra.mxu0 %v3808
  %3818 = vmatprep.subr.mxu0 0.0
  %3819 = vmatpush1.msra.mxu0 %v3807
  %3820 = vmatprep.subr.mxu0 0.0
  %3821 = vmatpush1.msra.mxu0 %v3806
  %3822 = vmatprep.subr.mxu0 0.0
  %3823 = vmatpush1.msra.mxu0 %v3805
  %3824 = vmatprep.subr.mxu0 0.0
  %3825 = vmatpush1.msra.mxu0 %v3804
  %3826 = vmatprep.subr.mxu0 0.0
  %3827 = vmatpush1.msra.mxu0 %v3803
  %3828 = vmatprep.subr.mxu0 0.0
  %3829 = vmatpush1.msra.mxu0 %v3802
  %3830 = vmatprep.subr.mxu0 0.0
  %3831 = vmatpush1.msra.mxu0 %v3801
  %3832 = vmatprep.subr.mxu0 0.0
  %3833 = vmatpush1.msra.mxu0 %v3800
  %3834 = vmatprep.subr.mxu0 0.0
  %3835 = vmatpush1.msra.mxu0 %v3799
  %3836 = vmatprep.subr.mxu0 0.0
  %3837 = vmatpush1.msra.mxu0 %v3798
  %3838 = vmatprep.subr.mxu0 0.0
  %3839 = vmatpush1.msra.mxu0 %v3797
  %3840 = vmatprep.subr.mxu0 0.0
  %3841 = vmatpush1.msra.mxu0 %v3796
  %3842 = vmatprep.subr.mxu0 0.0
  %3843 = vmatpush1.msra.mxu0 %v3795
  %3844 = vmatprep.subr.mxu0 0.0
  %3845 = vmatpush1.msra.mxu0 %v3794
  %3846 = vmatprep.subr.mxu0 0.0
  %3847 = vmatpush1.msra.mxu0 %v3793
  %3848 = vmatprep.subr.mxu0 0.0
  %3849 = vmatpush2.msra.mxu0 0.0
  %3850 = vmatprep.subr.mxu0 0.0
  %3851 = vmatpush2.msra.mxu0 0.0
  %3852 = vmatprep.subr.mxu0 0.0
  %3853 = vmatpush2.msra.mxu0 0.0
  %3854 = vmatprep.subr.mxu0 0.0
  %3855 = vmatpush2.msra.mxu0 0.0
  %3856 = vmatprep.subr.mxu0 0.0
  %3857 = vmatpush2.msra.mxu0 0.0
  %3858 = vmatprep.subr.mxu0 0.0
  %3859 = vmatpush2.msra.mxu0 0.0
  %3860 = vmatprep.subr.mxu0 0.0
  %3861 = vmatpush2.msra.mxu0 0.0
  %3862 = vmatprep.subr.mxu0 0.0
  %3863 = vmatpush2.msra.mxu0 0.0
  %3864 = vmatprep.subr.mxu0 0.0
  %3865 = vmatpush2.msra.mxu0 0.0
  %3866 = vmatprep.subr.mxu0 0.0
  %3867 = vmatpush2.msra.mxu0 0.0
  %3868 = vmatprep.subr.mxu0 0.0
  %3869 = vmatpush2.msra.mxu0 0.0
  %3870 = vmatprep.subr.mxu0 0.0
  %3871 = vmatpush2.msra.mxu0 0.0
  %3872 = vmatprep.subr.mxu0 0.0
  %3873 = vmatpush2.msra.mxu0 0.0
  %3874 = vmatprep.subr.mxu0 0.0
  %3875 = vmatpush2.msra.mxu0 0.0
  %3876 = vmatprep.subr.mxu0 0.0
  %3877 = vmatpush2.msra.mxu0 0.0
  %3878 = vmatprep.subr.mxu0 0.0
  %3879 = vmatpush2.msra.mxu0 0.0
  %3880 = vmatprep.mubr.f32.mxu0 0.0
  %3881 = vmatmul.mubr.f32.gmra.mxu0 %v3792
  %v3882 = vpop.f32.mrf.mxu0
  %v3883 = vadd.f32 %v3814, %v3882
  %v3884 = vpop.f32.mrf.mxu0
  %3885 = vdwg.mxu0
  %3886 = vst [vmem:[%s10] sm:$0xff] %v3883
  // Predicated region
  $region42: #{lstmx1_attention_forward.1} parent=0 // pred_check
    _
  $region43: #{lstmx1_attention_forward.1} parent=0 // pred_check_branch
    %3888 = sbr.rel (0) target = $region45
  $region44: #{lstmx1_attention_forward.1} parent=0 // pred_region
    _
  $region45: #{lstmx1_attention_forward.1} parent=0 // pred_fallthru
    _
  // Predicated region
  $region46: #{lstmx1_attention_forward.1} parent=0 // pred_check
    _
  $region47: #{lstmx1_attention_forward.1} parent=0 // pred_check_branch
    %3890 = sbr.rel (0) target = $region49
  $region48: #{lstmx1_attention_forward.1} parent=0 // pred_region
    _
  $region49: #{lstmx1_attention_forward.1} parent=0 // pred_fallthru
    _

</llo_original>
